<compile_context>
chip_gen: v7x
topology: tpu7x:2x2x1
jax: 0.10.0
libtpu: 0.0.40
codegen_flags: <defaults>
</compile_context>

<pallas_src>
import functools

import numpy as np
import jax
import jax.numpy as jnp
from jax.experimental import pallas as pl
from jax.experimental.pallas import tpu as pltpu


# ----------------------------------------------------------------------------- kernel

def _capsule_conv_kernel(inp_ref, wm2_ref, wm2t_ref, nv_ref, gamma_ref, beta_ref,
                         out_ref, *, use_routing, apply_ln, scale, sqrt_d, eps):
    """Fused routing + capsule-output kernel; one grid step per batch element.

    inp_ref   : (1, A, Wo, NKX)    unfolded input, [b, a, w, (n k x)]
    wm2_ref   : (M, NKX, D)        weights, [m, (n k x), d]
    wm2t_ref  : (M, D, NKX)        same weights, transposed (routing matmul)
    nv_ref    : (1, M, Wo, OUT_D)  previous capsule value (unused on 1st iter)
    gamma_ref : (1, OUT_D)         LayerNorm scale
    beta_ref  : (1, OUT_D)         LayerNorm shift
    out_ref   : (1, Wo, M*OUT_D)   lane-dense output slab
    """
    f32 = jnp.float32
    A = sqrt_d            # 'a' extent
    D = sqrt_d            # 'd' extent
    X = sqrt_d            # 'x' extent
    M = wm2_ref.shape[0]
    NKX = wm2_ref.shape[1]
    Wo = inp_ref.shape[2]

    # batched-over-m dot_general: contract lhs dim 2 with rhs dim 1, batch (0, 0)
    dn = (((2,), (1,)), ((0,), (0,)))

    wm2 = wm2_ref[...]                                               # (M, NKX, D)

    if use_routing:
        wm2t = wm2t_ref[...]                                         # (M, D, NKX)
        nv = nv_ref[0]                                               # (M, Wo, OUT_D)

        # ---- phase 1: routing logits -------------------------------------------
        # S[m, w, (n k x)] = sum_{a,d} inp[a,w,nkx] * w[nkx,d,m] * nv[m,w,a,d]
        S = None
        for a in range(A):
            nv_a = nv[:, :, a * D:(a + 1) * D]                       # (M, Wo, D)
            E_a = jax.lax.dot_general(nv_a, wm2t, dn,
                                      preferred_element_type=f32)    # (M, Wo, NKX)
            term = inp_ref[0, a][None] * E_a
            S = term if S is None else S + term                      # (M, Wo, NKX)

        # Sum over x inside each (n,k) lane group, broadcast back over x and
        # apply the logit scale, all with one tiny in-kernel block matrix
        # (no HBM constants, no lane-group reshapes, and the broadcast-back
        # makes qk directly usable by phase 2 without any qk_exp expansion).
        ridx = jax.lax.broadcasted_iota(jnp.int32, (NKX, NKX), 0).astype(f32)
        cidx = jax.lax.broadcasted_iota(jnp.int32, (NKX, NKX), 1).astype(f32)
        rblk = jnp.floor((ridx + 0.5) * (1.0 / X))                   # exact i // X
        cblk = jnp.floor((cidx + 0.5) * (1.0 / X))
        Sx = jnp.where(rblk == cblk, f32(scale), f32(0.0))           # (NKX, NKX)
        Sxb = jnp.broadcast_to(Sx[None], (M, NKX, NKX))
        L = jax.lax.dot_general(S, Sxb, dn,
                                preferred_element_type=f32)          # (M, Wo, NKX)

        # softmax over m, then divide by (sum over w + 1e-10); everything stays
        # replicated over x so it feeds phase 2 directly.
        mmax = jnp.max(L, axis=0, keepdims=True)
        e = jnp.exp(L - mmax)
        den = jnp.sum(e, axis=0, keepdims=True)
        sm = e * pl.reciprocal(den, approx=True)
        wsum = jnp.sum(sm, axis=1, keepdims=True)                    # (M, 1, NKX)
        qk = sm * pl.reciprocal(wsum + 1e-10, approx=True)           # (M, Wo, NKX)
    else:
        # first routing iteration: softmax(zeros) == 1/M, no w-normalisation
        # (this intentionally matches the PyTorch module's first branch).
        qk = jnp.full((M, Wo, NKX), 1.0 / M, dtype=f32)

    # ---- phase 2: qk-weighted capsule contraction + LayerNorm -------------------
    zs = []
    for a in range(A):
        g = inp_ref[0, a][None] * qk                                 # (M, Wo, NKX)
        zs.append(jax.lax.dot_general(g, wm2, dn,
                                      preferred_element_type=f32))   # (M, Wo, D)

    gam = gamma_ref[...]                                             # (1, OUT_D)
    bet = beta_ref[...]
    outs = []
    for m in range(M):
        zm = jnp.concatenate([zs[a][m] for a in range(A)], axis=-1)  # (Wo, OUT_D)
        if apply_ln:
            mu = jnp.mean(zm, axis=-1, keepdims=True)
            var = jnp.mean((zm - mu) ** 2, axis=-1, keepdims=True)
            zm = (zm - mu) * jax.lax.rsqrt(var + eps)
            zm = zm * gam + bet
        outs.append(zm)

    # single lane-dense (Wo, M*OUT_D) store
    out_ref[0] = jnp.concatenate(outs, axis=-1).astype(out_ref.dtype)


# ----------------------------------------------------------------------------- wrapper

def capsule_conv_forward(x, w, gamma, beta, kernel_size, stride,
                         out_n_capsules, out_d_capsules,
                         num_iter=0, next_capsule_value=None):
    # num_iter is accepted but unused - this matches the PyTorch module's forward().
    del num_iter
    B, N, W_in, D_in = x.shape
    K, M, OUT_D = kernel_size, out_n_capsules, out_d_capsules
    A = int(np.sqrt(D_in))                       # sqrt_d
    assert A * A == D_in and OUT_D == A * A, "module's view() requires out_d == sqrt_d**2"
    Wo = (W_in - K) // stride + 1
    X = A
    NKX = N * K * X
    scale = 1.0 / (OUT_D ** 0.5)
    f32 = jnp.float32

    # ---- input expansion (unfold over the spatial dim) - layout glue
    idx = jnp.arange(Wo)[:, None] * stride + jnp.arange(K)[None, :]         # (Wo, K)
    u = x[:, :, idx, :]                                                     # (B,N,Wo,K,Din)
    inp6 = jnp.transpose(u, (0, 1, 3, 2, 4)).reshape(B, N, K, Wo, A, X)     # b n k w a x
    # single canonical kernel layout [b, a, w, (n k x)]
    inp_al = jnp.transpose(inp6, (0, 4, 3, 1, 2, 5)).reshape(B, A, Wo, NKX).astype(f32)

    # ---- weight layouts for the two matmul phases (tiny, shared across batch)
    wm2 = jnp.transpose(w, (4, 1, 0, 2, 3)).reshape(M, NKX, A).astype(f32)   # [m,(n k x),d]
    wm2t = jnp.transpose(w, (4, 3, 1, 0, 2)).reshape(M, A, NKX).astype(f32)  # [m,d,(n k x)]

    if next_capsule_value is None:
        use_routing = False
        nv = jnp.zeros((B, M, Wo, OUT_D), dtype=f32)        # placeholder, unread by kernel
    else:
        use_routing = True
        nv = next_capsule_value.reshape(B, M, Wo, OUT_D).astype(f32)

    apply_ln = (A != 1)   # mirrors `if not next_capsule_value.shape[-1] == 1`
    gamma2 = jnp.asarray(gamma, f32).reshape(1, OUT_D)
    beta2 = jnp.asarray(beta, f32).reshape(1, OUT_D)

    kernel = functools.partial(
        _capsule_conv_kernel, use_routing=use_routing, apply_ln=apply_ln,
        scale=scale, sqrt_d=A, eps=1e-5)

    out_ld = pl.pallas_call(
        kernel,
        out_shape=jax.ShapeDtypeStruct((B, Wo, M * OUT_D), f32),
        grid=(B,),
        in_specs=[
            pl.BlockSpec((1, A, Wo, NKX), lambda b: (b, 0, 0, 0)),
            pl.BlockSpec((M, NKX, A), lambda b: (0, 0, 0)),
            pl.BlockSpec((M, A, NKX), lambda b: (0, 0, 0)),
            pl.BlockSpec((1, M, Wo, OUT_D), lambda b: (b, 0, 0, 0)),
            pl.BlockSpec((1, OUT_D), lambda b: (0, 0)),
            pl.BlockSpec((1, OUT_D), lambda b: (0, 0)),
        ],
        out_specs=pl.BlockSpec((1, Wo, M * OUT_D), lambda b: (b, 0, 0)),
        compiler_params=pltpu.CompilerParams(dimension_semantics=("parallel",)),
    )(inp_al, wm2, wm2t, nv, gamma2, beta2)

    # restore the module's (B, M, Wo, OUT_D) layout (tiny XLA transpose)
    out = out_ld.reshape(B, Wo, M, OUT_D).transpose(0, 2, 1, 3)
    if not apply_ln:
        out = out.reshape(B, M, Wo, 1, 1)   # sqrt_d == 1 path: no view / no LayerNorm
    return out


# ----------------------------------------------------------------------------- pure-JAX reference

def reference_forward(x, w, gamma, beta, kernel_size, stride, out_n_capsules,
                      out_d_capsules, next_capsule_value=None):
    B, N, W_in, D_in = x.shape
    K, M, OUT_D = kernel_size, out_n_capsules, out_d_capsules
    A = int(np.sqrt(D_in))
    Wo = (W_in - K) // stride + 1
    idx = jnp.arange(Wo)[:, None] * stride + jnp.arange(K)[None, :]
    u = x[:, :, idx, :]
    inp6 = jnp.transpose(u, (0, 1, 3, 2, 4)).reshape(B, N, K, Wo, A, A)
    if next_capsule_value is None:
        qk = jax.nn.softmax(jnp.zeros((N, K, M), dtype=x.dtype), axis=2)
        nv = jnp.einsum('nkm,bnkwax,knxdm->bmwad', qk, inp6, w)
    else:
        nv5 = next_capsule_value.reshape(B, M, Wo, A, A)
        scale = 1.0 / (OUT_D ** 0.5)
        logits = jnp.einsum('bnkwax,knxdm,bmwad->bnkmw', inp6, w, nv5) * scale
        qk = jax.nn.softmax(logits, axis=3)
        qk = qk / (jnp.sum(qk, axis=4, keepdims=True) + 1e-10)
        nv = jnp.einsum('bnkmw,bnkwax,knxdm->bmwad', qk, inp6, w)
    if nv.shape[-1] != 1:
        nv = nv.reshape(B, M, Wo, OUT_D)
        mu = jnp.mean(nv, axis=-1, keepdims=True)
        var = jnp.mean((nv - mu) ** 2, axis=-1, keepdims=True)
        nv = (nv - mu) / jnp.sqrt(var + 1e-5) * gamma + beta
    return nv


# ----------------------------------------------------------------------------- demo

if __name__ == "__main__":
    # CapsuleConv(in_n_capsules=4, in_d_capsules=16, out_n_capsules=8,
    #             out_d_capsules=16, kernel_size=3, stride=1)
    B, N, W_in, D_in = 2, 4, 16, 16
    M, OUT_D, K, STRIDE = 8, 16, 3, 1
    A = int(np.sqrt(D_in))

    key = jax.random.PRNGKey(0)
    kx, kw = jax.random.split(key)
    x = jax.random.normal(kx, (B, N, W_in, D_in), dtype=jnp.float32)
    weight_init_const = float(np.sqrt(M / (A * N * K * K)))
    w = weight_init_const * jax.random.normal(kw, (K, N, A, A, M), dtype=jnp.float32)
    gamma = jnp.ones((OUT_D,), jnp.float32)    # LayerNorm default init
    beta = jnp.zeros((OUT_D,), jnp.float32)

    # routing iteration 1: next_capsule_value is None (uniform 1/M coefficients)
    out1 = capsule_conv_forward(x, w, gamma, beta, K, STRIDE, M, OUT_D,
                                num_iter=1, next_capsule_value=None)
    out1 = jax.block_until_ready(out1)

    # routing iteration 2: exercises the fused attention-routing path
    out2 = capsule_conv_forward(x, w, gamma, beta, K, STRIDE, M, OUT_D,
                                num_iter=1, next_capsule_value=out1)
    out2 = jax.block_until_ready(out2)

    ref1 = reference_forward(x, w, gamma, beta, K, STRIDE, M, OUT_D, None)
    ref2 = reference_forward(x, w, gamma, beta, K, STRIDE, M, OUT_D, out1)
    np.testing.assert_allclose(np.asarray(out1), np.asarray(ref1), rtol=2e-2, atol=2e-2)
    np.testing.assert_allclose(np.asarray(out2), np.asarray(ref2), rtol=2e-2, atol=2e-2)

    print("KERNEL_OK")
</pallas_src>

<mosaic_0001>
module attributes {stable_mosaic.version = 11 : i64} {
  func.func @_capsule_conv_kernel(%arg0: i32, %arg1: memref<1x4x14x48xf32, #tpu.memory_space<vmem>>, %arg2: memref<8x48x4xf32, #tpu.memory_space<vmem>>, %arg3: memref<8x4x48xf32, #tpu.memory_space<vmem>>, %arg4: memref<1x8x14x16xf32, #tpu.memory_space<vmem>>, %arg5: memref<1x16xf32, #tpu.memory_space<vmem>>, %arg6: memref<1x16xf32, #tpu.memory_space<vmem>>, %arg7: memref<1x14x128xf32, #tpu.memory_space<vmem>>) attributes {dimension_semantics = [#tpu.dimension_semantics<parallel>], iteration_bounds = array<i64: 2>, scalar_prefetch = 0 : i64, scratch_operands = 0 : i64, tpu.core_type = #tpu.core_type<tc>, window_params = [{transform_indices = @transform_0, window_bounds = array<i64: 1, 4, 14, 48>}, {pipeline_mode = #tpu.pipeline_mode<synchronous>, transform_indices = @transform_1, window_bounds = array<i64: 8, 48, 4>}, {pipeline_mode = #tpu.pipeline_mode<synchronous>, transform_indices = @transform_2, window_bounds = array<i64: 8, 4, 48>}, {transform_indices = @transform_3, window_bounds = array<i64: 1, 8, 14, 16>}, {pipeline_mode = #tpu.pipeline_mode<synchronous>, transform_indices = @transform_4, window_bounds = array<i64: 1, 16>}, {pipeline_mode = #tpu.pipeline_mode<synchronous>, transform_indices = @transform_5, window_bounds = array<i64: 1, 16>}, {transform_indices = @transform_6, window_bounds = array<i64: 1, 14, 128>}]} {
    %c0 = arith.constant 0 : index
    %c0_0 = arith.constant 0 : index
    %c0_1 = arith.constant 0 : index
    %0 = vector.load %arg2[%c0, %c0_0, %c0_1] : memref<8x48x4xf32, #tpu.memory_space<vmem>>, vector<8x48x4xf32>
    %cst = arith.constant 1.250000e-01 : f32
    %1 = vector.broadcast %cst : f32 to vector<8x14x48xf32>
    %c0_2 = arith.constant 0 : index
    %c0_3 = arith.constant 0 : index
    %c0_4 = arith.constant 0 : index
    %c0_5 = arith.constant 0 : index
    %2 = vector.load %arg1[%c0_2, %c0_3, %c0_4, %c0_5] : memref<1x4x14x48xf32, #tpu.memory_space<vmem>>, vector<1x1x14x48xf32>
    %3 = vector.shape_cast %2 : vector<1x1x14x48xf32> to vector<14x48xf32>
    %4 = vector.shape_cast %3 : vector<14x48xf32> to vector<1x14x48xf32>
    %5 = vector.broadcast %4 : vector<1x14x48xf32> to vector<8x14x48xf32>
    %6 = arith.mulf %5, %1 : vector<8x14x48xf32>
    %cst_6 = arith.constant dense<0.000000e+00> : vector<8x14x4xf32>
    %7 = tpu.matmul %6, %0, %cst_6 {dimension_numbers = #tpu.dot_dimension_numbers<[2], [1], [1], [2], [0, 0, 0, 1, 1, 2], [0], [0]>} : vector<8x14x48xf32>, vector<8x48x4xf32>, vector<8x14x4xf32> -> vector<8x14x4xf32>
    %c0_7 = arith.constant 0 : index
    %c1 = arith.constant 1 : index
    %c0_8 = arith.constant 0 : index
    %c0_9 = arith.constant 0 : index
    %8 = vector.load %arg1[%c0_7, %c1, %c0_8, %c0_9] : memref<1x4x14x48xf32, #tpu.memory_space<vmem>>, vector<1x1x14x48xf32>
    %9 = vector.shape_cast %8 : vector<1x1x14x48xf32> to vector<14x48xf32>
    %10 = vector.shape_cast %9 : vector<14x48xf32> to vector<1x14x48xf32>
    %11 = vector.broadcast %10 : vector<1x14x48xf32> to vector<8x14x48xf32>
    %12 = arith.mulf %11, %1 : vector<8x14x48xf32>
    %cst_10 = arith.constant dense<0.000000e+00> : vector<8x14x4xf32>
    %13 = tpu.matmul %12, %0, %cst_10 {dimension_numbers = #tpu.dot_dimension_numbers<[2], [1], [1], [2], [0, 0, 0, 1, 1, 2], [0], [0]>} : vector<8x14x48xf32>, vector<8x48x4xf32>, vector<8x14x4xf32> -> vector<8x14x4xf32>
    %c0_11 = arith.constant 0 : index
    %c2 = arith.constant 2 : index
    %c0_12 = arith.constant 0 : index
    %c0_13 = arith.constant 0 : index
    %14 = vector.load %arg1[%c0_11, %c2, %c0_12, %c0_13] : memref<1x4x14x48xf32, #tpu.memory_space<vmem>>, vector<1x1x14x48xf32>
    %15 = vector.shape_cast %14 : vector<1x1x14x48xf32> to vector<14x48xf32>
    %16 = vector.shape_cast %15 : vector<14x48xf32> to vector<1x14x48xf32>
    %17 = vector.broadcast %16 : vector<1x14x48xf32> to vector<8x14x48xf32>
    %18 = arith.mulf %17, %1 : vector<8x14x48xf32>
    %cst_14 = arith.constant dense<0.000000e+00> : vector<8x14x4xf32>
    %19 = tpu.matmul %18, %0, %cst_14 {dimension_numbers = #tpu.dot_dimension_numbers<[2], [1], [1], [2], [0, 0, 0, 1, 1, 2], [0], [0]>} : vector<8x14x48xf32>, vector<8x48x4xf32>, vector<8x14x4xf32> -> vector<8x14x4xf32>
    %c0_15 = arith.constant 0 : index
    %c3 = arith.constant 3 : index
    %c0_16 = arith.constant 0 : index
    %c0_17 = arith.constant 0 : index
    %20 = vector.load %arg1[%c0_15, %c3, %c0_16, %c0_17] : memref<1x4x14x48xf32, #tpu.memory_space<vmem>>, vector<1x1x14x48xf32>
    %21 = vector.shape_cast %20 : vector<1x1x14x48xf32> to vector<14x48xf32>
    %22 = vector.shape_cast %21 : vector<14x48xf32> to vector<1x14x48xf32>
    %23 = vector.broadcast %22 : vector<1x14x48xf32> to vector<8x14x48xf32>
    %24 = arith.mulf %23, %1 : vector<8x14x48xf32>
    %cst_18 = arith.constant dense<0.000000e+00> : vector<8x14x4xf32>
    %25 = tpu.matmul %24, %0, %cst_18 {dimension_numbers = #tpu.dot_dimension_numbers<[2], [1], [1], [2], [0, 0, 0, 1, 1, 2], [0], [0]>} : vector<8x14x48xf32>, vector<8x48x4xf32>, vector<8x14x4xf32> -> vector<8x14x4xf32>
    %c0_19 = arith.constant 0 : index
    %c0_20 = arith.constant 0 : index
    %26 = vector.load %arg5[%c0_19, %c0_20] : memref<1x16xf32, #tpu.memory_space<vmem>>, vector<1x16xf32>
    %c0_21 = arith.constant 0 : index
    %c0_22 = arith.constant 0 : index
    %27 = vector.load %arg6[%c0_21, %c0_22] : memref<1x16xf32, #tpu.memory_space<vmem>>, vector<1x16xf32>
    %28 = vector.extract_strided_slice %7 {offsets = [0, 0, 0], sizes = [1, 14, 4], strides = [1, 1, 1]} : vector<8x14x4xf32> to vector<1x14x4xf32>
    %29 = vector.shape_cast %28 : vector<1x14x4xf32> to vector<14x4xf32>
    %30 = vector.extract_strided_slice %13 {offsets = [0, 0, 0], sizes = [1, 14, 4], strides = [1, 1, 1]} : vector<8x14x4xf32> to vector<1x14x4xf32>
    %31 = vector.shape_cast %30 : vector<1x14x4xf32> to vector<14x4xf32>
    %32 = vector.extract_strided_slice %19 {offsets = [0, 0, 0], sizes = [1, 14, 4], strides = [1, 1, 1]} : vector<8x14x4xf32> to vector<1x14x4xf32>
    %33 = vector.shape_cast %32 : vector<1x14x4xf32> to vector<14x4xf32>
    %34 = vector.extract_strided_slice %25 {offsets = [0, 0, 0], sizes = [1, 14, 4], strides = [1, 1, 1]} : vector<8x14x4xf32> to vector<1x14x4xf32>
    %35 = vector.shape_cast %34 : vector<1x14x4xf32> to vector<14x4xf32>
    %36 = tpu.concatenate %29, %31, %33, %35 in 1 : vector<14x4xf32>, vector<14x4xf32>, vector<14x4xf32>, vector<14x4xf32> -> vector<14x16xf32>
    %cst_23 = arith.constant dense<0.000000e+00> : vector<14xf32>
    %37 = vector.multi_reduction <add>, %36, %cst_23 [1] : vector<14x16xf32> to vector<14xf32>
    %38 = vector.shape_cast %37 : vector<14xf32> to vector<14x1xf32>
    %cst_24 = arith.constant 1.600000e+01 : f32
    %39 = vector.broadcast %cst_24 : f32 to vector<14x1xf32>
    %40 = arith.divf %38, %39 : vector<14x1xf32>
    %41 = vector.broadcast %40 : vector<14x1xf32> to vector<14x16xf32>
    %42 = arith.subf %36, %41 : vector<14x16xf32>
    %43 = arith.mulf %42, %42 : vector<14x16xf32>
    %cst_25 = arith.constant dense<0.000000e+00> : vector<14xf32>
    %44 = vector.multi_reduction <add>, %43, %cst_25 [1] : vector<14x16xf32> to vector<14xf32>
    %45 = vector.shape_cast %44 : vector<14xf32> to vector<14x1xf32>
    %cst_26 = arith.constant 1.600000e+01 : f32
    %46 = vector.broadcast %cst_26 : f32 to vector<14x1xf32>
    %47 = arith.divf %45, %46 : vector<14x1xf32>
    %48 = vector.broadcast %40 : vector<14x1xf32> to vector<14x16xf32>
    %49 = arith.subf %36, %48 : vector<14x16xf32>
    %cst_27 = arith.constant 9.99999974E-6 : f32
    %50 = vector.broadcast %cst_27 : f32 to vector<14x1xf32>
    %51 = arith.addf %47, %50 : vector<14x1xf32>
    %52 = math.rsqrt %51 : vector<14x1xf32>
    %53 = vector.broadcast %52 : vector<14x1xf32> to vector<14x16xf32>
    %54 = arith.mulf %49, %53 : vector<14x16xf32>
    %55 = vector.broadcast %26 : vector<1x16xf32> to vector<14x16xf32>
    %56 = arith.mulf %54, %55 : vector<14x16xf32>
    %57 = vector.broadcast %27 : vector<1x16xf32> to vector<14x16xf32>
    %58 = arith.addf %56, %57 : vector<14x16xf32>
    %59 = vector.extract_strided_slice %7 {offsets = [1, 0, 0], sizes = [1, 14, 4], strides = [1, 1, 1]} : vector<8x14x4xf32> to vector<1x14x4xf32>
    %60 = vector.shape_cast %59 : vector<1x14x4xf32> to vector<14x4xf32>
    %61 = vector.extract_strided_slice %13 {offsets = [1, 0, 0], sizes = [1, 14, 4], strides = [1, 1, 1]} : vector<8x14x4xf32> to vector<1x14x4xf32>
    %62 = vector.shape_cast %61 : vector<1x14x4xf32> to vector<14x4xf32>
    %63 = vector.extract_strided_slice %19 {offsets = [1, 0, 0], sizes = [1, 14, 4], strides = [1, 1, 1]} : vector<8x14x4xf32> to vector<1x14x4xf32>
    %64 = vector.shape_cast %63 : vector<1x14x4xf32> to vector<14x4xf32>
    %65 = vector.extract_strided_slice %25 {offsets = [1, 0, 0], sizes = [1, 14, 4], strides = [1, 1, 1]} : vector<8x14x4xf32> to vector<1x14x4xf32>
    %66 = vector.shape_cast %65 : vector<1x14x4xf32> to vector<14x4xf32>
    %67 = tpu.concatenate %60, %62, %64, %66 in 1 : vector<14x4xf32>, vector<14x4xf32>, vector<14x4xf32>, vector<14x4xf32> -> vector<14x16xf32>
    %cst_28 = arith.constant dense<0.000000e+00> : vector<14xf32>
    %68 = vector.multi_reduction <add>, %67, %cst_28 [1] : vector<14x16xf32> to vector<14xf32>
    %69 = vector.shape_cast %68 : vector<14xf32> to vector<14x1xf32>
    %cst_29 = arith.constant 1.600000e+01 : f32
    %70 = vector.broadcast %cst_29 : f32 to vector<14x1xf32>
    %71 = arith.divf %69, %70 : vector<14x1xf32>
    %72 = vector.broadcast %71 : vector<14x1xf32> to vector<14x16xf32>
    %73 = arith.subf %67, %72 : vector<14x16xf32>
    %74 = arith.mulf %73, %73 : vector<14x16xf32>
    %cst_30 = arith.constant dense<0.000000e+00> : vector<14xf32>
    %75 = vector.multi_reduction <add>, %74, %cst_30 [1] : vector<14x16xf32> to vector<14xf32>
    %76 = vector.shape_cast %75 : vector<14xf32> to vector<14x1xf32>
    %cst_31 = arith.constant 1.600000e+01 : f32
    %77 = vector.broadcast %cst_31 : f32 to vector<14x1xf32>
    %78 = arith.divf %76, %77 : vector<14x1xf32>
    %79 = vector.broadcast %71 : vector<14x1xf32> to vector<14x16xf32>
    %80 = arith.subf %67, %79 : vector<14x16xf32>
    %cst_32 = arith.constant 9.99999974E-6 : f32
    %81 = vector.broadcast %cst_32 : f32 to vector<14x1xf32>
    %82 = arith.addf %78, %81 : vector<14x1xf32>
    %83 = math.rsqrt %82 : vector<14x1xf32>
    %84 = vector.broadcast %83 : vector<14x1xf32> to vector<14x16xf32>
    %85 = arith.mulf %80, %84 : vector<14x16xf32>
    %86 = vector.broadcast %26 : vector<1x16xf32> to vector<14x16xf32>
    %87 = arith.mulf %85, %86 : vector<14x16xf32>
    %88 = vector.broadcast %27 : vector<1x16xf32> to vector<14x16xf32>
    %89 = arith.addf %87, %88 : vector<14x16xf32>
    %90 = vector.extract_strided_slice %7 {offsets = [2, 0, 0], sizes = [1, 14, 4], strides = [1, 1, 1]} : vector<8x14x4xf32> to vector<1x14x4xf32>
    %91 = vector.shape_cast %90 : vector<1x14x4xf32> to vector<14x4xf32>
    %92 = vector.extract_strided_slice %13 {offsets = [2, 0, 0], sizes = [1, 14, 4], strides = [1, 1, 1]} : vector<8x14x4xf32> to vector<1x14x4xf32>
    %93 = vector.shape_cast %92 : vector<1x14x4xf32> to vector<14x4xf32>
    %94 = vector.extract_strided_slice %19 {offsets = [2, 0, 0], sizes = [1, 14, 4], strides = [1, 1, 1]} : vector<8x14x4xf32> to vector<1x14x4xf32>
    %95 = vector.shape_cast %94 : vector<1x14x4xf32> to vector<14x4xf32>
    %96 = vector.extract_strided_slice %25 {offsets = [2, 0, 0], sizes = [1, 14, 4], strides = [1, 1, 1]} : vector<8x14x4xf32> to vector<1x14x4xf32>
    %97 = vector.shape_cast %96 : vector<1x14x4xf32> to vector<14x4xf32>
    %98 = tpu.concatenate %91, %93, %95, %97 in 1 : vector<14x4xf32>, vector<14x4xf32>, vector<14x4xf32>, vector<14x4xf32> -> vector<14x16xf32>
    %cst_33 = arith.constant dense<0.000000e+00> : vector<14xf32>
    %99 = vector.multi_reduction <add>, %98, %cst_33 [1] : vector<14x16xf32> to vector<14xf32>
    %100 = vector.shape_cast %99 : vector<14xf32> to vector<14x1xf32>
    %cst_34 = arith.constant 1.600000e+01 : f32
    %101 = vector.broadcast %cst_34 : f32 to vector<14x1xf32>
    %102 = arith.divf %100, %101 : vector<14x1xf32>
    %103 = vector.broadcast %102 : vector<14x1xf32> to vector<14x16xf32>
    %104 = arith.subf %98, %103 : vector<14x16xf32>
    %105 = arith.mulf %104, %104 : vector<14x16xf32>
    %cst_35 = arith.constant dense<0.000000e+00> : vector<14xf32>
    %106 = vector.multi_reduction <add>, %105, %cst_35 [1] : vector<14x16xf32> to vector<14xf32>
    %107 = vector.shape_cast %106 : vector<14xf32> to vector<14x1xf32>
    %cst_36 = arith.constant 1.600000e+01 : f32
    %108 = vector.broadcast %cst_36 : f32 to vector<14x1xf32>
    %109 = arith.divf %107, %108 : vector<14x1xf32>
    %110 = vector.broadcast %102 : vector<14x1xf32> to vector<14x16xf32>
    %111 = arith.subf %98, %110 : vector<14x16xf32>
    %cst_37 = arith.constant 9.99999974E-6 : f32
    %112 = vector.broadcast %cst_37 : f32 to vector<14x1xf32>
    %113 = arith.addf %109, %112 : vector<14x1xf32>
    %114 = math.rsqrt %113 : vector<14x1xf32>
    %115 = vector.broadcast %114 : vector<14x1xf32> to vector<14x16xf32>
    %116 = arith.mulf %111, %115 : vector<14x16xf32>
    %117 = vector.broadcast %26 : vector<1x16xf32> to vector<14x16xf32>
    %118 = arith.mulf %116, %117 : vector<14x16xf32>
    %119 = vector.broadcast %27 : vector<1x16xf32> to vector<14x16xf32>
    %120 = arith.addf %118, %119 : vector<14x16xf32>
    %121 = vector.extract_strided_slice %7 {offsets = [3, 0, 0], sizes = [1, 14, 4], strides = [1, 1, 1]} : vector<8x14x4xf32> to vector<1x14x4xf32>
    %122 = vector.shape_cast %121 : vector<1x14x4xf32> to vector<14x4xf32>
    %123 = vector.extract_strided_slice %13 {offsets = [3, 0, 0], sizes = [1, 14, 4], strides = [1, 1, 1]} : vector<8x14x4xf32> to vector<1x14x4xf32>
    %124 = vector.shape_cast %123 : vector<1x14x4xf32> to vector<14x4xf32>
    %125 = vector.extract_strided_slice %19 {offsets = [3, 0, 0], sizes = [1, 14, 4], strides = [1, 1, 1]} : vector<8x14x4xf32> to vector<1x14x4xf32>
    %126 = vector.shape_cast %125 : vector<1x14x4xf32> to vector<14x4xf32>
    %127 = vector.extract_strided_slice %25 {offsets = [3, 0, 0], sizes = [1, 14, 4], strides = [1, 1, 1]} : vector<8x14x4xf32> to vector<1x14x4xf32>
    %128 = vector.shape_cast %127 : vector<1x14x4xf32> to vector<14x4xf32>
    %129 = tpu.concatenate %122, %124, %126, %128 in 1 : vector<14x4xf32>, vector<14x4xf32>, vector<14x4xf32>, vector<14x4xf32> -> vector<14x16xf32>
    %cst_38 = arith.constant dense<0.000000e+00> : vector<14xf32>
    %130 = vector.multi_reduction <add>, %129, %cst_38 [1] : vector<14x16xf32> to vector<14xf32>
    %131 = vector.shape_cast %130 : vector<14xf32> to vector<14x1xf32>
    %cst_39 = arith.constant 1.600000e+01 : f32
    %132 = vector.broadcast %cst_39 : f32 to vector<14x1xf32>
    %133 = arith.divf %131, %132 : vector<14x1xf32>
    %134 = vector.broadcast %133 : vector<14x1xf32> to vector<14x16xf32>
    %135 = arith.subf %129, %134 : vector<14x16xf32>
    %136 = arith.mulf %135, %135 : vector<14x16xf32>
    %cst_40 = arith.constant dense<0.000000e+00> : vector<14xf32>
    %137 = vector.multi_reduction <add>, %136, %cst_40 [1] : vector<14x16xf32> to vector<14xf32>
    %138 = vector.shape_cast %137 : vector<14xf32> to vector<14x1xf32>
    %cst_41 = arith.constant 1.600000e+01 : f32
    %139 = vector.broadcast %cst_41 : f32 to vector<14x1xf32>
    %140 = arith.divf %138, %139 : vector<14x1xf32>
    %141 = vector.broadcast %133 : vector<14x1xf32> to vector<14x16xf32>
    %142 = arith.subf %129, %141 : vector<14x16xf32>
    %cst_42 = arith.constant 9.99999974E-6 : f32
    %143 = vector.broadcast %cst_42 : f32 to vector<14x1xf32>
    %144 = arith.addf %140, %143 : vector<14x1xf32>
    %145 = math.rsqrt %144 : vector<14x1xf32>
    %146 = vector.broadcast %145 : vector<14x1xf32> to vector<14x16xf32>
    %147 = arith.mulf %142, %146 : vector<14x16xf32>
    %148 = vector.broadcast %26 : vector<1x16xf32> to vector<14x16xf32>
    %149 = arith.mulf %147, %148 : vector<14x16xf32>
    %150 = vector.broadcast %27 : vector<1x16xf32> to vector<14x16xf32>
    %151 = arith.addf %149, %150 : vector<14x16xf32>
    %152 = vector.extract_strided_slice %7 {offsets = [4, 0, 0], sizes = [1, 14, 4], strides = [1, 1, 1]} : vector<8x14x4xf32> to vector<1x14x4xf32>
    %153 = vector.shape_cast %152 : vector<1x14x4xf32> to vector<14x4xf32>
    %154 = vector.extract_strided_slice %13 {offsets = [4, 0, 0], sizes = [1, 14, 4], strides = [1, 1, 1]} : vector<8x14x4xf32> to vector<1x14x4xf32>
    %155 = vector.shape_cast %154 : vector<1x14x4xf32> to vector<14x4xf32>
    %156 = vector.extract_strided_slice %19 {offsets = [4, 0, 0], sizes = [1, 14, 4], strides = [1, 1, 1]} : vector<8x14x4xf32> to vector<1x14x4xf32>
    %157 = vector.shape_cast %156 : vector<1x14x4xf32> to vector<14x4xf32>
    %158 = vector.extract_strided_slice %25 {offsets = [4, 0, 0], sizes = [1, 14, 4], strides = [1, 1, 1]} : vector<8x14x4xf32> to vector<1x14x4xf32>
    %159 = vector.shape_cast %158 : vector<1x14x4xf32> to vector<14x4xf32>
    %160 = tpu.concatenate %153, %155, %157, %159 in 1 : vector<14x4xf32>, vector<14x4xf32>, vector<14x4xf32>, vector<14x4xf32> -> vector<14x16xf32>
    %cst_43 = arith.constant dense<0.000000e+00> : vector<14xf32>
    %161 = vector.multi_reduction <add>, %160, %cst_43 [1] : vector<14x16xf32> to vector<14xf32>
    %162 = vector.shape_cast %161 : vector<14xf32> to vector<14x1xf32>
    %cst_44 = arith.constant 1.600000e+01 : f32
    %163 = vector.broadcast %cst_44 : f32 to vector<14x1xf32>
    %164 = arith.divf %162, %163 : vector<14x1xf32>
    %165 = vector.broadcast %164 : vector<14x1xf32> to vector<14x16xf32>
    %166 = arith.subf %160, %165 : vector<14x16xf32>
    %167 = arith.mulf %166, %166 : vector<14x16xf32>
    %cst_45 = arith.constant dense<0.000000e+00> : vector<14xf32>
    %168 = vector.multi_reduction <add>, %167, %cst_45 [1] : vector<14x16xf32> to vector<14xf32>
    %169 = vector.shape_cast %168 : vector<14xf32> to vector<14x1xf32>
    %cst_46 = arith.constant 1.600000e+01 : f32
    %170 = vector.broadcast %cst_46 : f32 to vector<14x1xf32>
    %171 = arith.divf %169, %170 : vector<14x1xf32>
    %172 = vector.broadcast %164 : vector<14x1xf32> to vector<14x16xf32>
    %173 = arith.subf %160, %172 : vector<14x16xf32>
    %cst_47 = arith.constant 9.99999974E-6 : f32
    %174 = vector.broadcast %cst_47 : f32 to vector<14x1xf32>
    %175 = arith.addf %171, %174 : vector<14x1xf32>
    %176 = math.rsqrt %175 : vector<14x1xf32>
    %177 = vector.broadcast %176 : vector<14x1xf32> to vector<14x16xf32>
    %178 = arith.mulf %173, %177 : vector<14x16xf32>
    %179 = vector.broadcast %26 : vector<1x16xf32> to vector<14x16xf32>
    %180 = arith.mulf %178, %179 : vector<14x16xf32>
    %181 = vector.broadcast %27 : vector<1x16xf32> to vector<14x16xf32>
    %182 = arith.addf %180, %181 : vector<14x16xf32>
    %183 = vector.extract_strided_slice %7 {offsets = [5, 0, 0], sizes = [1, 14, 4], strides = [1, 1, 1]} : vector<8x14x4xf32> to vector<1x14x4xf32>
    %184 = vector.shape_cast %183 : vector<1x14x4xf32> to vector<14x4xf32>
    %185 = vector.extract_strided_slice %13 {offsets = [5, 0, 0], sizes = [1, 14, 4], strides = [1, 1, 1]} : vector<8x14x4xf32> to vector<1x14x4xf32>
    %186 = vector.shape_cast %185 : vector<1x14x4xf32> to vector<14x4xf32>
    %187 = vector.extract_strided_slice %19 {offsets = [5, 0, 0], sizes = [1, 14, 4], strides = [1, 1, 1]} : vector<8x14x4xf32> to vector<1x14x4xf32>
    %188 = vector.shape_cast %187 : vector<1x14x4xf32> to vector<14x4xf32>
    %189 = vector.extract_strided_slice %25 {offsets = [5, 0, 0], sizes = [1, 14, 4], strides = [1, 1, 1]} : vector<8x14x4xf32> to vector<1x14x4xf32>
    %190 = vector.shape_cast %189 : vector<1x14x4xf32> to vector<14x4xf32>
    %191 = tpu.concatenate %184, %186, %188, %190 in 1 : vector<14x4xf32>, vector<14x4xf32>, vector<14x4xf32>, vector<14x4xf32> -> vector<14x16xf32>
    %cst_48 = arith.constant dense<0.000000e+00> : vector<14xf32>
    %192 = vector.multi_reduction <add>, %191, %cst_48 [1] : vector<14x16xf32> to vector<14xf32>
    %193 = vector.shape_cast %192 : vector<14xf32> to vector<14x1xf32>
    %cst_49 = arith.constant 1.600000e+01 : f32
    %194 = vector.broadcast %cst_49 : f32 to vector<14x1xf32>
    %195 = arith.divf %193, %194 : vector<14x1xf32>
    %196 = vector.broadcast %195 : vector<14x1xf32> to vector<14x16xf32>
    %197 = arith.subf %191, %196 : vector<14x16xf32>
    %198 = arith.mulf %197, %197 : vector<14x16xf32>
    %cst_50 = arith.constant dense<0.000000e+00> : vector<14xf32>
    %199 = vector.multi_reduction <add>, %198, %cst_50 [1] : vector<14x16xf32> to vector<14xf32>
    %200 = vector.shape_cast %199 : vector<14xf32> to vector<14x1xf32>
    %cst_51 = arith.constant 1.600000e+01 : f32
    %201 = vector.broadcast %cst_51 : f32 to vector<14x1xf32>
    %202 = arith.divf %200, %201 : vector<14x1xf32>
    %203 = vector.broadcast %195 : vector<14x1xf32> to vector<14x16xf32>
    %204 = arith.subf %191, %203 : vector<14x16xf32>
    %cst_52 = arith.constant 9.99999974E-6 : f32
    %205 = vector.broadcast %cst_52 : f32 to vector<14x1xf32>
    %206 = arith.addf %202, %205 : vector<14x1xf32>
    %207 = math.rsqrt %206 : vector<14x1xf32>
    %208 = vector.broadcast %207 : vector<14x1xf32> to vector<14x16xf32>
    %209 = arith.mulf %204, %208 : vector<14x16xf32>
    %210 = vector.broadcast %26 : vector<1x16xf32> to vector<14x16xf32>
    %211 = arith.mulf %209, %210 : vector<14x16xf32>
    %212 = vector.broadcast %27 : vector<1x16xf32> to vector<14x16xf32>
    %213 = arith.addf %211, %212 : vector<14x16xf32>
    %214 = vector.extract_strided_slice %7 {offsets = [6, 0, 0], sizes = [1, 14, 4], strides = [1, 1, 1]} : vector<8x14x4xf32> to vector<1x14x4xf32>
    %215 = vector.shape_cast %214 : vector<1x14x4xf32> to vector<14x4xf32>
    %216 = vector.extract_strided_slice %13 {offsets = [6, 0, 0], sizes = [1, 14, 4], strides = [1, 1, 1]} : vector<8x14x4xf32> to vector<1x14x4xf32>
    %217 = vector.shape_cast %216 : vector<1x14x4xf32> to vector<14x4xf32>
    %218 = vector.extract_strided_slice %19 {offsets = [6, 0, 0], sizes = [1, 14, 4], strides = [1, 1, 1]} : vector<8x14x4xf32> to vector<1x14x4xf32>
    %219 = vector.shape_cast %218 : vector<1x14x4xf32> to vector<14x4xf32>
    %220 = vector.extract_strided_slice %25 {offsets = [6, 0, 0], sizes = [1, 14, 4], strides = [1, 1, 1]} : vector<8x14x4xf32> to vector<1x14x4xf32>
    %221 = vector.shape_cast %220 : vector<1x14x4xf32> to vector<14x4xf32>
    %222 = tpu.concatenate %215, %217, %219, %221 in 1 : vector<14x4xf32>, vector<14x4xf32>, vector<14x4xf32>, vector<14x4xf32> -> vector<14x16xf32>
    %cst_53 = arith.constant dense<0.000000e+00> : vector<14xf32>
    %223 = vector.multi_reduction <add>, %222, %cst_53 [1] : vector<14x16xf32> to vector<14xf32>
    %224 = vector.shape_cast %223 : vector<14xf32> to vector<14x1xf32>
    %cst_54 = arith.constant 1.600000e+01 : f32
    %225 = vector.broadcast %cst_54 : f32 to vector<14x1xf32>
    %226 = arith.divf %224, %225 : vector<14x1xf32>
    %227 = vector.broadcast %226 : vector<14x1xf32> to vector<14x16xf32>
    %228 = arith.subf %222, %227 : vector<14x16xf32>
    %229 = arith.mulf %228, %228 : vector<14x16xf32>
    %cst_55 = arith.constant dense<0.000000e+00> : vector<14xf32>
    %230 = vector.multi_reduction <add>, %229, %cst_55 [1] : vector<14x16xf32> to vector<14xf32>
    %231 = vector.shape_cast %230 : vector<14xf32> to vector<14x1xf32>
    %cst_56 = arith.constant 1.600000e+01 : f32
    %232 = vector.broadcast %cst_56 : f32 to vector<14x1xf32>
    %233 = arith.divf %231, %232 : vector<14x1xf32>
    %234 = vector.broadcast %226 : vector<14x1xf32> to vector<14x16xf32>
    %235 = arith.subf %222, %234 : vector<14x16xf32>
    %cst_57 = arith.constant 9.99999974E-6 : f32
    %236 = vector.broadcast %cst_57 : f32 to vector<14x1xf32>
    %237 = arith.addf %233, %236 : vector<14x1xf32>
    %238 = math.rsqrt %237 : vector<14x1xf32>
    %239 = vector.broadcast %238 : vector<14x1xf32> to vector<14x16xf32>
    %240 = arith.mulf %235, %239 : vector<14x16xf32>
    %241 = vector.broadcast %26 : vector<1x16xf32> to vector<14x16xf32>
    %242 = arith.mulf %240, %241 : vector<14x16xf32>
    %243 = vector.broadcast %27 : vector<1x16xf32> to vector<14x16xf32>
    %244 = arith.addf %242, %243 : vector<14x16xf32>
    %245 = vector.extract_strided_slice %7 {offsets = [7, 0, 0], sizes = [1, 14, 4], strides = [1, 1, 1]} : vector<8x14x4xf32> to vector<1x14x4xf32>
    %246 = vector.shape_cast %245 : vector<1x14x4xf32> to vector<14x4xf32>
    %247 = vector.extract_strided_slice %13 {offsets = [7, 0, 0], sizes = [1, 14, 4], strides = [1, 1, 1]} : vector<8x14x4xf32> to vector<1x14x4xf32>
    %248 = vector.shape_cast %247 : vector<1x14x4xf32> to vector<14x4xf32>
    %249 = vector.extract_strided_slice %19 {offsets = [7, 0, 0], sizes = [1, 14, 4], strides = [1, 1, 1]} : vector<8x14x4xf32> to vector<1x14x4xf32>
    %250 = vector.shape_cast %249 : vector<1x14x4xf32> to vector<14x4xf32>
    %251 = vector.extract_strided_slice %25 {offsets = [7, 0, 0], sizes = [1, 14, 4], strides = [1, 1, 1]} : vector<8x14x4xf32> to vector<1x14x4xf32>
    %252 = vector.shape_cast %251 : vector<1x14x4xf32> to vector<14x4xf32>
    %253 = tpu.concatenate %246, %248, %250, %252 in 1 : vector<14x4xf32>, vector<14x4xf32>, vector<14x4xf32>, vector<14x4xf32> -> vector<14x16xf32>
    %cst_58 = arith.constant dense<0.000000e+00> : vector<14xf32>
    %254 = vector.multi_reduction <add>, %253, %cst_58 [1] : vector<14x16xf32> to vector<14xf32>
    %255 = vector.shape_cast %254 : vector<14xf32> to vector<14x1xf32>
    %cst_59 = arith.constant 1.600000e+01 : f32
    %256 = vector.broadcast %cst_59 : f32 to vector<14x1xf32>
    %257 = arith.divf %255, %256 : vector<14x1xf32>
    %258 = vector.broadcast %257 : vector<14x1xf32> to vector<14x16xf32>
    %259 = arith.subf %253, %258 : vector<14x16xf32>
    %260 = arith.mulf %259, %259 : vector<14x16xf32>
    %cst_60 = arith.constant dense<0.000000e+00> : vector<14xf32>
    %261 = vector.multi_reduction <add>, %260, %cst_60 [1] : vector<14x16xf32> to vector<14xf32>
    %262 = vector.shape_cast %261 : vector<14xf32> to vector<14x1xf32>
    %cst_61 = arith.constant 1.600000e+01 : f32
    %263 = vector.broadcast %cst_61 : f32 to vector<14x1xf32>
    %264 = arith.divf %262, %263 : vector<14x1xf32>
    %265 = vector.broadcast %257 : vector<14x1xf32> to vector<14x16xf32>
    %266 = arith.subf %253, %265 : vector<14x16xf32>
    %cst_62 = arith.constant 9.99999974E-6 : f32
    %267 = vector.broadcast %cst_62 : f32 to vector<14x1xf32>
    %268 = arith.addf %264, %267 : vector<14x1xf32>
    %269 = math.rsqrt %268 : vector<14x1xf32>
    %270 = vector.broadcast %269 : vector<14x1xf32> to vector<14x16xf32>
    %271 = arith.mulf %266, %270 : vector<14x16xf32>
    %272 = vector.broadcast %26 : vector<1x16xf32> to vector<14x16xf32>
    %273 = arith.mulf %271, %272 : vector<14x16xf32>
    %274 = vector.broadcast %27 : vector<1x16xf32> to vector<14x16xf32>
    %275 = arith.addf %273, %274 : vector<14x16xf32>
    %276 = tpu.concatenate %58, %89, %120, %151, %182, %213, %244, %275 in 1 : vector<14x16xf32>, vector<14x16xf32>, vector<14x16xf32>, vector<14x16xf32>, vector<14x16xf32>, vector<14x16xf32>, vector<14x16xf32>, vector<14x16xf32> -> vector<14x128xf32>
    %c0_63 = arith.constant 0 : index
    %c0_64 = arith.constant 0 : index
    %c0_65 = arith.constant 0 : index
    %277 = vector.load %arg7[%c0_63, %c0_64, %c0_65] : memref<1x14x128xf32, #tpu.memory_space<vmem>>, vector<1x14x128xf32>
    %278 = vector.shape_cast %277 : vector<1x14x128xf32> to vector<14x128xf32>
    %279 = vector.shape_cast %276 : vector<14x128xf32> to vector<1x14x128xf32>
    tpu.vector_store %arg7[%c0_63, %c0_64, %c0_65], %279 {strides = array<i32>} : memref<1x14x128xf32, #tpu.memory_space<vmem>>, vector<1x14x128xf32>,
    return
  }
  func.func @transform_0(%arg0: i32) -> (i32, i32, i32, i32) {
    %c0_i32 = arith.constant 0 : i32
    %c0_i32_0 = arith.constant 0 : i32
    %c0_i32_1 = arith.constant 0 : i32
    %c0_i32_2 = arith.constant 0 : i32
    return %arg0, %c0_i32, %c0_i32_0, %c0_i32_1 : i32, i32, i32, i32
  }
  func.func @transform_1(%arg0: i32) -> (i32, i32, i32) {
    %c0_i32 = arith.constant 0 : i32
    %c0_i32_0 = arith.constant 0 : i32
    %c0_i32_1 = arith.constant 0 : i32
    %c0_i32_2 = arith.constant 0 : i32
    return %c0_i32, %c0_i32_0, %c0_i32_1 : i32, i32, i32
  }
  func.func @transform_2(%arg0: i32) -> (i32, i32, i32) {
    %c0_i32 = arith.constant 0 : i32
    %c0_i32_0 = arith.constant 0 : i32
    %c0_i32_1 = arith.constant 0 : i32
    %c0_i32_2 = arith.constant 0 : i32
    return %c0_i32, %c0_i32_0, %c0_i32_1 : i32, i32, i32
  }
  func.func @transform_3(%arg0: i32) -> (i32, i32, i32, i32) {
    %c0_i32 = arith.constant 0 : i32
    %c0_i32_0 = arith.constant 0 : i32
    %c0_i32_1 = arith.constant 0 : i32
    %c0_i32_2 = arith.constant 0 : i32
    return %arg0, %c0_i32, %c0_i32_0, %c0_i32_1 : i32, i32, i32, i32
  }
  func.func @transform_4(%arg0: i32) -> (i32, i32) {
    %c0_i32 = arith.constant 0 : i32
    %c0_i32_0 = arith.constant 0 : i32
    %c0_i32_1 = arith.constant 0 : i32
    return %c0_i32, %c0_i32_0 : i32, i32
  }
  func.func @transform_5(%arg0: i32) -> (i32, i32) {
    %c0_i32 = arith.constant 0 : i32
    %c0_i32_0 = arith.constant 0 : i32
    %c0_i32_1 = arith.constant 0 : i32
    return %c0_i32, %c0_i32_0 : i32, i32
  }
  func.func @transform_6(%arg0: i32) -> (i32, i32, i32) {
    %c0_i32 = arith.constant 0 : i32
    %c0_i32_0 = arith.constant 0 : i32
    %c0_i32_1 = arith.constant 0 : i32
    return %arg0, %c0_i32, %c0_i32_0 : i32, i32, i32
  }
}

</mosaic_0001>

<llo_original>
// kernel: tpu_custom_call.1
$region0: #{tpu_custom_call.1}
  #allocation0 [shape = 'u32[]', space=smem, size = 0x4, offset = 0x4, fixed_abs, tag = 'smem constant byte address 0x4 - core index']
  #allocation1 [shape = 'u32[144,128]{1,0:T(1,128)}', space=vmem, size = 0x12000, scoped, tag = 'internal scratch']
  %s0 = inlined_call_operand.vmem [shape: f32[2,4,14,48], index: 0, kind: input, shape index: {}]
  %s1 = inlined_call_operand.vmem [shape: f32[8,48,4], index: 1, kind: input, shape index: {}]
  %s2 = inlined_call_operand.vmem [shape: f32[8,4,48], index: 2, kind: input, shape index: {}]
  %s3 = inlined_call_operand.vmem [shape: f32[2,8,14,16], index: 3, kind: input, shape index: {}]
  %s4 = inlined_call_operand.vmem [shape: f32[1,16], index: 4, kind: input, shape index: {}]
  %s5 = inlined_call_operand.vmem [shape: f32[1,16], index: 5, kind: input, shape index: {}]
  %s6 = inlined_call_operand.vmem [shape: f32[2,14,128], index: 6, kind: output, shape index: {}]
  %s7 = sld [smem:[#allocation0]]
  $region57: #{tpu_custom_call.1} parent=0
    _
  %s9 = ssub.s32 1, %s7
  %s10 = scalar_select 0, %s9, %s7
  loop: start=0, step=1, limit=4
  $region2: #{tpu_custom_call.1} parent=0 // loop_pre_header
    _
  $region3: #{tpu_custom_call.1} parent=0 // loop_header
    %s12 = sphi 0, %s16
    %p13 = scmp.ge.s32.totalorder %s12, 4
    %s22 = sphi 0, %s24
    %s25 = sphi 0, %s22
    %s26 = sphi 0, %s25
    %s42 = sphi 0, %s26
    %s46 = sphi 0, %s46
    %s48 = sphi 0, %s46
    %s49 = sphi 0, %s48
    %s63 = sphi 0, %s49
    %s67 = sphi 0, %s67
    %s69 = sphi 0, %s67
    %s70 = sphi 0, %s69
    %s84 = sphi 0, %s70
    %s90 = sphi 0, %s92
    %s93 = sphi 0, %s90
    %s94 = sphi 0, %s93
    %s110 = sphi 0, %s94
    %s114 = sphi 0, %s114
    %s116 = sphi 0, %s114
    %s117 = sphi 0, %s116
    %s131 = sphi 0, %s117
    %s135 = sphi 0, %s135
    %s137 = sphi 0, %s135
    %s138 = sphi 0, %s137
    %s152 = sphi 0, %s138
    %s158 = sphi 0, %s160
    %s161 = sphi 0, %s158
    %s162 = sphi 0, %s161
    %s178 = sphi 0, %s162
  $region4: #{tpu_custom_call.1} parent=0 // loop_header_branch
    %15 = sbr.rel (%p13) target = $region8
  $region5: #{tpu_custom_call.1} parent=0 // loop_body
    %s17 = ssub.s32 %s12, 1
    %s18 = ssub.s32 %s12, 2
    %s19 = sadd.s32 %s12, 1
    %s20 = ssub.s32 %s12, %s19
    %p21 = scmp.eq.s32.totalorder %s20, 0
    %s23 = sadd.s32 %s22, 1
    %s24 = scalar_select %p21, %s22, %s23
    %p27 = pneg %p21
    %p28 = scmp.eq.s32.totalorder %s12, 1
    %p29 = por %p27, %p28
    %p30 = scmp.ne.s32.totalorder %s22, %s25
    %p31 = scmp.eq.s32.totalorder %s12, 0
    %p32 = por %p30, %p31
    %p33 = scmp.ne.s32.totalorder %s22, %s25
    %p34 = scmp.eq.s32.totalorder %s17, 1
    %p35 = por %p33, %p34
    %p36 = scmp.ne.s32.totalorder %s25, %s26
    %p37 = scmp.eq.s32.totalorder %s17, 0
    %p38 = por %p36, %p37
    %p39 = scmp.ne.s32.totalorder %s25, %s26
    %p40 = scmp.eq.s32.totalorder %s18, 1
    %p41 = por %p39, %p40
    %p43 = scmp.ne.s32.totalorder %s26, %s42
    %p44 = scmp.eq.s32.totalorder %s18, 0
    %p45 = por %p43, %p44
    %s47 = sadd.s32 %s46, 1
    %p50 = scmp.eq.s32.totalorder %s12, 1
    %p51 = scmp.ne.s32.totalorder %s46, %s48
    %p52 = scmp.eq.s32.totalorder %s12, 0
    %p53 = por %p51, %p52
    %p54 = scmp.ne.s32.totalorder %s46, %s48
    %p55 = scmp.eq.s32.totalorder %s17, 1
    %p56 = por %p54, %p55
    %p57 = scmp.ne.s32.totalorder %s48, %s49
    %p58 = scmp.eq.s32.totalorder %s17, 0
    %p59 = por %p57, %p58
    %p60 = scmp.ne.s32.totalorder %s48, %s49
    %p61 = scmp.eq.s32.totalorder %s18, 1
    %p62 = por %p60, %p61
    %p64 = scmp.ne.s32.totalorder %s49, %s63
    %p65 = scmp.eq.s32.totalorder %s18, 0
    %p66 = por %p64, %p65
    %s68 = sadd.s32 %s67, 1
    %p71 = scmp.eq.s32.totalorder %s12, 1
    %p72 = scmp.ne.s32.totalorder %s67, %s69
    %p73 = scmp.eq.s32.totalorder %s12, 0
    %p74 = por %p72, %p73
    %p75 = scmp.ne.s32.totalorder %s67, %s69
    %p76 = scmp.eq.s32.totalorder %s17, 1
    %p77 = por %p75, %p76
    %p78 = scmp.ne.s32.totalorder %s69, %s70
    %p79 = scmp.eq.s32.totalorder %s17, 0
    %p80 = por %p78, %p79
    %p81 = scmp.ne.s32.totalorder %s69, %s70
    %p82 = scmp.eq.s32.totalorder %s18, 1
    %p83 = por %p81, %p82
    %p85 = scmp.ne.s32.totalorder %s70, %s84
    %p86 = scmp.eq.s32.totalorder %s18, 0
    %p87 = por %p85, %p86
    %s88 = ssub.s32 %s12, %s19
    %p89 = scmp.eq.s32.totalorder %s88, 0
    %s91 = sadd.s32 %s90, 1
    %s92 = scalar_select %p89, %s90, %s91
    %p95 = pneg %p89
    %p96 = scmp.eq.s32.totalorder %s12, 1
    %p97 = por %p95, %p96
    %p98 = scmp.ne.s32.totalorder %s90, %s93
    %p99 = scmp.eq.s32.totalorder %s12, 0
    %p100 = por %p98, %p99
    %p101 = scmp.ne.s32.totalorder %s90, %s93
    %p102 = scmp.eq.s32.totalorder %s17, 1
    %p103 = por %p101, %p102
    %p104 = scmp.ne.s32.totalorder %s93, %s94
    %p105 = scmp.eq.s32.totalorder %s17, 0
    %p106 = por %p104, %p105
    %p107 = scmp.ne.s32.totalorder %s93, %s94
    %p108 = scmp.eq.s32.totalorder %s18, 1
    %p109 = por %p107, %p108
    %p111 = scmp.ne.s32.totalorder %s94, %s110
    %p112 = scmp.eq.s32.totalorder %s18, 0
    %p113 = por %p111, %p112
    %s115 = sadd.s32 %s114, 1
    %p118 = scmp.eq.s32.totalorder %s12, 1
    %p119 = scmp.ne.s32.totalorder %s114, %s116
    %p120 = scmp.eq.s32.totalorder %s12, 0
    %p121 = por %p119, %p120
    %p122 = scmp.ne.s32.totalorder %s114, %s116
    %p123 = scmp.eq.s32.totalorder %s17, 1
    %p124 = por %p122, %p123
    %p125 = scmp.ne.s32.totalorder %s116, %s117
    %p126 = scmp.eq.s32.totalorder %s17, 0
    %p127 = por %p125, %p126
    %p128 = scmp.ne.s32.totalorder %s116, %s117
    %p129 = scmp.eq.s32.totalorder %s18, 1
    %p130 = por %p128, %p129
    %p132 = scmp.ne.s32.totalorder %s117, %s131
    %p133 = scmp.eq.s32.totalorder %s18, 0
    %p134 = por %p132, %p133
    %s136 = sadd.s32 %s135, 1
    %p139 = scmp.eq.s32.totalorder %s12, 1
    %p140 = scmp.ne.s32.totalorder %s135, %s137
    %p141 = scmp.eq.s32.totalorder %s12, 0
    %p142 = por %p140, %p141
    %p143 = scmp.ne.s32.totalorder %s135, %s137
    %p144 = scmp.eq.s32.totalorder %s17, 1
    %p145 = por %p143, %p144
    %p146 = scmp.ne.s32.totalorder %s137, %s138
    %p147 = scmp.eq.s32.totalorder %s17, 0
    %p148 = por %p146, %p147
    %p149 = scmp.ne.s32.totalorder %s137, %s138
    %p150 = scmp.eq.s32.totalorder %s18, 1
    %p151 = por %p149, %p150
    %p153 = scmp.ne.s32.totalorder %s138, %s152
    %p154 = scmp.eq.s32.totalorder %s18, 0
    %p155 = por %p153, %p154
    %s156 = ssub.s32 %s12, %s19
    %p157 = scmp.eq.s32.totalorder %s156, 0
    %s159 = sadd.s32 %s158, 1
    %s160 = scalar_select %p157, %s158, %s159
    %p163 = pneg %p157
    %p164 = scmp.eq.s32.totalorder %s12, 1
    %p165 = por %p163, %p164
    %p166 = scmp.ne.s32.totalorder %s158, %s161
    %p167 = scmp.eq.s32.totalorder %s12, 0
    %p168 = por %p166, %p167
    %p169 = scmp.ne.s32.totalorder %s158, %s161
    %p170 = scmp.eq.s32.totalorder %s17, 1
    %p171 = por %p169, %p170
    %p172 = scmp.ne.s32.totalorder %s161, %s162
    %p173 = scmp.eq.s32.totalorder %s17, 0
    %p174 = por %p172, %p173
    %p175 = scmp.ne.s32.totalorder %s161, %s162
    %p176 = scmp.eq.s32.totalorder %s18, 1
    %p177 = por %p175, %p176
    %p179 = scmp.ne.s32.totalorder %s162, %s178
    %p180 = scmp.eq.s32.totalorder %s18, 0
    %p181 = por %p179, %p180
    %p182 = scmp.le.s32.totalorder 1, %s12
    %p183 = scmp.lt.s32.totalorder %s12, 3
    %p184 = pnand %p182, %p183
    %p185 = pneg %p184
    // Predicated region
    $region9: #{tpu_custom_call.1} parent=5 // pred_check
      _
    $region10: #{tpu_custom_call.1} parent=5 // pred_check_branch
      %187 = sbr.rel (%p184) target = $region12
    $region11: #{tpu_custom_call.1} parent=5 // pred_region
      %s188 = ssub.s32 %s12, 1
      // Predicated region
      $region13: #{tpu_custom_call.1} parent=11 // pred_check
        %p189 = pneg %p59
      $region14: #{tpu_custom_call.1} parent=11 // pred_check_branch
        %191 = sbr.rel (%p189) target = $region16
      $region15: #{tpu_custom_call.1} parent=11 // pred_region
        _
      $region16: #{tpu_custom_call.1} parent=11 // pred_fallthru
        _
      // Predicated region
      $region17: #{tpu_custom_call.1} parent=11 // pred_check
        %p192 = pneg %p80
      $region18: #{tpu_custom_call.1} parent=11 // pred_check_branch
        %194 = sbr.rel (%p192) target = $region20
      $region19: #{tpu_custom_call.1} parent=11 // pred_region
        _
      $region20: #{tpu_custom_call.1} parent=11 // pred_fallthru
        _
      // Predicated region
      $region21: #{tpu_custom_call.1} parent=11 // pred_check
        %p195 = pneg %p127
      $region22: #{tpu_custom_call.1} parent=11 // pred_check_branch
        %197 = sbr.rel (%p195) target = $region24
      $region23: #{tpu_custom_call.1} parent=11 // pred_region
        _
      $region24: #{tpu_custom_call.1} parent=11 // pred_fallthru
        _
      // Predicated region
      $region25: #{tpu_custom_call.1} parent=11 // pred_check
        %p198 = pneg %p148
      $region26: #{tpu_custom_call.1} parent=11 // pred_check_branch
        %200 = sbr.rel (%p198) target = $region28
      $region27: #{tpu_custom_call.1} parent=11 // pred_region
        _
      $region28: #{tpu_custom_call.1} parent=11 // pred_fallthru
        _
    $region12: #{tpu_custom_call.1} parent=5 // pred_fallthru
      _
    %p201 = scmp.lt.s32.totalorder %s12, 2
    // Predicated region
    $region29: #{tpu_custom_call.1} parent=5 // pred_check
      %p202 = pneg %p201
    $region30: #{tpu_custom_call.1} parent=5 // pred_check_branch
      %204 = sbr.rel (%p202) target = $region32
    $region31: #{tpu_custom_call.1} parent=5 // pred_region
      // Predicated region
      $region33: #{tpu_custom_call.1} parent=31 // pred_check
        %p205 = pneg %p32
      $region34: #{tpu_custom_call.1} parent=31 // pred_check_branch
        %207 = sbr.rel (%p205) target = $region36
      $region35: #{tpu_custom_call.1} parent=31 // pred_region
        %p208 = scmp.lt.s32.totalorder %s12, 1
        %s209 = scalar_select %p208, %s12, 1
        %s210 = smul.addr %s209, 8
        %s211 = smul.addr %s210, 8
        %s212 = scalar_lea.vmem %s0, %s211
      $region36: #{tpu_custom_call.1} parent=31 // pred_fallthru
        _
      // Predicated region
      $region37: #{tpu_custom_call.1} parent=31 // pred_check
        %p213 = pneg %p100
      $region38: #{tpu_custom_call.1} parent=31 // pred_check_branch
        %215 = sbr.rel (%p213) target = $region40
      $region39: #{tpu_custom_call.1} parent=31 // pred_region
        %p216 = scmp.lt.s32.totalorder %s12, 1
        %s217 = scalar_select %p216, %s12, 1
        %s218 = smul.addr %s217, 16
        %s219 = smul.addr %s218, 8
        %s220 = scalar_lea.vmem %s3, %s219
      $region40: #{tpu_custom_call.1} parent=31 // pred_fallthru
        _
    $region32: #{tpu_custom_call.1} parent=5 // pred_fallthru
      _
    %p221 = scmp.le.s32.totalorder 1, %s12
    %p222 = scmp.lt.s32.totalorder %s12, 3
    %p223 = pnand %p221, %p222
    %p224 = pneg %p223
    // Predicated region
    $region41: #{tpu_custom_call.1} parent=5 // pred_check
      _
    $region42: #{tpu_custom_call.1} parent=5 // pred_check_branch
      %226 = sbr.rel (%p223) target = $region44
    $region43: #{tpu_custom_call.1} parent=5 // pred_region
      %s227 = ssub.s32 %s12, 1
      %p228 = scmp.lt.s32.totalorder %s17, 1
      %s229 = scalar_select %p228, %s17, 1
      %s230 = smul.addr %s229, 8
      %s231 = smul.addr %s230, 8
      %s232 = scalar_lea.vmem %s0, %s231
      %p233 = pneg %p38
      %p234 = pneg %p35
      %p235 = pneg %p59
      %p236 = pneg %p56
      %p237 = pneg %p80
      %p238 = pneg %p77
      %p239 = scmp.lt.s32.totalorder %s17, 1
      %s240 = scalar_select %p239, %s17, 1
      %s241 = smul.addr %s240, 16
      %s242 = smul.addr %s241, 8
      %s243 = scalar_lea.vmem %s3, %s242
      %p244 = pneg %p106
      %p245 = pneg %p103
      %p246 = pneg %p127
      %p247 = pneg %p124
      %p248 = pneg %p148
      %p249 = pneg %p145
      %p250 = pneg %p174
      %p251 = pneg %p171
      %p252 = scmp.lt.s32.totalorder %s17, 1
      %s253 = scalar_select %p252, %s17, 1
      %s254 = smul.addr %s253, 2
      %s255 = smul.addr %s254, 8
      %s256 = scalar_lea.vmem %s6, %s255
      %p257 = scmp.lt.s32.totalorder %s17, 1
      %s258 = scalar_select %p257, %s17, 1
      %s259 = smul.addr %s258, 8
      %s260 = smul.addr %s259, 8
      %s261 = scalar_lea.vmem %s0, %s260
      %p262 = scmp.lt.s32.totalorder %s17, 1
      %s263 = scalar_select %p262, %s17, 1
      %s264 = smul.addr %s263, 16
      %s265 = smul.addr %s264, 8
      %s266 = scalar_lea.vmem %s3, %s265
      %p267 = scmp.lt.s32.totalorder %s17, 1
      %s268 = scalar_select %p267, %s17, 1
      %s269 = smul.addr %s268, 2
      %s270 = smul.addr %s269, 8
      %s271 = scalar_lea.vmem %s6, %s270
      %v272 = vld [vmem:[%s1] sm:$0xff]
      %v273 = vld [vmem:[%s1 + $0x8] sm:$0xff]
      %v274 = vld [vmem:[%s1 + $0x10] sm:$0xff]
      %v275 = vld [vmem:[%s1 + $0x18] sm:$0xff]
      %v276 = vld [vmem:[%s1 + $0x20] sm:$0xff]
      %v277 = vld [vmem:[%s1 + $0x28] sm:$0xff]
      %v278 = vld [vmem:[%s1 + $0x30] sm:$0xff]
      %v279 = vld [vmem:[%s1 + $0x38] sm:$0xff]
      %v280 = vld [vmem:[%s1 + $0x40] sm:$0xff]
      %v281 = vld [vmem:[%s1 + $0x48] sm:$0xff]
      %v282 = vld [vmem:[%s1 + $0x50] sm:$0xff]
      %v283 = vld [vmem:[%s1 + $0x58] sm:$0xff]
      %v284 = vld [vmem:[%s1 + $0x60] sm:$0xff]
      %v285 = vld [vmem:[%s1 + $0x68] sm:$0xff]
      %v286 = vld [vmem:[%s1 + $0x70] sm:$0xff]
      %v287 = vld [vmem:[%s1 + $0x78] sm:$0xff]
      %v288 = vld [vmem:[%s1 + $0x80] sm:$0xff]
      %v289 = vld [vmem:[%s1 + $0x88] sm:$0xff]
      %v290 = vld [vmem:[%s1 + $0x90] sm:$0xff]
      %v291 = vld [vmem:[%s1 + $0x98] sm:$0xff]
      %v292 = vld [vmem:[%s1 + $0xa0] sm:$0xff]
      %v293 = vld [vmem:[%s1 + $0xa8] sm:$0xff]
      %v294 = vld [vmem:[%s1 + $0xb0] sm:$0xff]
      %v295 = vld [vmem:[%s1 + $0xb8] sm:$0xff]
      %v296 = vld [vmem:[%s1 + $0xc0] sm:$0xff]
      %v297 = vld [vmem:[%s1 + $0xc8] sm:$0xff]
      %v298 = vld [vmem:[%s1 + $0xd0] sm:$0xff]
      %v299 = vld [vmem:[%s1 + $0xd8] sm:$0xff]
      %v300 = vld [vmem:[%s1 + $0xe0] sm:$0xff]
      %v301 = vld [vmem:[%s1 + $0xe8] sm:$0xff]
      %v302 = vld [vmem:[%s1 + $0xf0] sm:$0xff]
      %v303 = vld [vmem:[%s1 + $0xf8] sm:$0xff]
      %v304 = vld [vmem:[%s1 + $0x100] sm:$0xff]
      %v305 = vld [vmem:[%s1 + $0x108] sm:$0xff]
      %v306 = vld [vmem:[%s1 + $0x110] sm:$0xff]
      %v307 = vld [vmem:[%s1 + $0x118] sm:$0xff]
      %v308 = vld [vmem:[%s1 + $0x120] sm:$0xff]
      %v309 = vld [vmem:[%s1 + $0x128] sm:$0xff]
      %v310 = vld [vmem:[%s1 + $0x130] sm:$0xff]
      %v311 = vld [vmem:[%s1 + $0x138] sm:$0xff]
      %v312 = vld [vmem:[%s1 + $0x140] sm:$0xff]
      %v313 = vld [vmem:[%s1 + $0x148] sm:$0xff]
      %v314 = vld [vmem:[%s1 + $0x150] sm:$0xff]
      %v315 = vld [vmem:[%s1 + $0x158] sm:$0xff]
      %v316 = vld [vmem:[%s1 + $0x160] sm:$0xff]
      %v317 = vld [vmem:[%s1 + $0x168] sm:$0xff]
      %v318 = vld [vmem:[%s1 + $0x170] sm:$0xff]
      %v319 = vld [vmem:[%s1 + $0x178] sm:$0xff]
      %v320 = vld [vmem:[%s261] sm:$0xff]
      %v321 = vld [vmem:[%s261 + $0x8] sm:$0x3f]
      %v322 = vmul.f32 %v320, 0.125
      %v323 = vmul.f32 %v321, 0.125
      %vm324 = vcmask 392192
      %v326 = vsel %vm324, %v322, 0
      %v329 = vsel %vm324, %v323, 0
      %331 = vmatprep.subr.mxu0 0.0
      %332 = vmatpush1.msra.mxu0 %v272
      %333 = vmatprep.subr.mxu0 0.0
      %334 = vmatpush1.msra.mxu0 %v273
      %335 = vmatprep.subr.mxu0 0.0
      %336 = vmatpush1.msra.mxu0 %v274
      %337 = vmatprep.subr.mxu0 0.0
      %338 = vmatpush1.msra.mxu0 %v275
      %339 = vmatprep.subr.mxu0 0.0
      %340 = vmatpush1.msra.mxu0 %v276
      %341 = vmatprep.subr.mxu0 0.0
      %342 = vmatpush1.msra.mxu0 %v277
      %343 = vmatprep.subr.mxu0 0.0
      %344 = vmatpush1.msra.mxu0 0.0
      %345 = vmatprep.subr.mxu0 0.0
      %346 = vmatpush1.msra.mxu0 0.0
      %347 = vmatprep.subr.mxu0 0.0
      %348 = vmatpush1.msra.mxu0 0.0
      %349 = vmatprep.subr.mxu0 0.0
      %350 = vmatpush1.msra.mxu0 0.0
      %351 = vmatprep.subr.mxu0 0.0
      %352 = vmatpush1.msra.mxu0 0.0
      %353 = vmatprep.subr.mxu0 0.0
      %354 = vmatpush1.msra.mxu0 0.0
      %355 = vmatprep.subr.mxu0 0.0
      %356 = vmatpush1.msra.mxu0 0.0
      %357 = vmatprep.subr.mxu0 0.0
      %358 = vmatpush1.msra.mxu0 0.0
      %359 = vmatprep.subr.mxu0 0.0
      %360 = vmatpush1.msra.mxu0 0.0
      %361 = vmatprep.subr.mxu0 0.0
      %362 = vmatpush1.msra.mxu0 0.0
      %363 = vmatprep.subr.mxu0 0.0
      %364 = vmatpush1.msra.mxu0 0.0
      %365 = vmatprep.subr.mxu0 0.0
      %366 = vmatpush1.msra.mxu0 0.0
      %367 = vmatprep.subr.mxu0 0.0
      %368 = vmatpush1.msra.mxu0 0.0
      %369 = vmatprep.subr.mxu0 0.0
      %370 = vmatpush1.msra.mxu0 0.0
      %371 = vmatprep.subr.mxu0 0.0
      %372 = vmatpush1.msra.mxu0 0.0
      %373 = vmatprep.subr.mxu0 0.0
      %374 = vmatpush1.msra.mxu0 0.0
      %375 = vmatprep.subr.mxu0 0.0
      %376 = vmatpush1.msra.mxu0 0.0
      %377 = vmatprep.subr.mxu0 0.0
      %378 = vmatpush1.msra.mxu0 0.0
      %379 = vmatprep.subr.mxu0 0.0
      %380 = vmatpush1.msra.mxu0 0.0
      %381 = vmatprep.subr.mxu0 0.0
      %382 = vmatpush1.msra.mxu0 0.0
      %383 = vmatprep.subr.mxu0 0.0
      %384 = vmatpush1.msra.mxu0 0.0
      %385 = vmatprep.subr.mxu0 0.0
      %386 = vmatpush1.msra.mxu0 0.0
      %387 = vmatprep.subr.mxu0 0.0
      %388 = vmatpush1.msra.mxu0 0.0
      %389 = vmatprep.subr.mxu0 0.0
      %390 = vmatpush1.msra.mxu0 0.0
      %391 = vmatprep.subr.mxu0 0.0
      %392 = vmatpush1.msra.mxu0 0.0
      %393 = vmatprep.subr.mxu0 0.0
      %394 = vmatpush1.msra.mxu0 0.0
      %395 = vmatprep.mubr.f32.mxu0 0.0
      %396 = vmatmul.mubr.f32.gmra.mrb[0].mxu0 %v326
      %v397 = vpop.f32.mrb[0].mxu0
      %v398 = vadd.f32 0.0, %v397
      %v399 = vpop.f32.mrb[0].mxu0
      %400 = vmatprep.mubr.f32.mxu0 0.0
      %401 = vmatmul.mubr.f32.gmra.mrb[0].mxu0 %v329
      %v402 = vpop.f32.mrb[0].mxu0
      %v403 = vadd.f32 0.0, %v402
      %v404 = vpop.f32.mrb[0].mxu0
      %405 = vdwg.mxu0
      %406 = vmatprep.subr.mxu0 0.0
      %407 = vmatpush1.msra.mxu0 %v278
      %408 = vmatprep.subr.mxu0 0.0
      %409 = vmatpush1.msra.mxu0 %v279
      %410 = vmatprep.subr.mxu0 0.0
      %411 = vmatpush1.msra.mxu0 %v280
      %412 = vmatprep.subr.mxu0 0.0
      %413 = vmatpush1.msra.mxu0 %v281
      %414 = vmatprep.subr.mxu0 0.0
      %415 = vmatpush1.msra.mxu0 %v282
      %416 = vmatprep.subr.mxu0 0.0
      %417 = vmatpush1.msra.mxu0 %v283
      %418 = vmatprep.subr.mxu0 0.0
      %419 = vmatpush1.msra.mxu0 0.0
      %420 = vmatprep.subr.mxu0 0.0
      %421 = vmatpush1.msra.mxu0 0.0
      %422 = vmatprep.subr.mxu0 0.0
      %423 = vmatpush1.msra.mxu0 0.0
      %424 = vmatprep.subr.mxu0 0.0
      %425 = vmatpush1.msra.mxu0 0.0
      %426 = vmatprep.subr.mxu0 0.0
      %427 = vmatpush1.msra.mxu0 0.0
      %428 = vmatprep.subr.mxu0 0.0
      %429 = vmatpush1.msra.mxu0 0.0
      %430 = vmatprep.subr.mxu0 0.0
      %431 = vmatpush1.msra.mxu0 0.0
      %432 = vmatprep.subr.mxu0 0.0
      %433 = vmatpush1.msra.mxu0 0.0
      %434 = vmatprep.subr.mxu0 0.0
      %435 = vmatpush1.msra.mxu0 0.0
      %436 = vmatprep.subr.mxu0 0.0
      %437 = vmatpush1.msra.mxu0 0.0
      %438 = vmatprep.subr.mxu0 0.0
      %439 = vmatpush1.msra.mxu0 0.0
      %440 = vmatprep.subr.mxu0 0.0
      %441 = vmatpush1.msra.mxu0 0.0
      %442 = vmatprep.subr.mxu0 0.0
      %443 = vmatpush1.msra.mxu0 0.0
      %444 = vmatprep.subr.mxu0 0.0
      %445 = vmatpush1.msra.mxu0 0.0
      %446 = vmatprep.subr.mxu0 0.0
      %447 = vmatpush1.msra.mxu0 0.0
      %448 = vmatprep.subr.mxu0 0.0
      %449 = vmatpush1.msra.mxu0 0.0
      %450 = vmatprep.subr.mxu0 0.0
      %451 = vmatpush1.msra.mxu0 0.0
      %452 = vmatprep.subr.mxu0 0.0
      %453 = vmatpush1.msra.mxu0 0.0
      %454 = vmatprep.subr.mxu0 0.0
      %455 = vmatpush1.msra.mxu0 0.0
      %456 = vmatprep.subr.mxu0 0.0
      %457 = vmatpush1.msra.mxu0 0.0
      %458 = vmatprep.subr.mxu0 0.0
      %459 = vmatpush1.msra.mxu0 0.0
      %460 = vmatprep.subr.mxu0 0.0
      %461 = vmatpush1.msra.mxu0 0.0
      %462 = vmatprep.subr.mxu0 0.0
      %463 = vmatpush1.msra.mxu0 0.0
      %464 = vmatprep.subr.mxu0 0.0
      %465 = vmatpush1.msra.mxu0 0.0
      %466 = vmatprep.subr.mxu0 0.0
      %467 = vmatpush1.msra.mxu0 0.0
      %468 = vmatprep.subr.mxu0 0.0
      %469 = vmatpush1.msra.mxu0 0.0
      %470 = vmatprep.mubr.f32.mxu0 0.0
      %471 = vmatmul.mubr.f32.gmra.mrb[0].mxu0 %v326
      %v472 = vpop.f32.mrb[0].mxu0
      %v473 = vadd.f32 0.0, %v472
      %v474 = vpop.f32.mrb[0].mxu0
      %475 = vmatprep.mubr.f32.mxu0 0.0
      %476 = vmatmul.mubr.f32.gmra.mrb[0].mxu0 %v329
      %v477 = vpop.f32.mrb[0].mxu0
      %v478 = vadd.f32 0.0, %v477
      %v479 = vpop.f32.mrb[0].mxu0
      %480 = vdwg.mxu0
      %481 = vmatprep.subr.mxu0 0.0
      %482 = vmatpush1.msra.mxu0 %v284
      %483 = vmatprep.subr.mxu0 0.0
      %484 = vmatpush1.msra.mxu0 %v285
      %485 = vmatprep.subr.mxu0 0.0
      %486 = vmatpush1.msra.mxu0 %v286
      %487 = vmatprep.subr.mxu0 0.0
      %488 = vmatpush1.msra.mxu0 %v287
      %489 = vmatprep.subr.mxu0 0.0
      %490 = vmatpush1.msra.mxu0 %v288
      %491 = vmatprep.subr.mxu0 0.0
      %492 = vmatpush1.msra.mxu0 %v289
      %493 = vmatprep.subr.mxu0 0.0
      %494 = vmatpush1.msra.mxu0 0.0
      %495 = vmatprep.subr.mxu0 0.0
      %496 = vmatpush1.msra.mxu0 0.0
      %497 = vmatprep.subr.mxu0 0.0
      %498 = vmatpush1.msra.mxu0 0.0
      %499 = vmatprep.subr.mxu0 0.0
      %500 = vmatpush1.msra.mxu0 0.0
      %501 = vmatprep.subr.mxu0 0.0
      %502 = vmatpush1.msra.mxu0 0.0
      %503 = vmatprep.subr.mxu0 0.0
      %504 = vmatpush1.msra.mxu0 0.0
      %505 = vmatprep.subr.mxu0 0.0
      %506 = vmatpush1.msra.mxu0 0.0
      %507 = vmatprep.subr.mxu0 0.0
      %508 = vmatpush1.msra.mxu0 0.0
      %509 = vmatprep.subr.mxu0 0.0
      %510 = vmatpush1.msra.mxu0 0.0
      %511 = vmatprep.subr.mxu0 0.0
      %512 = vmatpush1.msra.mxu0 0.0
      %513 = vmatprep.subr.mxu0 0.0
      %514 = vmatpush1.msra.mxu0 0.0
      %515 = vmatprep.subr.mxu0 0.0
      %516 = vmatpush1.msra.mxu0 0.0
      %517 = vmatprep.subr.mxu0 0.0
      %518 = vmatpush1.msra.mxu0 0.0
      %519 = vmatprep.subr.mxu0 0.0
      %520 = vmatpush1.msra.mxu0 0.0
      %521 = vmatprep.subr.mxu0 0.0
      %522 = vmatpush1.msra.mxu0 0.0
      %523 = vmatprep.subr.mxu0 0.0
      %524 = vmatpush1.msra.mxu0 0.0
      %525 = vmatprep.subr.mxu0 0.0
      %526 = vmatpush1.msra.mxu0 0.0
      %527 = vmatprep.subr.mxu0 0.0
      %528 = vmatpush1.msra.mxu0 0.0
      %529 = vmatprep.subr.mxu0 0.0
      %530 = vmatpush1.msra.mxu0 0.0
      %531 = vmatprep.subr.mxu0 0.0
      %532 = vmatpush1.msra.mxu0 0.0
      %533 = vmatprep.subr.mxu0 0.0
      %534 = vmatpush1.msra.mxu0 0.0
      %535 = vmatprep.subr.mxu0 0.0
      %536 = vmatpush1.msra.mxu0 0.0
      %537 = vmatprep.subr.mxu0 0.0
      %538 = vmatpush1.msra.mxu0 0.0
      %539 = vmatprep.subr.mxu0 0.0
      %540 = vmatpush1.msra.mxu0 0.0
      %541 = vmatprep.subr.mxu0 0.0
      %542 = vmatpush1.msra.mxu0 0.0
      %543 = vmatprep.subr.mxu0 0.0
      %544 = vmatpush1.msra.mxu0 0.0
      %545 = vmatprep.mubr.f32.mxu0 0.0
      %546 = vmatmul.mubr.f32.gmra.mrb[0].mxu0 %v326
      %v547 = vpop.f32.mrb[0].mxu0
      %v548 = vadd.f32 0.0, %v547
      %v549 = vpop.f32.mrb[0].mxu0
      %550 = vmatprep.mubr.f32.mxu0 0.0
      %551 = vmatmul.mubr.f32.gmra.mrb[0].mxu0 %v329
      %v552 = vpop.f32.mrb[0].mxu0
      %v553 = vadd.f32 0.0, %v552
      %v554 = vpop.f32.mrb[0].mxu0
      %555 = vdwg.mxu0
      %556 = vmatprep.subr.mxu0 0.0
      %557 = vmatpush1.msra.mxu0 %v290
      %558 = vmatprep.subr.mxu0 0.0
      %559 = vmatpush1.msra.mxu0 %v291
      %560 = vmatprep.subr.mxu0 0.0
      %561 = vmatpush1.msra.mxu0 %v292
      %562 = vmatprep.subr.mxu0 0.0
      %563 = vmatpush1.msra.mxu0 %v293
      %564 = vmatprep.subr.mxu0 0.0
      %565 = vmatpush1.msra.mxu0 %v294
      %566 = vmatprep.subr.mxu0 0.0
      %567 = vmatpush1.msra.mxu0 %v295
      %568 = vmatprep.subr.mxu0 0.0
      %569 = vmatpush1.msra.mxu0 0.0
      %570 = vmatprep.subr.mxu0 0.0
      %571 = vmatpush1.msra.mxu0 0.0
      %572 = vmatprep.subr.mxu0 0.0
      %573 = vmatpush1.msra.mxu0 0.0
      %574 = vmatprep.subr.mxu0 0.0
      %575 = vmatpush1.msra.mxu0 0.0
      %576 = vmatprep.subr.mxu0 0.0
      %577 = vmatpush1.msra.mxu0 0.0
      %578 = vmatprep.subr.mxu0 0.0
      %579 = vmatpush1.msra.mxu0 0.0
      %580 = vmatprep.subr.mxu0 0.0
      %581 = vmatpush1.msra.mxu0 0.0
      %582 = vmatprep.subr.mxu0 0.0
      %583 = vmatpush1.msra.mxu0 0.0
      %584 = vmatprep.subr.mxu0 0.0
      %585 = vmatpush1.msra.mxu0 0.0
      %586 = vmatprep.subr.mxu0 0.0
      %587 = vmatpush1.msra.mxu0 0.0
      %588 = vmatprep.subr.mxu0 0.0
      %589 = vmatpush1.msra.mxu0 0.0
      %590 = vmatprep.subr.mxu0 0.0
      %591 = vmatpush1.msra.mxu0 0.0
      %592 = vmatprep.subr.mxu0 0.0
      %593 = vmatpush1.msra.mxu0 0.0
      %594 = vmatprep.subr.mxu0 0.0
      %595 = vmatpush1.msra.mxu0 0.0
      %596 = vmatprep.subr.mxu0 0.0
      %597 = vmatpush1.msra.mxu0 0.0
      %598 = vmatprep.subr.mxu0 0.0
      %599 = vmatpush1.msra.mxu0 0.0
      %600 = vmatprep.subr.mxu0 0.0
      %601 = vmatpush1.msra.mxu0 0.0
      %602 = vmatprep.subr.mxu0 0.0
      %603 = vmatpush1.msra.mxu0 0.0
      %604 = vmatprep.subr.mxu0 0.0
      %605 = vmatpush1.msra.mxu0 0.0
      %606 = vmatprep.subr.mxu0 0.0
      %607 = vmatpush1.msra.mxu0 0.0
      %608 = vmatprep.subr.mxu0 0.0
      %609 = vmatpush1.msra.mxu0 0.0
      %610 = vmatprep.subr.mxu0 0.0
      %611 = vmatpush1.msra.mxu0 0.0
      %612 = vmatprep.subr.mxu0 0.0
      %613 = vmatpush1.msra.mxu0 0.0
      %614 = vmatprep.subr.mxu0 0.0
      %615 = vmatpush1.msra.mxu0 0.0
      %616 = vmatprep.subr.mxu0 0.0
      %617 = vmatpush1.msra.mxu0 0.0
      %618 = vmatprep.subr.mxu0 0.0
      %619 = vmatpush1.msra.mxu0 0.0
      %620 = vmatprep.mubr.f32.mxu0 0.0
      %621 = vmatmul.mubr.f32.gmra.mrb[0].mxu0 %v326
      %v622 = vpop.f32.mrb[0].mxu0
      %v623 = vadd.f32 0.0, %v622
      %v624 = vpop.f32.mrb[0].mxu0
      %625 = vmatprep.mubr.f32.mxu0 0.0
      %626 = vmatmul.mubr.f32.gmra.mrb[0].mxu0 %v329
      %v627 = vpop.f32.mrb[0].mxu0
      %v628 = vadd.f32 0.0, %v627
      %v629 = vpop.f32.mrb[0].mxu0
      %630 = vdwg.mxu0
      %631 = vmatprep.subr.mxu0 0.0
      %632 = vmatpush1.msra.mxu0 %v296
      %633 = vmatprep.subr.mxu0 0.0
      %634 = vmatpush1.msra.mxu0 %v297
      %635 = vmatprep.subr.mxu0 0.0
      %636 = vmatpush1.msra.mxu0 %v298
      %637 = vmatprep.subr.mxu0 0.0
      %638 = vmatpush1.msra.mxu0 %v299
      %639 = vmatprep.subr.mxu0 0.0
      %640 = vmatpush1.msra.mxu0 %v300
      %641 = vmatprep.subr.mxu0 0.0
      %642 = vmatpush1.msra.mxu0 %v301
      %643 = vmatprep.subr.mxu0 0.0
      %644 = vmatpush1.msra.mxu0 0.0
      %645 = vmatprep.subr.mxu0 0.0
      %646 = vmatpush1.msra.mxu0 0.0
      %647 = vmatprep.subr.mxu0 0.0
      %648 = vmatpush1.msra.mxu0 0.0
      %649 = vmatprep.subr.mxu0 0.0
      %650 = vmatpush1.msra.mxu0 0.0
      %651 = vmatprep.subr.mxu0 0.0
      %652 = vmatpush1.msra.mxu0 0.0
      %653 = vmatprep.subr.mxu0 0.0
      %654 = vmatpush1.msra.mxu0 0.0
      %655 = vmatprep.subr.mxu0 0.0
      %656 = vmatpush1.msra.mxu0 0.0
      %657 = vmatprep.subr.mxu0 0.0
      %658 = vmatpush1.msra.mxu0 0.0
      %659 = vmatprep.subr.mxu0 0.0
      %660 = vmatpush1.msra.mxu0 0.0
      %661 = vmatprep.subr.mxu0 0.0
      %662 = vmatpush1.msra.mxu0 0.0
      %663 = vmatprep.subr.mxu0 0.0
      %664 = vmatpush1.msra.mxu0 0.0
      %665 = vmatprep.subr.mxu0 0.0
      %666 = vmatpush1.msra.mxu0 0.0
      %667 = vmatprep.subr.mxu0 0.0
      %668 = vmatpush1.msra.mxu0 0.0
      %669 = vmatprep.subr.mxu0 0.0
      %670 = vmatpush1.msra.mxu0 0.0
      %671 = vmatprep.subr.mxu0 0.0
      %672 = vmatpush1.msra.mxu0 0.0
      %673 = vmatprep.subr.mxu0 0.0
      %674 = vmatpush1.msra.mxu0 0.0
      %675 = vmatprep.subr.mxu0 0.0
      %676 = vmatpush1.msra.mxu0 0.0
      %677 = vmatprep.subr.mxu0 0.0
      %678 = vmatpush1.msra.mxu0 0.0
      %679 = vmatprep.subr.mxu0 0.0
      %680 = vmatpush1.msra.mxu0 0.0
      %681 = vmatprep.subr.mxu0 0.0
      %682 = vmatpush1.msra.mxu0 0.0
      %683 = vmatprep.subr.mxu0 0.0
      %684 = vmatpush1.msra.mxu0 0.0
      %685 = vmatprep.subr.mxu0 0.0
      %686 = vmatpush1.msra.mxu0 0.0
      %687 = vmatprep.subr.mxu0 0.0
      %688 = vmatpush1.msra.mxu0 0.0
      %689 = vmatprep.subr.mxu0 0.0
      %690 = vmatpush1.msra.mxu0 0.0
      %691 = vmatprep.subr.mxu0 0.0
      %692 = vmatpush1.msra.mxu0 0.0
      %693 = vmatprep.subr.mxu0 0.0
      %694 = vmatpush1.msra.mxu0 0.0
      %695 = vmatprep.mubr.f32.mxu0 0.0
      %696 = vmatmul.mubr.f32.gmra.mrb[0].mxu0 %v326
      %v697 = vpop.f32.mrb[0].mxu0
      %v698 = vadd.f32 0.0, %v697
      %v699 = vpop.f32.mrb[0].mxu0
      %700 = vmatprep.mubr.f32.mxu0 0.0
      %701 = vmatmul.mubr.f32.gmra.mrb[0].mxu0 %v329
      %v702 = vpop.f32.mrb[0].mxu0
      %v703 = vadd.f32 0.0, %v702
      %v704 = vpop.f32.mrb[0].mxu0
      %705 = vdwg.mxu0
      %706 = vmatprep.subr.mxu0 0.0
      %707 = vmatpush1.msra.mxu0 %v302
      %708 = vmatprep.subr.mxu0 0.0
      %709 = vmatpush1.msra.mxu0 %v303
      %710 = vmatprep.subr.mxu0 0.0
      %711 = vmatpush1.msra.mxu0 %v304
      %712 = vmatprep.subr.mxu0 0.0
      %713 = vmatpush1.msra.mxu0 %v305
      %714 = vmatprep.subr.mxu0 0.0
      %715 = vmatpush1.msra.mxu0 %v306
      %716 = vmatprep.subr.mxu0 0.0
      %717 = vmatpush1.msra.mxu0 %v307
      %718 = vmatprep.subr.mxu0 0.0
      %719 = vmatpush1.msra.mxu0 0.0
      %720 = vmatprep.subr.mxu0 0.0
      %721 = vmatpush1.msra.mxu0 0.0
      %722 = vmatprep.subr.mxu0 0.0
      %723 = vmatpush1.msra.mxu0 0.0
      %724 = vmatprep.subr.mxu0 0.0
      %725 = vmatpush1.msra.mxu0 0.0
      %726 = vmatprep.subr.mxu0 0.0
      %727 = vmatpush1.msra.mxu0 0.0
      %728 = vmatprep.subr.mxu0 0.0
      %729 = vmatpush1.msra.mxu0 0.0
      %730 = vmatprep.subr.mxu0 0.0
      %731 = vmatpush1.msra.mxu0 0.0
      %732 = vmatprep.subr.mxu0 0.0
      %733 = vmatpush1.msra.mxu0 0.0
      %734 = vmatprep.subr.mxu0 0.0
      %735 = vmatpush1.msra.mxu0 0.0
      %736 = vmatprep.subr.mxu0 0.0
      %737 = vmatpush1.msra.mxu0 0.0
      %738 = vmatprep.subr.mxu0 0.0
      %739 = vmatpush1.msra.mxu0 0.0
      %740 = vmatprep.subr.mxu0 0.0
      %741 = vmatpush1.msra.mxu0 0.0
      %742 = vmatprep.subr.mxu0 0.0
      %743 = vmatpush1.msra.mxu0 0.0
      %744 = vmatprep.subr.mxu0 0.0
      %745 = vmatpush1.msra.mxu0 0.0
      %746 = vmatprep.subr.mxu0 0.0
      %747 = vmatpush1.msra.mxu0 0.0
      %748 = vmatprep.subr.mxu0 0.0
      %749 = vmatpush1.msra.mxu0 0.0
      %750 = vmatprep.subr.mxu0 0.0
      %751 = vmatpush1.msra.mxu0 0.0
      %752 = vmatprep.subr.mxu0 0.0
      %753 = vmatpush1.msra.mxu0 0.0
      %754 = vmatprep.subr.mxu0 0.0
      %755 = vmatpush1.msra.mxu0 0.0
      %756 = vmatprep.subr.mxu0 0.0
      %757 = vmatpush1.msra.mxu0 0.0
      %758 = vmatprep.subr.mxu0 0.0
      %759 = vmatpush1.msra.mxu0 0.0
      %760 = vmatprep.subr.mxu0 0.0
      %761 = vmatpush1.msra.mxu0 0.0
      %762 = vmatprep.subr.mxu0 0.0
      %763 = vmatpush1.msra.mxu0 0.0
      %764 = vmatprep.subr.mxu0 0.0
      %765 = vmatpush1.msra.mxu0 0.0
      %766 = vmatprep.subr.mxu0 0.0
      %767 = vmatpush1.msra.mxu0 0.0
      %768 = vmatprep.subr.mxu0 0.0
      %769 = vmatpush1.msra.mxu0 0.0
      %770 = vmatprep.mubr.f32.mxu0 0.0
      %771 = vmatmul.mubr.f32.gmra.mrb[0].mxu0 %v326
      %v772 = vpop.f32.mrb[0].mxu0
      %v773 = vadd.f32 0.0, %v772
      %v774 = vpop.f32.mrb[0].mxu0
      %775 = vmatprep.mubr.f32.mxu0 0.0
      %776 = vmatmul.mubr.f32.gmra.mrb[0].mxu0 %v329
      %v777 = vpop.f32.mrb[0].mxu0
      %v778 = vadd.f32 0.0, %v777
      %v779 = vpop.f32.mrb[0].mxu0
      %780 = vdwg.mxu0
      %781 = vmatprep.subr.mxu0 0.0
      %782 = vmatpush1.msra.mxu0 %v308
      %783 = vmatprep.subr.mxu0 0.0
      %784 = vmatpush1.msra.mxu0 %v309
      %785 = vmatprep.subr.mxu0 0.0
      %786 = vmatpush1.msra.mxu0 %v310
      %787 = vmatprep.subr.mxu0 0.0
      %788 = vmatpush1.msra.mxu0 %v311
      %789 = vmatprep.subr.mxu0 0.0
      %790 = vmatpush1.msra.mxu0 %v312
      %791 = vmatprep.subr.mxu0 0.0
      %792 = vmatpush1.msra.mxu0 %v313
      %793 = vmatprep.subr.mxu0 0.0
      %794 = vmatpush1.msra.mxu0 0.0
      %795 = vmatprep.subr.mxu0 0.0
      %796 = vmatpush1.msra.mxu0 0.0
      %797 = vmatprep.subr.mxu0 0.0
      %798 = vmatpush1.msra.mxu0 0.0
      %799 = vmatprep.subr.mxu0 0.0
      %800 = vmatpush1.msra.mxu0 0.0
      %801 = vmatprep.subr.mxu0 0.0
      %802 = vmatpush1.msra.mxu0 0.0
      %803 = vmatprep.subr.mxu0 0.0
      %804 = vmatpush1.msra.mxu0 0.0
      %805 = vmatprep.subr.mxu0 0.0
      %806 = vmatpush1.msra.mxu0 0.0
      %807 = vmatprep.subr.mxu0 0.0
      %808 = vmatpush1.msra.mxu0 0.0
      %809 = vmatprep.subr.mxu0 0.0
      %810 = vmatpush1.msra.mxu0 0.0
      %811 = vmatprep.subr.mxu0 0.0
      %812 = vmatpush1.msra.mxu0 0.0
      %813 = vmatprep.subr.mxu0 0.0
      %814 = vmatpush1.msra.mxu0 0.0
      %815 = vmatprep.subr.mxu0 0.0
      %816 = vmatpush1.msra.mxu0 0.0
      %817 = vmatprep.subr.mxu0 0.0
      %818 = vmatpush1.msra.mxu0 0.0
      %819 = vmatprep.subr.mxu0 0.0
      %820 = vmatpush1.msra.mxu0 0.0
      %821 = vmatprep.subr.mxu0 0.0
      %822 = vmatpush1.msra.mxu0 0.0
      %823 = vmatprep.subr.mxu0 0.0
      %824 = vmatpush1.msra.mxu0 0.0
      %825 = vmatprep.subr.mxu0 0.0
      %826 = vmatpush1.msra.mxu0 0.0
      %827 = vmatprep.subr.mxu0 0.0
      %828 = vmatpush1.msra.mxu0 0.0
      %829 = vmatprep.subr.mxu0 0.0
      %830 = vmatpush1.msra.mxu0 0.0
      %831 = vmatprep.subr.mxu0 0.0
      %832 = vmatpush1.msra.mxu0 0.0
      %833 = vmatprep.subr.mxu0 0.0
      %834 = vmatpush1.msra.mxu0 0.0
      %835 = vmatprep.subr.mxu0 0.0
      %836 = vmatpush1.msra.mxu0 0.0
      %837 = vmatprep.subr.mxu0 0.0
      %838 = vmatpush1.msra.mxu0 0.0
      %839 = vmatprep.subr.mxu0 0.0
      %840 = vmatpush1.msra.mxu0 0.0
      %841 = vmatprep.subr.mxu0 0.0
      %842 = vmatpush1.msra.mxu0 0.0
      %843 = vmatprep.subr.mxu0 0.0
      %844 = vmatpush1.msra.mxu0 0.0
      %845 = vmatprep.mubr.f32.mxu0 0.0
      %846 = vmatmul.mubr.f32.gmra.mrb[0].mxu0 %v326
      %v847 = vpop.f32.mrb[0].mxu0
      %v848 = vadd.f32 0.0, %v847
      %v849 = vpop.f32.mrb[0].mxu0
      %850 = vmatprep.mubr.f32.mxu0 0.0
      %851 = vmatmul.mubr.f32.gmra.mrb[0].mxu0 %v329
      %v852 = vpop.f32.mrb[0].mxu0
      %v853 = vadd.f32 0.0, %v852
      %v854 = vpop.f32.mrb[0].mxu0
      %855 = vdwg.mxu0
      %856 = vmatprep.subr.mxu0 0.0
      %857 = vmatpush1.msra.mxu0 %v314
      %858 = vmatprep.subr.mxu0 0.0
      %859 = vmatpush1.msra.mxu0 %v315
      %860 = vmatprep.subr.mxu0 0.0
      %861 = vmatpush1.msra.mxu0 %v316
      %862 = vmatprep.subr.mxu0 0.0
      %863 = vmatpush1.msra.mxu0 %v317
      %864 = vmatprep.subr.mxu0 0.0
      %865 = vmatpush1.msra.mxu0 %v318
      %866 = vmatprep.subr.mxu0 0.0
      %867 = vmatpush1.msra.mxu0 %v319
      %868 = vmatprep.subr.mxu0 0.0
      %869 = vmatpush1.msra.mxu0 0.0
      %870 = vmatprep.subr.mxu0 0.0
      %871 = vmatpush1.msra.mxu0 0.0
      %872 = vmatprep.subr.mxu0 0.0
      %873 = vmatpush1.msra.mxu0 0.0
      %874 = vmatprep.subr.mxu0 0.0
      %875 = vmatpush1.msra.mxu0 0.0
      %876 = vmatprep.subr.mxu0 0.0
      %877 = vmatpush1.msra.mxu0 0.0
      %878 = vmatprep.subr.mxu0 0.0
      %879 = vmatpush1.msra.mxu0 0.0
      %880 = vmatprep.subr.mxu0 0.0
      %881 = vmatpush1.msra.mxu0 0.0
      %882 = vmatprep.subr.mxu0 0.0
      %883 = vmatpush1.msra.mxu0 0.0
      %884 = vmatprep.subr.mxu0 0.0
      %885 = vmatpush1.msra.mxu0 0.0
      %886 = vmatprep.subr.mxu0 0.0
      %887 = vmatpush1.msra.mxu0 0.0
      %888 = vmatprep.subr.mxu0 0.0
      %889 = vmatpush1.msra.mxu0 0.0
      %890 = vmatprep.subr.mxu0 0.0
      %891 = vmatpush1.msra.mxu0 0.0
      %892 = vmatprep.subr.mxu0 0.0
      %893 = vmatpush1.msra.mxu0 0.0
      %894 = vmatprep.subr.mxu0 0.0
      %895 = vmatpush1.msra.mxu0 0.0
      %896 = vmatprep.subr.mxu0 0.0
      %897 = vmatpush1.msra.mxu0 0.0
      %898 = vmatprep.subr.mxu0 0.0
      %899 = vmatpush1.msra.mxu0 0.0
      %900 = vmatprep.subr.mxu0 0.0
      %901 = vmatpush1.msra.mxu0 0.0
      %902 = vmatprep.subr.mxu0 0.0
      %903 = vmatpush1.msra.mxu0 0.0
      %904 = vmatprep.subr.mxu0 0.0
      %905 = vmatpush1.msra.mxu0 0.0
      %906 = vmatprep.subr.mxu0 0.0
      %907 = vmatpush1.msra.mxu0 0.0
      %908 = vmatprep.subr.mxu0 0.0
      %909 = vmatpush1.msra.mxu0 0.0
      %910 = vmatprep.subr.mxu0 0.0
      %911 = vmatpush1.msra.mxu0 0.0
      %912 = vmatprep.subr.mxu0 0.0
      %913 = vmatpush1.msra.mxu0 0.0
      %914 = vmatprep.subr.mxu0 0.0
      %915 = vmatpush1.msra.mxu0 0.0
      %916 = vmatprep.subr.mxu0 0.0
      %917 = vmatpush1.msra.mxu0 0.0
      %918 = vmatprep.subr.mxu0 0.0
      %919 = vmatpush1.msra.mxu0 0.0
      %920 = vmatprep.mubr.f32.mxu0 0.0
      %921 = vmatmul.mubr.f32.gmra.mrb[0].mxu0 %v326
      %v922 = vpop.f32.mrb[0].mxu0
      %v923 = vadd.f32 0.0, %v922
      %v924 = vpop.f32.mrb[0].mxu0
      %925 = vmatprep.mubr.f32.mxu0 0.0
      %926 = vmatmul.mubr.f32.gmra.mrb[0].mxu0 %v329
      %v927 = vpop.f32.mrb[0].mxu0
      %v928 = vadd.f32 0.0, %v927
      %v929 = vpop.f32.mrb[0].mxu0
      %930 = vdwg.mxu0
      %s931 = scalar_lea.vmem %s261, 16
      %v932 = vld [vmem:[%s931] sm:$0xff]
      %v933 = vld [vmem:[%s931 + $0x8] sm:$0x3f]
      %v934 = vmul.f32 %v932, 0.125
      %v935 = vmul.f32 %v933, 0.125
      %v937 = vsel %vm324, %v934, 0
      %v940 = vsel %vm324, %v935, 0
      %942 = vmatprep.subr.mxu0 0.0
      %943 = vmatpush1.msra.mxu0 %v272
      %944 = vmatprep.subr.mxu0 0.0
      %945 = vmatpush1.msra.mxu0 %v273
      %946 = vmatprep.subr.mxu0 0.0
      %947 = vmatpush1.msra.mxu0 %v274
      %948 = vmatprep.subr.mxu0 0.0
      %949 = vmatpush1.msra.mxu0 %v275
      %950 = vmatprep.subr.mxu0 0.0
      %951 = vmatpush1.msra.mxu0 %v276
      %952 = vmatprep.subr.mxu0 0.0
      %953 = vmatpush1.msra.mxu0 %v277
      %954 = vmatprep.subr.mxu0 0.0
      %955 = vmatpush1.msra.mxu0 0.0
      %956 = vmatprep.subr.mxu0 0.0
      %957 = vmatpush1.msra.mxu0 0.0
      %958 = vmatprep.subr.mxu0 0.0
      %959 = vmatpush1.msra.mxu0 0.0
      %960 = vmatprep.subr.mxu0 0.0
      %961 = vmatpush1.msra.mxu0 0.0
      %962 = vmatprep.subr.mxu0 0.0
      %963 = vmatpush1.msra.mxu0 0.0
      %964 = vmatprep.subr.mxu0 0.0
      %965 = vmatpush1.msra.mxu0 0.0
      %966 = vmatprep.subr.mxu0 0.0
      %967 = vmatpush1.msra.mxu0 0.0
      %968 = vmatprep.subr.mxu0 0.0
      %969 = vmatpush1.msra.mxu0 0.0
      %970 = vmatprep.subr.mxu0 0.0
      %971 = vmatpush1.msra.mxu0 0.0
      %972 = vmatprep.subr.mxu0 0.0
      %973 = vmatpush1.msra.mxu0 0.0
      %974 = vmatprep.subr.mxu0 0.0
      %975 = vmatpush1.msra.mxu0 0.0
      %976 = vmatprep.subr.mxu0 0.0
      %977 = vmatpush1.msra.mxu0 0.0
      %978 = vmatprep.subr.mxu0 0.0
      %979 = vmatpush1.msra.mxu0 0.0
      %980 = vmatprep.subr.mxu0 0.0
      %981 = vmatpush1.msra.mxu0 0.0
      %982 = vmatprep.subr.mxu0 0.0
      %983 = vmatpush1.msra.mxu0 0.0
      %984 = vmatprep.subr.mxu0 0.0
      %985 = vmatpush1.msra.mxu0 0.0
      %986 = vmatprep.subr.mxu0 0.0
      %987 = vmatpush1.msra.mxu0 0.0
      %988 = vmatprep.subr.mxu0 0.0
      %989 = vmatpush1.msra.mxu0 0.0
      %990 = vmatprep.subr.mxu0 0.0
      %991 = vmatpush1.msra.mxu0 0.0
      %992 = vmatprep.subr.mxu0 0.0
      %993 = vmatpush1.msra.mxu0 0.0
      %994 = vmatprep.subr.mxu0 0.0
      %995 = vmatpush1.msra.mxu0 0.0
      %996 = vmatprep.subr.mxu0 0.0
      %997 = vmatpush1.msra.mxu0 0.0
      %998 = vmatprep.subr.mxu0 0.0
      %999 = vmatpush1.msra.mxu0 0.0
      %1000 = vmatprep.subr.mxu0 0.0
      %1001 = vmatpush1.msra.mxu0 0.0
      %1002 = vmatprep.subr.mxu0 0.0
      %1003 = vmatpush1.msra.mxu0 0.0
      %1004 = vmatprep.subr.mxu0 0.0
      %1005 = vmatpush1.msra.mxu0 0.0
      %1006 = vmatprep.mubr.f32.mxu0 0.0
      %1007 = vmatmul.mubr.f32.gmra.mrb[0].mxu0 %v937
      %v1008 = vpop.f32.mrb[0].mxu0
      %v1009 = vadd.f32 0.0, %v1008
      %v1010 = vpop.f32.mrb[0].mxu0
      %1011 = vmatprep.mubr.f32.mxu0 0.0
      %1012 = vmatmul.mubr.f32.gmra.mrb[0].mxu0 %v940
      %v1013 = vpop.f32.mrb[0].mxu0
      %v1014 = vadd.f32 0.0, %v1013
      %v1015 = vpop.f32.mrb[0].mxu0
      %1016 = vdwg.mxu0
      %1017 = vmatprep.subr.mxu0 0.0
      %1018 = vmatpush1.msra.mxu0 %v278
      %1019 = vmatprep.subr.mxu0 0.0
      %1020 = vmatpush1.msra.mxu0 %v279
      %1021 = vmatprep.subr.mxu0 0.0
      %1022 = vmatpush1.msra.mxu0 %v280
      %1023 = vmatprep.subr.mxu0 0.0
      %1024 = vmatpush1.msra.mxu0 %v281
      %1025 = vmatprep.subr.mxu0 0.0
      %1026 = vmatpush1.msra.mxu0 %v282
      %1027 = vmatprep.subr.mxu0 0.0
      %1028 = vmatpush1.msra.mxu0 %v283
      %1029 = vmatprep.subr.mxu0 0.0
      %1030 = vmatpush1.msra.mxu0 0.0
      %1031 = vmatprep.subr.mxu0 0.0
      %1032 = vmatpush1.msra.mxu0 0.0
      %1033 = vmatprep.subr.mxu0 0.0
      %1034 = vmatpush1.msra.mxu0 0.0
      %1035 = vmatprep.subr.mxu0 0.0
      %1036 = vmatpush1.msra.mxu0 0.0
      %1037 = vmatprep.subr.mxu0 0.0
      %1038 = vmatpush1.msra.mxu0 0.0
      %1039 = vmatprep.subr.mxu0 0.0
      %1040 = vmatpush1.msra.mxu0 0.0
      %1041 = vmatprep.subr.mxu0 0.0
      %1042 = vmatpush1.msra.mxu0 0.0
      %1043 = vmatprep.subr.mxu0 0.0
      %1044 = vmatpush1.msra.mxu0 0.0
      %1045 = vmatprep.subr.mxu0 0.0
      %1046 = vmatpush1.msra.mxu0 0.0
      %1047 = vmatprep.subr.mxu0 0.0
      %1048 = vmatpush1.msra.mxu0 0.0
      %1049 = vmatprep.subr.mxu0 0.0
      %1050 = vmatpush1.msra.mxu0 0.0
      %1051 = vmatprep.subr.mxu0 0.0
      %1052 = vmatpush1.msra.mxu0 0.0
      %1053 = vmatprep.subr.mxu0 0.0
      %1054 = vmatpush1.msra.mxu0 0.0
      %1055 = vmatprep.subr.mxu0 0.0
      %1056 = vmatpush1.msra.mxu0 0.0
      %1057 = vmatprep.subr.mxu0 0.0
      %1058 = vmatpush1.msra.mxu0 0.0
      %1059 = vmatprep.subr.mxu0 0.0
      %1060 = vmatpush1.msra.mxu0 0.0
      %1061 = vmatprep.subr.mxu0 0.0
      %1062 = vmatpush1.msra.mxu0 0.0
      %1063 = vmatprep.subr.mxu0 0.0
      %1064 = vmatpush1.msra.mxu0 0.0
      %1065 = vmatprep.subr.mxu0 0.0
      %1066 = vmatpush1.msra.mxu0 0.0
      %1067 = vmatprep.subr.mxu0 0.0
      %1068 = vmatpush1.msra.mxu0 0.0
      %1069 = vmatprep.subr.mxu0 0.0
      %1070 = vmatpush1.msra.mxu0 0.0
      %1071 = vmatprep.subr.mxu0 0.0
      %1072 = vmatpush1.msra.mxu0 0.0
      %1073 = vmatprep.subr.mxu0 0.0
      %1074 = vmatpush1.msra.mxu0 0.0
      %1075 = vmatprep.subr.mxu0 0.0
      %1076 = vmatpush1.msra.mxu0 0.0
      %1077 = vmatprep.subr.mxu0 0.0
      %1078 = vmatpush1.msra.mxu0 0.0
      %1079 = vmatprep.subr.mxu0 0.0
      %1080 = vmatpush1.msra.mxu0 0.0
      %1081 = vmatprep.mubr.f32.mxu0 0.0
      %1082 = vmatmul.mubr.f32.gmra.mrb[0].mxu0 %v937
      %v1083 = vpop.f32.mrb[0].mxu0
      %v1084 = vadd.f32 0.0, %v1083
      %v1085 = vpop.f32.mrb[0].mxu0
      %1086 = vmatprep.mubr.f32.mxu0 0.0
      %1087 = vmatmul.mubr.f32.gmra.mrb[0].mxu0 %v940
      %v1088 = vpop.f32.mrb[0].mxu0
      %v1089 = vadd.f32 0.0, %v1088
      %v1090 = vpop.f32.mrb[0].mxu0
      %1091 = vdwg.mxu0
      %1092 = vmatprep.subr.mxu0 0.0
      %1093 = vmatpush1.msra.mxu0 %v284
      %1094 = vmatprep.subr.mxu0 0.0
      %1095 = vmatpush1.msra.mxu0 %v285
      %1096 = vmatprep.subr.mxu0 0.0
      %1097 = vmatpush1.msra.mxu0 %v286
      %1098 = vmatprep.subr.mxu0 0.0
      %1099 = vmatpush1.msra.mxu0 %v287
      %1100 = vmatprep.subr.mxu0 0.0
      %1101 = vmatpush1.msra.mxu0 %v288
      %1102 = vmatprep.subr.mxu0 0.0
      %1103 = vmatpush1.msra.mxu0 %v289
      %1104 = vmatprep.subr.mxu0 0.0
      %1105 = vmatpush1.msra.mxu0 0.0
      %1106 = vmatprep.subr.mxu0 0.0
      %1107 = vmatpush1.msra.mxu0 0.0
      %1108 = vmatprep.subr.mxu0 0.0
      %1109 = vmatpush1.msra.mxu0 0.0
      %1110 = vmatprep.subr.mxu0 0.0
      %1111 = vmatpush1.msra.mxu0 0.0
      %1112 = vmatprep.subr.mxu0 0.0
      %1113 = vmatpush1.msra.mxu0 0.0
      %1114 = vmatprep.subr.mxu0 0.0
      %1115 = vmatpush1.msra.mxu0 0.0
      %1116 = vmatprep.subr.mxu0 0.0
      %1117 = vmatpush1.msra.mxu0 0.0
      %1118 = vmatprep.subr.mxu0 0.0
      %1119 = vmatpush1.msra.mxu0 0.0
      %1120 = vmatprep.subr.mxu0 0.0
      %1121 = vmatpush1.msra.mxu0 0.0
      %1122 = vmatprep.subr.mxu0 0.0
      %1123 = vmatpush1.msra.mxu0 0.0
      %1124 = vmatprep.subr.mxu0 0.0
      %1125 = vmatpush1.msra.mxu0 0.0
      %1126 = vmatprep.subr.mxu0 0.0
      %1127 = vmatpush1.msra.mxu0 0.0
      %1128 = vmatprep.subr.mxu0 0.0
      %1129 = vmatpush1.msra.mxu0 0.0
      %1130 = vmatprep.subr.mxu0 0.0
      %1131 = vmatpush1.msra.mxu0 0.0
      %1132 = vmatprep.subr.mxu0 0.0
      %1133 = vmatpush1.msra.mxu0 0.0
      %1134 = vmatprep.subr.mxu0 0.0
      %1135 = vmatpush1.msra.mxu0 0.0
      %1136 = vmatprep.subr.mxu0 0.0
      %1137 = vmatpush1.msra.mxu0 0.0
      %1138 = vmatprep.subr.mxu0 0.0
      %1139 = vmatpush1.msra.mxu0 0.0
      %1140 = vmatprep.subr.mxu0 0.0
      %1141 = vmatpush1.msra.mxu0 0.0
      %1142 = vmatprep.subr.mxu0 0.0
      %1143 = vmatpush1.msra.mxu0 0.0
      %1144 = vmatprep.subr.mxu0 0.0
      %1145 = vmatpush1.msra.mxu0 0.0
      %1146 = vmatprep.subr.mxu0 0.0
      %1147 = vmatpush1.msra.mxu0 0.0
      %1148 = vmatprep.subr.mxu0 0.0
      %1149 = vmatpush1.msra.mxu0 0.0
      %1150 = vmatprep.subr.mxu0 0.0
      %1151 = vmatpush1.msra.mxu0 0.0
      %1152 = vmatprep.subr.mxu0 0.0
      %1153 = vmatpush1.msra.mxu0 0.0
      %1154 = vmatprep.subr.mxu0 0.0
      %1155 = vmatpush1.msra.mxu0 0.0
      %1156 = vmatprep.mubr.f32.mxu0 0.0
      %1157 = vmatmul.mubr.f32.gmra.mrb[0].mxu0 %v937
      %v1158 = vpop.f32.mrb[0].mxu0
      %v1159 = vadd.f32 0.0, %v1158
      %v1160 = vpop.f32.mrb[0].mxu0
      %1161 = vmatprep.mubr.f32.mxu0 0.0
      %1162 = vmatmul.mubr.f32.gmra.mrb[0].mxu0 %v940
      %v1163 = vpop.f32.mrb[0].mxu0
      %v1164 = vadd.f32 0.0, %v1163
      %v1165 = vpop.f32.mrb[0].mxu0
      %1166 = vdwg.mxu0
      %1167 = vmatprep.subr.mxu0 0.0
      %1168 = vmatpush1.msra.mxu0 %v290
      %1169 = vmatprep.subr.mxu0 0.0
      %1170 = vmatpush1.msra.mxu0 %v291
      %1171 = vmatprep.subr.mxu0 0.0
      %1172 = vmatpush1.msra.mxu0 %v292
      %1173 = vmatprep.subr.mxu0 0.0
      %1174 = vmatpush1.msra.mxu0 %v293
      %1175 = vmatprep.subr.mxu0 0.0
      %1176 = vmatpush1.msra.mxu0 %v294
      %1177 = vmatprep.subr.mxu0 0.0
      %1178 = vmatpush1.msra.mxu0 %v295
      %1179 = vmatprep.subr.mxu0 0.0
      %1180 = vmatpush1.msra.mxu0 0.0
      %1181 = vmatprep.subr.mxu0 0.0
      %1182 = vmatpush1.msra.mxu0 0.0
      %1183 = vmatprep.subr.mxu0 0.0
      %1184 = vmatpush1.msra.mxu0 0.0
      %1185 = vmatprep.subr.mxu0 0.0
      %1186 = vmatpush1.msra.mxu0 0.0
      %1187 = vmatprep.subr.mxu0 0.0
      %1188 = vmatpush1.msra.mxu0 0.0
      %1189 = vmatprep.subr.mxu0 0.0
      %1190 = vmatpush1.msra.mxu0 0.0
      %1191 = vmatprep.subr.mxu0 0.0
      %1192 = vmatpush1.msra.mxu0 0.0
      %1193 = vmatprep.subr.mxu0 0.0
      %1194 = vmatpush1.msra.mxu0 0.0
      %1195 = vmatprep.subr.mxu0 0.0
      %1196 = vmatpush1.msra.mxu0 0.0
      %1197 = vmatprep.subr.mxu0 0.0
      %1198 = vmatpush1.msra.mxu0 0.0
      %1199 = vmatprep.subr.mxu0 0.0
      %1200 = vmatpush1.msra.mxu0 0.0
      %1201 = vmatprep.subr.mxu0 0.0
      %1202 = vmatpush1.msra.mxu0 0.0
      %1203 = vmatprep.subr.mxu0 0.0
      %1204 = vmatpush1.msra.mxu0 0.0
      %1205 = vmatprep.subr.mxu0 0.0
      %1206 = vmatpush1.msra.mxu0 0.0
      %1207 = vmatprep.subr.mxu0 0.0
      %1208 = vmatpush1.msra.mxu0 0.0
      %1209 = vmatprep.subr.mxu0 0.0
      %1210 = vmatpush1.msra.mxu0 0.0
      %1211 = vmatprep.subr.mxu0 0.0
      %1212 = vmatpush1.msra.mxu0 0.0
      %1213 = vmatprep.subr.mxu0 0.0
      %1214 = vmatpush1.msra.mxu0 0.0
      %1215 = vmatprep.subr.mxu0 0.0
      %1216 = vmatpush1.msra.mxu0 0.0
      %1217 = vmatprep.subr.mxu0 0.0
      %1218 = vmatpush1.msra.mxu0 0.0
      %1219 = vmatprep.subr.mxu0 0.0
      %1220 = vmatpush1.msra.mxu0 0.0
      %1221 = vmatprep.subr.mxu0 0.0
      %1222 = vmatpush1.msra.mxu0 0.0
      %1223 = vmatprep.subr.mxu0 0.0
      %1224 = vmatpush1.msra.mxu0 0.0
      %1225 = vmatprep.subr.mxu0 0.0
      %1226 = vmatpush1.msra.mxu0 0.0
      %1227 = vmatprep.subr.mxu0 0.0
      %1228 = vmatpush1.msra.mxu0 0.0
      %1229 = vmatprep.subr.mxu0 0.0
      %1230 = vmatpush1.msra.mxu0 0.0
      %1231 = vmatprep.mubr.f32.mxu0 0.0
      %1232 = vmatmul.mubr.f32.gmra.mrb[0].mxu0 %v937
      %v1233 = vpop.f32.mrb[0].mxu0
      %v1234 = vadd.f32 0.0, %v1233
      %v1235 = vpop.f32.mrb[0].mxu0
      %1236 = vmatprep.mubr.f32.mxu0 0.0
      %1237 = vmatmul.mubr.f32.gmra.mrb[0].mxu0 %v940
      %v1238 = vpop.f32.mrb[0].mxu0
      %v1239 = vadd.f32 0.0, %v1238
      %v1240 = vpop.f32.mrb[0].mxu0
      %1241 = vdwg.mxu0
      %1242 = vmatprep.subr.mxu0 0.0
      %1243 = vmatpush1.msra.mxu0 %v296
      %1244 = vmatprep.subr.mxu0 0.0
      %1245 = vmatpush1.msra.mxu0 %v297
      %1246 = vmatprep.subr.mxu0 0.0
      %1247 = vmatpush1.msra.mxu0 %v298
      %1248 = vmatprep.subr.mxu0 0.0
      %1249 = vmatpush1.msra.mxu0 %v299
      %1250 = vmatprep.subr.mxu0 0.0
      %1251 = vmatpush1.msra.mxu0 %v300
      %1252 = vmatprep.subr.mxu0 0.0
      %1253 = vmatpush1.msra.mxu0 %v301
      %1254 = vmatprep.subr.mxu0 0.0
      %1255 = vmatpush1.msra.mxu0 0.0
      %1256 = vmatprep.subr.mxu0 0.0
      %1257 = vmatpush1.msra.mxu0 0.0
      %1258 = vmatprep.subr.mxu0 0.0
      %1259 = vmatpush1.msra.mxu0 0.0
      %1260 = vmatprep.subr.mxu0 0.0
      %1261 = vmatpush1.msra.mxu0 0.0
      %1262 = vmatprep.subr.mxu0 0.0
      %1263 = vmatpush1.msra.mxu0 0.0
      %1264 = vmatprep.subr.mxu0 0.0
      %1265 = vmatpush1.msra.mxu0 0.0
      %1266 = vmatprep.subr.mxu0 0.0
      %1267 = vmatpush1.msra.mxu0 0.0
      %1268 = vmatprep.subr.mxu0 0.0
      %1269 = vmatpush1.msra.mxu0 0.0
      %1270 = vmatprep.subr.mxu0 0.0
      %1271 = vmatpush1.msra.mxu0 0.0
      %1272 = vmatprep.subr.mxu0 0.0
      %1273 = vmatpush1.msra.mxu0 0.0
      %1274 = vmatprep.subr.mxu0 0.0
      %1275 = vmatpush1.msra.mxu0 0.0
      %1276 = vmatprep.subr.mxu0 0.0
      %1277 = vmatpush1.msra.mxu0 0.0
      %1278 = vmatprep.subr.mxu0 0.0
      %1279 = vmatpush1.msra.mxu0 0.0
      %1280 = vmatprep.subr.mxu0 0.0
      %1281 = vmatpush1.msra.mxu0 0.0
      %1282 = vmatprep.subr.mxu0 0.0
      %1283 = vmatpush1.msra.mxu0 0.0
      %1284 = vmatprep.subr.mxu0 0.0
      %1285 = vmatpush1.msra.mxu0 0.0
      %1286 = vmatprep.subr.mxu0 0.0
      %1287 = vmatpush1.msra.mxu0 0.0
      %1288 = vmatprep.subr.mxu0 0.0
      %1289 = vmatpush1.msra.mxu0 0.0
      %1290 = vmatprep.subr.mxu0 0.0
      %1291 = vmatpush1.msra.mxu0 0.0
      %1292 = vmatprep.subr.mxu0 0.0
      %1293 = vmatpush1.msra.mxu0 0.0
      %1294 = vmatprep.subr.mxu0 0.0
      %1295 = vmatpush1.msra.mxu0 0.0
      %1296 = vmatprep.subr.mxu0 0.0
      %1297 = vmatpush1.msra.mxu0 0.0
      %1298 = vmatprep.subr.mxu0 0.0
      %1299 = vmatpush1.msra.mxu0 0.0
      %1300 = vmatprep.subr.mxu0 0.0
      %1301 = vmatpush1.msra.mxu0 0.0
      %1302 = vmatprep.subr.mxu0 0.0
      %1303 = vmatpush1.msra.mxu0 0.0
      %1304 = vmatprep.subr.mxu0 0.0
      %1305 = vmatpush1.msra.mxu0 0.0
      %1306 = vmatprep.mubr.f32.mxu0 0.0
      %1307 = vmatmul.mubr.f32.gmra.mrb[0].mxu0 %v937
      %v1308 = vpop.f32.mrb[0].mxu0
      %v1309 = vadd.f32 0.0, %v1308
      %v1310 = vpop.f32.mrb[0].mxu0
      %1311 = vmatprep.mubr.f32.mxu0 0.0
      %1312 = vmatmul.mubr.f32.gmra.mrb[0].mxu0 %v940
      %v1313 = vpop.f32.mrb[0].mxu0
      %v1314 = vadd.f32 0.0, %v1313
      %v1315 = vpop.f32.mrb[0].mxu0
      %1316 = vdwg.mxu0
      %1317 = vmatprep.subr.mxu0 0.0
      %1318 = vmatpush1.msra.mxu0 %v302
      %1319 = vmatprep.subr.mxu0 0.0
      %1320 = vmatpush1.msra.mxu0 %v303
      %1321 = vmatprep.subr.mxu0 0.0
      %1322 = vmatpush1.msra.mxu0 %v304
      %1323 = vmatprep.subr.mxu0 0.0
      %1324 = vmatpush1.msra.mxu0 %v305
      %1325 = vmatprep.subr.mxu0 0.0
      %1326 = vmatpush1.msra.mxu0 %v306
      %1327 = vmatprep.subr.mxu0 0.0
      %1328 = vmatpush1.msra.mxu0 %v307
      %1329 = vmatprep.subr.mxu0 0.0
      %1330 = vmatpush1.msra.mxu0 0.0
      %1331 = vmatprep.subr.mxu0 0.0
      %1332 = vmatpush1.msra.mxu0 0.0
      %1333 = vmatprep.subr.mxu0 0.0
      %1334 = vmatpush1.msra.mxu0 0.0
      %1335 = vmatprep.subr.mxu0 0.0
      %1336 = vmatpush1.msra.mxu0 0.0
      %1337 = vmatprep.subr.mxu0 0.0
      %1338 = vmatpush1.msra.mxu0 0.0
      %1339 = vmatprep.subr.mxu0 0.0
      %1340 = vmatpush1.msra.mxu0 0.0
      %1341 = vmatprep.subr.mxu0 0.0
      %1342 = vmatpush1.msra.mxu0 0.0
      %1343 = vmatprep.subr.mxu0 0.0
      %1344 = vmatpush1.msra.mxu0 0.0
      %1345 = vmatprep.subr.mxu0 0.0
      %1346 = vmatpush1.msra.mxu0 0.0
      %1347 = vmatprep.subr.mxu0 0.0
      %1348 = vmatpush1.msra.mxu0 0.0
      %1349 = vmatprep.subr.mxu0 0.0
      %1350 = vmatpush1.msra.mxu0 0.0
      %1351 = vmatprep.subr.mxu0 0.0
      %1352 = vmatpush1.msra.mxu0 0.0
      %1353 = vmatprep.subr.mxu0 0.0
      %1354 = vmatpush1.msra.mxu0 0.0
      %1355 = vmatprep.subr.mxu0 0.0
      %1356 = vmatpush1.msra.mxu0 0.0
      %1357 = vmatprep.subr.mxu0 0.0
      %1358 = vmatpush1.msra.mxu0 0.0
      %1359 = vmatprep.subr.mxu0 0.0
      %1360 = vmatpush1.msra.mxu0 0.0
      %1361 = vmatprep.subr.mxu0 0.0
      %1362 = vmatpush1.msra.mxu0 0.0
      %1363 = vmatprep.subr.mxu0 0.0
      %1364 = vmatpush1.msra.mxu0 0.0
      %1365 = vmatprep.subr.mxu0 0.0
      %1366 = vmatpush1.msra.mxu0 0.0
      %1367 = vmatprep.subr.mxu0 0.0
      %1368 = vmatpush1.msra.mxu0 0.0
      %1369 = vmatprep.subr.mxu0 0.0
      %1370 = vmatpush1.msra.mxu0 0.0
      %1371 = vmatprep.subr.mxu0 0.0
      %1372 = vmatpush1.msra.mxu0 0.0
      %1373 = vmatprep.subr.mxu0 0.0
      %1374 = vmatpush1.msra.mxu0 0.0
      %1375 = vmatprep.subr.mxu0 0.0
      %1376 = vmatpush1.msra.mxu0 0.0
      %1377 = vmatprep.subr.mxu0 0.0
      %1378 = vmatpush1.msra.mxu0 0.0
      %1379 = vmatprep.subr.mxu0 0.0
      %1380 = vmatpush1.msra.mxu0 0.0
      %1381 = vmatprep.mubr.f32.mxu0 0.0
      %1382 = vmatmul.mubr.f32.gmra.mrb[0].mxu0 %v937
      %v1383 = vpop.f32.mrb[0].mxu0
      %v1384 = vadd.f32 0.0, %v1383
      %v1385 = vpop.f32.mrb[0].mxu0
      %1386 = vmatprep.mubr.f32.mxu0 0.0
      %1387 = vmatmul.mubr.f32.gmra.mrb[0].mxu0 %v940
      %v1388 = vpop.f32.mrb[0].mxu0
      %v1389 = vadd.f32 0.0, %v1388
      %v1390 = vpop.f32.mrb[0].mxu0
      %1391 = vdwg.mxu0
      %1392 = vmatprep.subr.mxu0 0.0
      %1393 = vmatpush1.msra.mxu0 %v308
      %1394 = vmatprep.subr.mxu0 0.0
      %1395 = vmatpush1.msra.mxu0 %v309
      %1396 = vmatprep.subr.mxu0 0.0
      %1397 = vmatpush1.msra.mxu0 %v310
      %1398 = vmatprep.subr.mxu0 0.0
      %1399 = vmatpush1.msra.mxu0 %v311
      %1400 = vmatprep.subr.mxu0 0.0
      %1401 = vmatpush1.msra.mxu0 %v312
      %1402 = vmatprep.subr.mxu0 0.0
      %1403 = vmatpush1.msra.mxu0 %v313
      %1404 = vmatprep.subr.mxu0 0.0
      %1405 = vmatpush1.msra.mxu0 0.0
      %1406 = vmatprep.subr.mxu0 0.0
      %1407 = vmatpush1.msra.mxu0 0.0
      %1408 = vmatprep.subr.mxu0 0.0
      %1409 = vmatpush1.msra.mxu0 0.0
      %1410 = vmatprep.subr.mxu0 0.0
      %1411 = vmatpush1.msra.mxu0 0.0
      %1412 = vmatprep.subr.mxu0 0.0
      %1413 = vmatpush1.msra.mxu0 0.0
      %1414 = vmatprep.subr.mxu0 0.0
      %1415 = vmatpush1.msra.mxu0 0.0
      %1416 = vmatprep.subr.mxu0 0.0
      %1417 = vmatpush1.msra.mxu0 0.0
      %1418 = vmatprep.subr.mxu0 0.0
      %1419 = vmatpush1.msra.mxu0 0.0
      %1420 = vmatprep.subr.mxu0 0.0
      %1421 = vmatpush1.msra.mxu0 0.0
      %1422 = vmatprep.subr.mxu0 0.0
      %1423 = vmatpush1.msra.mxu0 0.0
      %1424 = vmatprep.subr.mxu0 0.0
      %1425 = vmatpush1.msra.mxu0 0.0
      %1426 = vmatprep.subr.mxu0 0.0
      %1427 = vmatpush1.msra.mxu0 0.0
      %1428 = vmatprep.subr.mxu0 0.0
      %1429 = vmatpush1.msra.mxu0 0.0
      %1430 = vmatprep.subr.mxu0 0.0
      %1431 = vmatpush1.msra.mxu0 0.0
      %1432 = vmatprep.subr.mxu0 0.0
      %1433 = vmatpush1.msra.mxu0 0.0
      %1434 = vmatprep.subr.mxu0 0.0
      %1435 = vmatpush1.msra.mxu0 0.0
      %1436 = vmatprep.subr.mxu0 0.0
      %1437 = vmatpush1.msra.mxu0 0.0
      %1438 = vmatprep.subr.mxu0 0.0
      %1439 = vmatpush1.msra.mxu0 0.0
      %1440 = vmatprep.subr.mxu0 0.0
      %1441 = vmatpush1.msra.mxu0 0.0
      %1442 = vmatprep.subr.mxu0 0.0
      %1443 = vmatpush1.msra.mxu0 0.0
      %1444 = vmatprep.subr.mxu0 0.0
      %1445 = vmatpush1.msra.mxu0 0.0
      %1446 = vmatprep.subr.mxu0 0.0
      %1447 = vmatpush1.msra.mxu0 0.0
      %1448 = vmatprep.subr.mxu0 0.0
      %1449 = vmatpush1.msra.mxu0 0.0
      %1450 = vmatprep.subr.mxu0 0.0
      %1451 = vmatpush1.msra.mxu0 0.0
      %1452 = vmatprep.subr.mxu0 0.0
      %1453 = vmatpush1.msra.mxu0 0.0
      %1454 = vmatprep.subr.mxu0 0.0
      %1455 = vmatpush1.msra.mxu0 0.0
      %1456 = vmatprep.mubr.f32.mxu0 0.0
      %1457 = vmatmul.mubr.f32.gmra.mrb[0].mxu0 %v937
      %v1458 = vpop.f32.mrb[0].mxu0
      %v1459 = vadd.f32 0.0, %v1458
      %v1460 = vpop.f32.mrb[0].mxu0
      %1461 = vmatprep.mubr.f32.mxu0 0.0
      %1462 = vmatmul.mubr.f32.gmra.mrb[0].mxu0 %v940
      %v1463 = vpop.f32.mrb[0].mxu0
      %v1464 = vadd.f32 0.0, %v1463
      %v1465 = vpop.f32.mrb[0].mxu0
      %1466 = vdwg.mxu0
      %1467 = vmatprep.subr.mxu0 0.0
      %1468 = vmatpush1.msra.mxu0 %v314
      %1469 = vmatprep.subr.mxu0 0.0
      %1470 = vmatpush1.msra.mxu0 %v315
      %1471 = vmatprep.subr.mxu0 0.0
      %1472 = vmatpush1.msra.mxu0 %v316
      %1473 = vmatprep.subr.mxu0 0.0
      %1474 = vmatpush1.msra.mxu0 %v317
      %1475 = vmatprep.subr.mxu0 0.0
      %1476 = vmatpush1.msra.mxu0 %v318
      %1477 = vmatprep.subr.mxu0 0.0
      %1478 = vmatpush1.msra.mxu0 %v319
      %1479 = vmatprep.subr.mxu0 0.0
      %1480 = vmatpush1.msra.mxu0 0.0
      %1481 = vmatprep.subr.mxu0 0.0
      %1482 = vmatpush1.msra.mxu0 0.0
      %1483 = vmatprep.subr.mxu0 0.0
      %1484 = vmatpush1.msra.mxu0 0.0
      %1485 = vmatprep.subr.mxu0 0.0
      %1486 = vmatpush1.msra.mxu0 0.0
      %1487 = vmatprep.subr.mxu0 0.0
      %1488 = vmatpush1.msra.mxu0 0.0
      %1489 = vmatprep.subr.mxu0 0.0
      %1490 = vmatpush1.msra.mxu0 0.0
      %1491 = vmatprep.subr.mxu0 0.0
      %1492 = vmatpush1.msra.mxu0 0.0
      %1493 = vmatprep.subr.mxu0 0.0
      %1494 = vmatpush1.msra.mxu0 0.0
      %1495 = vmatprep.subr.mxu0 0.0
      %1496 = vmatpush1.msra.mxu0 0.0
      %1497 = vmatprep.subr.mxu0 0.0
      %1498 = vmatpush1.msra.mxu0 0.0
      %1499 = vmatprep.subr.mxu0 0.0
      %1500 = vmatpush1.msra.mxu0 0.0
      %1501 = vmatprep.subr.mxu0 0.0
      %1502 = vmatpush1.msra.mxu0 0.0
      %1503 = vmatprep.subr.mxu0 0.0
      %1504 = vmatpush1.msra.mxu0 0.0
      %1505 = vmatprep.subr.mxu0 0.0
      %1506 = vmatpush1.msra.mxu0 0.0
      %1507 = vmatprep.subr.mxu0 0.0
      %1508 = vmatpush1.msra.mxu0 0.0
      %1509 = vmatprep.subr.mxu0 0.0
      %1510 = vmatpush1.msra.mxu0 0.0
      %1511 = vmatprep.subr.mxu0 0.0
      %1512 = vmatpush1.msra.mxu0 0.0
      %1513 = vmatprep.subr.mxu0 0.0
      %1514 = vmatpush1.msra.mxu0 0.0
      %1515 = vmatprep.subr.mxu0 0.0
      %1516 = vmatpush1.msra.mxu0 0.0
      %1517 = vmatprep.subr.mxu0 0.0
      %1518 = vmatpush1.msra.mxu0 0.0
      %1519 = vmatprep.subr.mxu0 0.0
      %1520 = vmatpush1.msra.mxu0 0.0
      %1521 = vmatprep.subr.mxu0 0.0
      %1522 = vmatpush1.msra.mxu0 0.0
      %1523 = vmatprep.subr.mxu0 0.0
      %1524 = vmatpush1.msra.mxu0 0.0
      %1525 = vmatprep.subr.mxu0 0.0
      %1526 = vmatpush1.msra.mxu0 0.0
      %1527 = vmatprep.subr.mxu0 0.0
      %1528 = vmatpush1.msra.mxu0 0.0
      %1529 = vmatprep.subr.mxu0 0.0
      %1530 = vmatpush1.msra.mxu0 0.0
      %1531 = vmatprep.mubr.f32.mxu0 0.0
      %1532 = vmatmul.mubr.f32.gmra.mrb[0].mxu0 %v937
      %v1533 = vpop.f32.mrb[0].mxu0
      %v1534 = vadd.f32 0.0, %v1533
      %v1535 = vpop.f32.mrb[0].mxu0
      %1536 = vmatprep.mubr.f32.mxu0 0.0
      %1537 = vmatmul.mubr.f32.gmra.mrb[0].mxu0 %v940
      %v1538 = vpop.f32.mrb[0].mxu0
      %v1539 = vadd.f32 0.0, %v1538
      %v1540 = vpop.f32.mrb[0].mxu0
      %1541 = vdwg.mxu0
      %s1542 = scalar_lea.vmem %s261, 32
      %v1543 = vld [vmem:[%s1542] sm:$0xff]
      %v1544 = vld [vmem:[%s1542 + $0x8] sm:$0x3f]
      %v1545 = vmul.f32 %v1543, 0.125
      %v1546 = vmul.f32 %v1544, 0.125
      %v1548 = vsel %vm324, %v1545, 0
      %v1551 = vsel %vm324, %v1546, 0
      %1553 = vmatprep.subr.mxu0 0.0
      %1554 = vmatpush1.msra.mxu0 %v272
      %1555 = vmatprep.subr.mxu0 0.0
      %1556 = vmatpush1.msra.mxu0 %v273
      %1557 = vmatprep.subr.mxu0 0.0
      %1558 = vmatpush1.msra.mxu0 %v274
      %1559 = vmatprep.subr.mxu0 0.0
      %1560 = vmatpush1.msra.mxu0 %v275
      %1561 = vmatprep.subr.mxu0 0.0
      %1562 = vmatpush1.msra.mxu0 %v276
      %1563 = vmatprep.subr.mxu0 0.0
      %1564 = vmatpush1.msra.mxu0 %v277
      %1565 = vmatprep.subr.mxu0 0.0
      %1566 = vmatpush1.msra.mxu0 0.0
      %1567 = vmatprep.subr.mxu0 0.0
      %1568 = vmatpush1.msra.mxu0 0.0
      %1569 = vmatprep.subr.mxu0 0.0
      %1570 = vmatpush1.msra.mxu0 0.0
      %1571 = vmatprep.subr.mxu0 0.0
      %1572 = vmatpush1.msra.mxu0 0.0
      %1573 = vmatprep.subr.mxu0 0.0
      %1574 = vmatpush1.msra.mxu0 0.0
      %1575 = vmatprep.subr.mxu0 0.0
      %1576 = vmatpush1.msra.mxu0 0.0
      %1577 = vmatprep.subr.mxu0 0.0
      %1578 = vmatpush1.msra.mxu0 0.0
      %1579 = vmatprep.subr.mxu0 0.0
      %1580 = vmatpush1.msra.mxu0 0.0
      %1581 = vmatprep.subr.mxu0 0.0
      %1582 = vmatpush1.msra.mxu0 0.0
      %1583 = vmatprep.subr.mxu0 0.0
      %1584 = vmatpush1.msra.mxu0 0.0
      %1585 = vmatprep.subr.mxu0 0.0
      %1586 = vmatpush1.msra.mxu0 0.0
      %1587 = vmatprep.subr.mxu0 0.0
      %1588 = vmatpush1.msra.mxu0 0.0
      %1589 = vmatprep.subr.mxu0 0.0
      %1590 = vmatpush1.msra.mxu0 0.0
      %1591 = vmatprep.subr.mxu0 0.0
      %1592 = vmatpush1.msra.mxu0 0.0
      %1593 = vmatprep.subr.mxu0 0.0
      %1594 = vmatpush1.msra.mxu0 0.0
      %1595 = vmatprep.subr.mxu0 0.0
      %1596 = vmatpush1.msra.mxu0 0.0
      %1597 = vmatprep.subr.mxu0 0.0
      %1598 = vmatpush1.msra.mxu0 0.0
      %1599 = vmatprep.subr.mxu0 0.0
      %1600 = vmatpush1.msra.mxu0 0.0
      %1601 = vmatprep.subr.mxu0 0.0
      %1602 = vmatpush1.msra.mxu0 0.0
      %1603 = vmatprep.subr.mxu0 0.0
      %1604 = vmatpush1.msra.mxu0 0.0
      %1605 = vmatprep.subr.mxu0 0.0
      %1606 = vmatpush1.msra.mxu0 0.0
      %1607 = vmatprep.subr.mxu0 0.0
      %1608 = vmatpush1.msra.mxu0 0.0
      %1609 = vmatprep.subr.mxu0 0.0
      %1610 = vmatpush1.msra.mxu0 0.0
      %1611 = vmatprep.subr.mxu0 0.0
      %1612 = vmatpush1.msra.mxu0 0.0
      %1613 = vmatprep.subr.mxu0 0.0
      %1614 = vmatpush1.msra.mxu0 0.0
      %1615 = vmatprep.subr.mxu0 0.0
      %1616 = vmatpush1.msra.mxu0 0.0
      %1617 = vmatprep.mubr.f32.mxu0 0.0
      %1618 = vmatmul.mubr.f32.gmra.mrb[0].mxu0 %v1548
      %v1619 = vpop.f32.mrb[0].mxu0
      %v1620 = vadd.f32 0.0, %v1619
      %v1621 = vpop.f32.mrb[0].mxu0
      %1622 = vmatprep.mubr.f32.mxu0 0.0
      %1623 = vmatmul.mubr.f32.gmra.mrb[0].mxu0 %v1551
      %v1624 = vpop.f32.mrb[0].mxu0
      %v1625 = vadd.f32 0.0, %v1624
      %v1626 = vpop.f32.mrb[0].mxu0
      %1627 = vdwg.mxu0
      %1628 = vmatprep.subr.mxu0 0.0
      %1629 = vmatpush1.msra.mxu0 %v278
      %1630 = vmatprep.subr.mxu0 0.0
      %1631 = vmatpush1.msra.mxu0 %v279
      %1632 = vmatprep.subr.mxu0 0.0
      %1633 = vmatpush1.msra.mxu0 %v280
      %1634 = vmatprep.subr.mxu0 0.0
      %1635 = vmatpush1.msra.mxu0 %v281
      %1636 = vmatprep.subr.mxu0 0.0
      %1637 = vmatpush1.msra.mxu0 %v282
      %1638 = vmatprep.subr.mxu0 0.0
      %1639 = vmatpush1.msra.mxu0 %v283
      %1640 = vmatprep.subr.mxu0 0.0
      %1641 = vmatpush1.msra.mxu0 0.0
      %1642 = vmatprep.subr.mxu0 0.0
      %1643 = vmatpush1.msra.mxu0 0.0
      %1644 = vmatprep.subr.mxu0 0.0
      %1645 = vmatpush1.msra.mxu0 0.0
      %1646 = vmatprep.subr.mxu0 0.0
      %1647 = vmatpush1.msra.mxu0 0.0
      %1648 = vmatprep.subr.mxu0 0.0
      %1649 = vmatpush1.msra.mxu0 0.0
      %1650 = vmatprep.subr.mxu0 0.0
      %1651 = vmatpush1.msra.mxu0 0.0
      %1652 = vmatprep.subr.mxu0 0.0
      %1653 = vmatpush1.msra.mxu0 0.0
      %1654 = vmatprep.subr.mxu0 0.0
      %1655 = vmatpush1.msra.mxu0 0.0
      %1656 = vmatprep.subr.mxu0 0.0
      %1657 = vmatpush1.msra.mxu0 0.0
      %1658 = vmatprep.subr.mxu0 0.0
      %1659 = vmatpush1.msra.mxu0 0.0
      %1660 = vmatprep.subr.mxu0 0.0
      %1661 = vmatpush1.msra.mxu0 0.0
      %1662 = vmatprep.subr.mxu0 0.0
      %1663 = vmatpush1.msra.mxu0 0.0
      %1664 = vmatprep.subr.mxu0 0.0
      %1665 = vmatpush1.msra.mxu0 0.0
      %1666 = vmatprep.subr.mxu0 0.0
      %1667 = vmatpush1.msra.mxu0 0.0
      %1668 = vmatprep.subr.mxu0 0.0
      %1669 = vmatpush1.msra.mxu0 0.0
      %1670 = vmatprep.subr.mxu0 0.0
      %1671 = vmatpush1.msra.mxu0 0.0
      %1672 = vmatprep.subr.mxu0 0.0
      %1673 = vmatpush1.msra.mxu0 0.0
      %1674 = vmatprep.subr.mxu0 0.0
      %1675 = vmatpush1.msra.mxu0 0.0
      %1676 = vmatprep.subr.mxu0 0.0
      %1677 = vmatpush1.msra.mxu0 0.0
      %1678 = vmatprep.subr.mxu0 0.0
      %1679 = vmatpush1.msra.mxu0 0.0
      %1680 = vmatprep.subr.mxu0 0.0
      %1681 = vmatpush1.msra.mxu0 0.0
      %1682 = vmatprep.subr.mxu0 0.0
      %1683 = vmatpush1.msra.mxu0 0.0
      %1684 = vmatprep.subr.mxu0 0.0
      %1685 = vmatpush1.msra.mxu0 0.0
      %1686 = vmatprep.subr.mxu0 0.0
      %1687 = vmatpush1.msra.mxu0 0.0
      %1688 = vmatprep.subr.mxu0 0.0
      %1689 = vmatpush1.msra.mxu0 0.0
      %1690 = vmatprep.subr.mxu0 0.0
      %1691 = vmatpush1.msra.mxu0 0.0
      %1692 = vmatprep.mubr.f32.mxu0 0.0
      %1693 = vmatmul.mubr.f32.gmra.mrb[0].mxu0 %v1548
      %v1694 = vpop.f32.mrb[0].mxu0
      %v1695 = vadd.f32 0.0, %v1694
      %v1696 = vpop.f32.mrb[0].mxu0
      %1697 = vmatprep.mubr.f32.mxu0 0.0
      %1698 = vmatmul.mubr.f32.gmra.mrb[0].mxu0 %v1551
      %v1699 = vpop.f32.mrb[0].mxu0
      %v1700 = vadd.f32 0.0, %v1699
      %v1701 = vpop.f32.mrb[0].mxu0
      %1702 = vdwg.mxu0
      %1703 = vmatprep.subr.mxu0 0.0
      %1704 = vmatpush1.msra.mxu0 %v284
      %1705 = vmatprep.subr.mxu0 0.0
      %1706 = vmatpush1.msra.mxu0 %v285
      %1707 = vmatprep.subr.mxu0 0.0
      %1708 = vmatpush1.msra.mxu0 %v286
      %1709 = vmatprep.subr.mxu0 0.0
      %1710 = vmatpush1.msra.mxu0 %v287
      %1711 = vmatprep.subr.mxu0 0.0
      %1712 = vmatpush1.msra.mxu0 %v288
      %1713 = vmatprep.subr.mxu0 0.0
      %1714 = vmatpush1.msra.mxu0 %v289
      %1715 = vmatprep.subr.mxu0 0.0
      %1716 = vmatpush1.msra.mxu0 0.0
      %1717 = vmatprep.subr.mxu0 0.0
      %1718 = vmatpush1.msra.mxu0 0.0
      %1719 = vmatprep.subr.mxu0 0.0
      %1720 = vmatpush1.msra.mxu0 0.0
      %1721 = vmatprep.subr.mxu0 0.0
      %1722 = vmatpush1.msra.mxu0 0.0
      %1723 = vmatprep.subr.mxu0 0.0
      %1724 = vmatpush1.msra.mxu0 0.0
      %1725 = vmatprep.subr.mxu0 0.0
      %1726 = vmatpush1.msra.mxu0 0.0
      %1727 = vmatprep.subr.mxu0 0.0
      %1728 = vmatpush1.msra.mxu0 0.0
      %1729 = vmatprep.subr.mxu0 0.0
      %1730 = vmatpush1.msra.mxu0 0.0
      %1731 = vmatprep.subr.mxu0 0.0
      %1732 = vmatpush1.msra.mxu0 0.0
      %1733 = vmatprep.subr.mxu0 0.0
      %1734 = vmatpush1.msra.mxu0 0.0
      %1735 = vmatprep.subr.mxu0 0.0
      %1736 = vmatpush1.msra.mxu0 0.0
      %1737 = vmatprep.subr.mxu0 0.0
      %1738 = vmatpush1.msra.mxu0 0.0
      %1739 = vmatprep.subr.mxu0 0.0
      %1740 = vmatpush1.msra.mxu0 0.0
      %1741 = vmatprep.subr.mxu0 0.0
      %1742 = vmatpush1.msra.mxu0 0.0
      %1743 = vmatprep.subr.mxu0 0.0
      %1744 = vmatpush1.msra.mxu0 0.0
      %1745 = vmatprep.subr.mxu0 0.0
      %1746 = vmatpush1.msra.mxu0 0.0
      %1747 = vmatprep.subr.mxu0 0.0
      %1748 = vmatpush1.msra.mxu0 0.0
      %1749 = vmatprep.subr.mxu0 0.0
      %1750 = vmatpush1.msra.mxu0 0.0
      %1751 = vmatprep.subr.mxu0 0.0
      %1752 = vmatpush1.msra.mxu0 0.0
      %1753 = vmatprep.subr.mxu0 0.0
      %1754 = vmatpush1.msra.mxu0 0.0
      %1755 = vmatprep.subr.mxu0 0.0
      %1756 = vmatpush1.msra.mxu0 0.0
      %1757 = vmatprep.subr.mxu0 0.0
      %1758 = vmatpush1.msra.mxu0 0.0
      %1759 = vmatprep.subr.mxu0 0.0
      %1760 = vmatpush1.msra.mxu0 0.0
      %1761 = vmatprep.subr.mxu0 0.0
      %1762 = vmatpush1.msra.mxu0 0.0
      %1763 = vmatprep.subr.mxu0 0.0
      %1764 = vmatpush1.msra.mxu0 0.0
      %1765 = vmatprep.subr.mxu0 0.0
      %1766 = vmatpush1.msra.mxu0 0.0
      %1767 = vmatprep.mubr.f32.mxu0 0.0
      %1768 = vmatmul.mubr.f32.gmra.mrb[0].mxu0 %v1548
      %v1769 = vpop.f32.mrb[0].mxu0
      %v1770 = vadd.f32 0.0, %v1769
      %v1771 = vpop.f32.mrb[0].mxu0
      %1772 = vmatprep.mubr.f32.mxu0 0.0
      %1773 = vmatmul.mubr.f32.gmra.mrb[0].mxu0 %v1551
      %v1774 = vpop.f32.mrb[0].mxu0
      %v1775 = vadd.f32 0.0, %v1774
      %v1776 = vpop.f32.mrb[0].mxu0
      %1777 = vdwg.mxu0
      %1778 = vmatprep.subr.mxu0 0.0
      %1779 = vmatpush1.msra.mxu0 %v290
      %1780 = vmatprep.subr.mxu0 0.0
      %1781 = vmatpush1.msra.mxu0 %v291
      %1782 = vmatprep.subr.mxu0 0.0
      %1783 = vmatpush1.msra.mxu0 %v292
      %1784 = vmatprep.subr.mxu0 0.0
      %1785 = vmatpush1.msra.mxu0 %v293
      %1786 = vmatprep.subr.mxu0 0.0
      %1787 = vmatpush1.msra.mxu0 %v294
      %1788 = vmatprep.subr.mxu0 0.0
      %1789 = vmatpush1.msra.mxu0 %v295
      %1790 = vmatprep.subr.mxu0 0.0
      %1791 = vmatpush1.msra.mxu0 0.0
      %1792 = vmatprep.subr.mxu0 0.0
      %1793 = vmatpush1.msra.mxu0 0.0
      %1794 = vmatprep.subr.mxu0 0.0
      %1795 = vmatpush1.msra.mxu0 0.0
      %1796 = vmatprep.subr.mxu0 0.0
      %1797 = vmatpush1.msra.mxu0 0.0
      %1798 = vmatprep.subr.mxu0 0.0
      %1799 = vmatpush1.msra.mxu0 0.0
      %1800 = vmatprep.subr.mxu0 0.0
      %1801 = vmatpush1.msra.mxu0 0.0
      %1802 = vmatprep.subr.mxu0 0.0
      %1803 = vmatpush1.msra.mxu0 0.0
      %1804 = vmatprep.subr.mxu0 0.0
      %1805 = vmatpush1.msra.mxu0 0.0
      %1806 = vmatprep.subr.mxu0 0.0
      %1807 = vmatpush1.msra.mxu0 0.0
      %1808 = vmatprep.subr.mxu0 0.0
      %1809 = vmatpush1.msra.mxu0 0.0
      %1810 = vmatprep.subr.mxu0 0.0
      %1811 = vmatpush1.msra.mxu0 0.0
      %1812 = vmatprep.subr.mxu0 0.0
      %1813 = vmatpush1.msra.mxu0 0.0
      %1814 = vmatprep.subr.mxu0 0.0
      %1815 = vmatpush1.msra.mxu0 0.0
      %1816 = vmatprep.subr.mxu0 0.0
      %1817 = vmatpush1.msra.mxu0 0.0
      %1818 = vmatprep.subr.mxu0 0.0
      %1819 = vmatpush1.msra.mxu0 0.0
      %1820 = vmatprep.subr.mxu0 0.0
      %1821 = vmatpush1.msra.mxu0 0.0
      %1822 = vmatprep.subr.mxu0 0.0
      %1823 = vmatpush1.msra.mxu0 0.0
      %1824 = vmatprep.subr.mxu0 0.0
      %1825 = vmatpush1.msra.mxu0 0.0
      %1826 = vmatprep.subr.mxu0 0.0
      %1827 = vmatpush1.msra.mxu0 0.0
      %1828 = vmatprep.subr.mxu0 0.0
      %1829 = vmatpush1.msra.mxu0 0.0
      %1830 = vmatprep.subr.mxu0 0.0
      %1831 = vmatpush1.msra.mxu0 0.0
      %1832 = vmatprep.subr.mxu0 0.0
      %1833 = vmatpush1.msra.mxu0 0.0
      %1834 = vmatprep.subr.mxu0 0.0
      %1835 = vmatpush1.msra.mxu0 0.0
      %1836 = vmatprep.subr.mxu0 0.0
      %1837 = vmatpush1.msra.mxu0 0.0
      %1838 = vmatprep.subr.mxu0 0.0
      %1839 = vmatpush1.msra.mxu0 0.0
      %1840 = vmatprep.subr.mxu0 0.0
      %1841 = vmatpush1.msra.mxu0 0.0
      %1842 = vmatprep.mubr.f32.mxu0 0.0
      %1843 = vmatmul.mubr.f32.gmra.mrb[0].mxu0 %v1548
      %v1844 = vpop.f32.mrb[0].mxu0
      %v1845 = vadd.f32 0.0, %v1844
      %v1846 = vpop.f32.mrb[0].mxu0
      %1847 = vmatprep.mubr.f32.mxu0 0.0
      %1848 = vmatmul.mubr.f32.gmra.mrb[0].mxu0 %v1551
      %v1849 = vpop.f32.mrb[0].mxu0
      %v1850 = vadd.f32 0.0, %v1849
      %v1851 = vpop.f32.mrb[0].mxu0
      %1852 = vdwg.mxu0
      %1853 = vmatprep.subr.mxu0 0.0
      %1854 = vmatpush1.msra.mxu0 %v296
      %1855 = vmatprep.subr.mxu0 0.0
      %1856 = vmatpush1.msra.mxu0 %v297
      %1857 = vmatprep.subr.mxu0 0.0
      %1858 = vmatpush1.msra.mxu0 %v298
      %1859 = vmatprep.subr.mxu0 0.0
      %1860 = vmatpush1.msra.mxu0 %v299
      %1861 = vmatprep.subr.mxu0 0.0
      %1862 = vmatpush1.msra.mxu0 %v300
      %1863 = vmatprep.subr.mxu0 0.0
      %1864 = vmatpush1.msra.mxu0 %v301
      %1865 = vmatprep.subr.mxu0 0.0
      %1866 = vmatpush1.msra.mxu0 0.0
      %1867 = vmatprep.subr.mxu0 0.0
      %1868 = vmatpush1.msra.mxu0 0.0
      %1869 = vmatprep.subr.mxu0 0.0
      %1870 = vmatpush1.msra.mxu0 0.0
      %1871 = vmatprep.subr.mxu0 0.0
      %1872 = vmatpush1.msra.mxu0 0.0
      %1873 = vmatprep.subr.mxu0 0.0
      %1874 = vmatpush1.msra.mxu0 0.0
      %1875 = vmatprep.subr.mxu0 0.0
      %1876 = vmatpush1.msra.mxu0 0.0
      %1877 = vmatprep.subr.mxu0 0.0
      %1878 = vmatpush1.msra.mxu0 0.0
      %1879 = vmatprep.subr.mxu0 0.0
      %1880 = vmatpush1.msra.mxu0 0.0
      %1881 = vmatprep.subr.mxu0 0.0
      %1882 = vmatpush1.msra.mxu0 0.0
      %1883 = vmatprep.subr.mxu0 0.0
      %1884 = vmatpush1.msra.mxu0 0.0
      %1885 = vmatprep.subr.mxu0 0.0
      %1886 = vmatpush1.msra.mxu0 0.0
      %1887 = vmatprep.subr.mxu0 0.0
      %1888 = vmatpush1.msra.mxu0 0.0
      %1889 = vmatprep.subr.mxu0 0.0
      %1890 = vmatpush1.msra.mxu0 0.0
      %1891 = vmatprep.subr.mxu0 0.0
      %1892 = vmatpush1.msra.mxu0 0.0
      %1893 = vmatprep.subr.mxu0 0.0
      %1894 = vmatpush1.msra.mxu0 0.0
      %1895 = vmatprep.subr.mxu0 0.0
      %1896 = vmatpush1.msra.mxu0 0.0
      %1897 = vmatprep.subr.mxu0 0.0
      %1898 = vmatpush1.msra.mxu0 0.0
      %1899 = vmatprep.subr.mxu0 0.0
      %1900 = vmatpush1.msra.mxu0 0.0
      %1901 = vmatprep.subr.mxu0 0.0
      %1902 = vmatpush1.msra.mxu0 0.0
      %1903 = vmatprep.subr.mxu0 0.0
      %1904 = vmatpush1.msra.mxu0 0.0
      %1905 = vmatprep.subr.mxu0 0.0
      %1906 = vmatpush1.msra.mxu0 0.0
      %1907 = vmatprep.subr.mxu0 0.0
      %1908 = vmatpush1.msra.mxu0 0.0
      %1909 = vmatprep.subr.mxu0 0.0
      %1910 = vmatpush1.msra.mxu0 0.0
      %1911 = vmatprep.subr.mxu0 0.0
      %1912 = vmatpush1.msra.mxu0 0.0
      %1913 = vmatprep.subr.mxu0 0.0
      %1914 = vmatpush1.msra.mxu0 0.0
      %1915 = vmatprep.subr.mxu0 0.0
      %1916 = vmatpush1.msra.mxu0 0.0
      %1917 = vmatprep.mubr.f32.mxu0 0.0
      %1918 = vmatmul.mubr.f32.gmra.mrb[0].mxu0 %v1548
      %v1919 = vpop.f32.mrb[0].mxu0
      %v1920 = vadd.f32 0.0, %v1919
      %v1921 = vpop.f32.mrb[0].mxu0
      %1922 = vmatprep.mubr.f32.mxu0 0.0
      %1923 = vmatmul.mubr.f32.gmra.mrb[0].mxu0 %v1551
      %v1924 = vpop.f32.mrb[0].mxu0
      %v1925 = vadd.f32 0.0, %v1924
      %v1926 = vpop.f32.mrb[0].mxu0
      %1927 = vdwg.mxu0
      %1928 = vmatprep.subr.mxu0 0.0
      %1929 = vmatpush1.msra.mxu0 %v302
      %1930 = vmatprep.subr.mxu0 0.0
      %1931 = vmatpush1.msra.mxu0 %v303
      %1932 = vmatprep.subr.mxu0 0.0
      %1933 = vmatpush1.msra.mxu0 %v304
      %1934 = vmatprep.subr.mxu0 0.0
      %1935 = vmatpush1.msra.mxu0 %v305
      %1936 = vmatprep.subr.mxu0 0.0
      %1937 = vmatpush1.msra.mxu0 %v306
      %1938 = vmatprep.subr.mxu0 0.0
      %1939 = vmatpush1.msra.mxu0 %v307
      %1940 = vmatprep.subr.mxu0 0.0
      %1941 = vmatpush1.msra.mxu0 0.0
      %1942 = vmatprep.subr.mxu0 0.0
      %1943 = vmatpush1.msra.mxu0 0.0
      %1944 = vmatprep.subr.mxu0 0.0
      %1945 = vmatpush1.msra.mxu0 0.0
      %1946 = vmatprep.subr.mxu0 0.0
      %1947 = vmatpush1.msra.mxu0 0.0
      %1948 = vmatprep.subr.mxu0 0.0
      %1949 = vmatpush1.msra.mxu0 0.0
      %1950 = vmatprep.subr.mxu0 0.0
      %1951 = vmatpush1.msra.mxu0 0.0
      %1952 = vmatprep.subr.mxu0 0.0
      %1953 = vmatpush1.msra.mxu0 0.0
      %1954 = vmatprep.subr.mxu0 0.0
      %1955 = vmatpush1.msra.mxu0 0.0
      %1956 = vmatprep.subr.mxu0 0.0
      %1957 = vmatpush1.msra.mxu0 0.0
      %1958 = vmatprep.subr.mxu0 0.0
      %1959 = vmatpush1.msra.mxu0 0.0
      %1960 = vmatprep.subr.mxu0 0.0
      %1961 = vmatpush1.msra.mxu0 0.0
      %1962 = vmatprep.subr.mxu0 0.0
      %1963 = vmatpush1.msra.mxu0 0.0
      %1964 = vmatprep.subr.mxu0 0.0
      %1965 = vmatpush1.msra.mxu0 0.0
      %1966 = vmatprep.subr.mxu0 0.0
      %1967 = vmatpush1.msra.mxu0 0.0
      %1968 = vmatprep.subr.mxu0 0.0
      %1969 = vmatpush1.msra.mxu0 0.0
      %1970 = vmatprep.subr.mxu0 0.0
      %1971 = vmatpush1.msra.mxu0 0.0
      %1972 = vmatprep.subr.mxu0 0.0
      %1973 = vmatpush1.msra.mxu0 0.0
      %1974 = vmatprep.subr.mxu0 0.0
      %1975 = vmatpush1.msra.mxu0 0.0
      %1976 = vmatprep.subr.mxu0 0.0
      %1977 = vmatpush1.msra.mxu0 0.0
      %1978 = vmatprep.subr.mxu0 0.0
      %1979 = vmatpush1.msra.mxu0 0.0
      %1980 = vmatprep.subr.mxu0 0.0
      %1981 = vmatpush1.msra.mxu0 0.0
      %1982 = vmatprep.subr.mxu0 0.0
      %1983 = vmatpush1.msra.mxu0 0.0
      %1984 = vmatprep.subr.mxu0 0.0
      %1985 = vmatpush1.msra.mxu0 0.0
      %1986 = vmatprep.subr.mxu0 0.0
      %1987 = vmatpush1.msra.mxu0 0.0
      %1988 = vmatprep.subr.mxu0 0.0
      %1989 = vmatpush1.msra.mxu0 0.0
      %1990 = vmatprep.subr.mxu0 0.0
      %1991 = vmatpush1.msra.mxu0 0.0
      %1992 = vmatprep.mubr.f32.mxu0 0.0
      %1993 = vmatmul.mubr.f32.gmra.mrb[0].mxu0 %v1548
      %v1994 = vpop.f32.mrb[0].mxu0
      %v1995 = vadd.f32 0.0, %v1994
      %v1996 = vpop.f32.mrb[0].mxu0
      %1997 = vmatprep.mubr.f32.mxu0 0.0
      %1998 = vmatmul.mubr.f32.gmra.mrb[0].mxu0 %v1551
      %v1999 = vpop.f32.mrb[0].mxu0
      %v2000 = vadd.f32 0.0, %v1999
      %v2001 = vpop.f32.mrb[0].mxu0
      %2002 = vdwg.mxu0
      %2003 = vmatprep.subr.mxu0 0.0
      %2004 = vmatpush1.msra.mxu0 %v308
      %2005 = vmatprep.subr.mxu0 0.0
      %2006 = vmatpush1.msra.mxu0 %v309
      %2007 = vmatprep.subr.mxu0 0.0
      %2008 = vmatpush1.msra.mxu0 %v310
      %2009 = vmatprep.subr.mxu0 0.0
      %2010 = vmatpush1.msra.mxu0 %v311
      %2011 = vmatprep.subr.mxu0 0.0
      %2012 = vmatpush1.msra.mxu0 %v312
      %2013 = vmatprep.subr.mxu0 0.0
      %2014 = vmatpush1.msra.mxu0 %v313
      %2015 = vmatprep.subr.mxu0 0.0
      %2016 = vmatpush1.msra.mxu0 0.0
      %2017 = vmatprep.subr.mxu0 0.0
      %2018 = vmatpush1.msra.mxu0 0.0
      %2019 = vmatprep.subr.mxu0 0.0
      %2020 = vmatpush1.msra.mxu0 0.0
      %2021 = vmatprep.subr.mxu0 0.0
      %2022 = vmatpush1.msra.mxu0 0.0
      %2023 = vmatprep.subr.mxu0 0.0
      %2024 = vmatpush1.msra.mxu0 0.0
      %2025 = vmatprep.subr.mxu0 0.0
      %2026 = vmatpush1.msra.mxu0 0.0
      %2027 = vmatprep.subr.mxu0 0.0
      %2028 = vmatpush1.msra.mxu0 0.0
      %2029 = vmatprep.subr.mxu0 0.0
      %2030 = vmatpush1.msra.mxu0 0.0
      %2031 = vmatprep.subr.mxu0 0.0
      %2032 = vmatpush1.msra.mxu0 0.0
      %2033 = vmatprep.subr.mxu0 0.0
      %2034 = vmatpush1.msra.mxu0 0.0
      %2035 = vmatprep.subr.mxu0 0.0
      %2036 = vmatpush1.msra.mxu0 0.0
      %2037 = vmatprep.subr.mxu0 0.0
      %2038 = vmatpush1.msra.mxu0 0.0
      %2039 = vmatprep.subr.mxu0 0.0
      %2040 = vmatpush1.msra.mxu0 0.0
      %2041 = vmatprep.subr.mxu0 0.0
      %2042 = vmatpush1.msra.mxu0 0.0
      %2043 = vmatprep.subr.mxu0 0.0
      %2044 = vmatpush1.msra.mxu0 0.0
      %2045 = vmatprep.subr.mxu0 0.0
      %2046 = vmatpush1.msra.mxu0 0.0
      %2047 = vmatprep.subr.mxu0 0.0
      %2048 = vmatpush1.msra.mxu0 0.0
      %2049 = vmatprep.subr.mxu0 0.0
      %2050 = vmatpush1.msra.mxu0 0.0
      %2051 = vmatprep.subr.mxu0 0.0
      %2052 = vmatpush1.msra.mxu0 0.0
      %2053 = vmatprep.subr.mxu0 0.0
      %2054 = vmatpush1.msra.mxu0 0.0
      %2055 = vmatprep.subr.mxu0 0.0
      %2056 = vmatpush1.msra.mxu0 0.0
      %2057 = vmatprep.subr.mxu0 0.0
      %2058 = vmatpush1.msra.mxu0 0.0
      %2059 = vmatprep.subr.mxu0 0.0
      %2060 = vmatpush1.msra.mxu0 0.0
      %2061 = vmatprep.subr.mxu0 0.0
      %2062 = vmatpush1.msra.mxu0 0.0
      %2063 = vmatprep.subr.mxu0 0.0
      %2064 = vmatpush1.msra.mxu0 0.0
      %2065 = vmatprep.subr.mxu0 0.0
      %2066 = vmatpush1.msra.mxu0 0.0
      %2067 = vmatprep.mubr.f32.mxu0 0.0
      %2068 = vmatmul.mubr.f32.gmra.mrb[0].mxu0 %v1548
      %v2069 = vpop.f32.mrb[0].mxu0
      %v2070 = vadd.f32 0.0, %v2069
      %v2071 = vpop.f32.mrb[0].mxu0
      %2072 = vmatprep.mubr.f32.mxu0 0.0
      %2073 = vmatmul.mubr.f32.gmra.mrb[0].mxu0 %v1551
      %v2074 = vpop.f32.mrb[0].mxu0
      %v2075 = vadd.f32 0.0, %v2074
      %v2076 = vpop.f32.mrb[0].mxu0
      %2077 = vdwg.mxu0
      %2078 = vmatprep.subr.mxu0 0.0
      %2079 = vmatpush1.msra.mxu0 %v314
      %2080 = vmatprep.subr.mxu0 0.0
      %2081 = vmatpush1.msra.mxu0 %v315
      %2082 = vmatprep.subr.mxu0 0.0
      %2083 = vmatpush1.msra.mxu0 %v316
      %2084 = vmatprep.subr.mxu0 0.0
      %2085 = vmatpush1.msra.mxu0 %v317
      %2086 = vmatprep.subr.mxu0 0.0
      %2087 = vmatpush1.msra.mxu0 %v318
      %2088 = vmatprep.subr.mxu0 0.0
      %2089 = vmatpush1.msra.mxu0 %v319
      %2090 = vmatprep.subr.mxu0 0.0
      %2091 = vmatpush1.msra.mxu0 0.0
      %2092 = vmatprep.subr.mxu0 0.0
      %2093 = vmatpush1.msra.mxu0 0.0
      %2094 = vmatprep.subr.mxu0 0.0
      %2095 = vmatpush1.msra.mxu0 0.0
      %2096 = vmatprep.subr.mxu0 0.0
      %2097 = vmatpush1.msra.mxu0 0.0
      %2098 = vmatprep.subr.mxu0 0.0
      %2099 = vmatpush1.msra.mxu0 0.0
      %2100 = vmatprep.subr.mxu0 0.0
      %2101 = vmatpush1.msra.mxu0 0.0
      %2102 = vmatprep.subr.mxu0 0.0
      %2103 = vmatpush1.msra.mxu0 0.0
      %2104 = vmatprep.subr.mxu0 0.0
      %2105 = vmatpush1.msra.mxu0 0.0
      %2106 = vmatprep.subr.mxu0 0.0
      %2107 = vmatpush1.msra.mxu0 0.0
      %2108 = vmatprep.subr.mxu0 0.0
      %2109 = vmatpush1.msra.mxu0 0.0
      %2110 = vmatprep.subr.mxu0 0.0
      %2111 = vmatpush1.msra.mxu0 0.0
      %2112 = vmatprep.subr.mxu0 0.0
      %2113 = vmatpush1.msra.mxu0 0.0
      %2114 = vmatprep.subr.mxu0 0.0
      %2115 = vmatpush1.msra.mxu0 0.0
      %2116 = vmatprep.subr.mxu0 0.0
      %2117 = vmatpush1.msra.mxu0 0.0
      %2118 = vmatprep.subr.mxu0 0.0
      %2119 = vmatpush1.msra.mxu0 0.0
      %2120 = vmatprep.subr.mxu0 0.0
      %2121 = vmatpush1.msra.mxu0 0.0
      %2122 = vmatprep.subr.mxu0 0.0
      %2123 = vmatpush1.msra.mxu0 0.0
      %2124 = vmatprep.subr.mxu0 0.0
      %2125 = vmatpush1.msra.mxu0 0.0
      %2126 = vmatprep.subr.mxu0 0.0
      %2127 = vmatpush1.msra.mxu0 0.0
      %2128 = vmatprep.subr.mxu0 0.0
      %2129 = vmatpush1.msra.mxu0 0.0
      %2130 = vmatprep.subr.mxu0 0.0
      %2131 = vmatpush1.msra.mxu0 0.0
      %2132 = vmatprep.subr.mxu0 0.0
      %2133 = vmatpush1.msra.mxu0 0.0
      %2134 = vmatprep.subr.mxu0 0.0
      %2135 = vmatpush1.msra.mxu0 0.0
      %2136 = vmatprep.subr.mxu0 0.0
      %2137 = vmatpush1.msra.mxu0 0.0
      %2138 = vmatprep.subr.mxu0 0.0
      %2139 = vmatpush1.msra.mxu0 0.0
      %2140 = vmatprep.subr.mxu0 0.0
      %2141 = vmatpush1.msra.mxu0 0.0
      %2142 = vmatprep.mubr.f32.mxu0 0.0
      %2143 = vmatmul.mubr.f32.gmra.mrb[0].mxu0 %v1548
      %v2144 = vpop.f32.mrb[0].mxu0
      %v2145 = vadd.f32 0.0, %v2144
      %v2146 = vpop.f32.mrb[0].mxu0
      %2147 = vmatprep.mubr.f32.mxu0 0.0
      %2148 = vmatmul.mubr.f32.gmra.mrb[0].mxu0 %v1551
      %v2149 = vpop.f32.mrb[0].mxu0
      %v2150 = vadd.f32 0.0, %v2149
      %v2151 = vpop.f32.mrb[0].mxu0
      %2152 = vdwg.mxu0
      %s2153 = scalar_lea.vmem %s261, 48
      %v2154 = vld [vmem:[%s2153] sm:$0xff]
      %v2155 = vld [vmem:[%s2153 + $0x8] sm:$0x3f]
      %v2156 = vmul.f32 %v2154, 0.125
      %v2157 = vmul.f32 %v2155, 0.125
      %v2159 = vsel %vm324, %v2156, 0
      %v2162 = vsel %vm324, %v2157, 0
      %2164 = vmatprep.subr.mxu0 0.0
      %2165 = vmatpush1.msra.mxu0 %v272
      %2166 = vmatprep.subr.mxu0 0.0
      %2167 = vmatpush1.msra.mxu0 %v273
      %2168 = vmatprep.subr.mxu0 0.0
      %2169 = vmatpush1.msra.mxu0 %v274
      %2170 = vmatprep.subr.mxu0 0.0
      %2171 = vmatpush1.msra.mxu0 %v275
      %2172 = vmatprep.subr.mxu0 0.0
      %2173 = vmatpush1.msra.mxu0 %v276
      %2174 = vmatprep.subr.mxu0 0.0
      %2175 = vmatpush1.msra.mxu0 %v277
      %2176 = vmatprep.subr.mxu0 0.0
      %2177 = vmatpush1.msra.mxu0 0.0
      %2178 = vmatprep.subr.mxu0 0.0
      %2179 = vmatpush1.msra.mxu0 0.0
      %2180 = vmatprep.subr.mxu0 0.0
      %2181 = vmatpush1.msra.mxu0 0.0
      %2182 = vmatprep.subr.mxu0 0.0
      %2183 = vmatpush1.msra.mxu0 0.0
      %2184 = vmatprep.subr.mxu0 0.0
      %2185 = vmatpush1.msra.mxu0 0.0
      %2186 = vmatprep.subr.mxu0 0.0
      %2187 = vmatpush1.msra.mxu0 0.0
      %2188 = vmatprep.subr.mxu0 0.0
      %2189 = vmatpush1.msra.mxu0 0.0
      %2190 = vmatprep.subr.mxu0 0.0
      %2191 = vmatpush1.msra.mxu0 0.0
      %2192 = vmatprep.subr.mxu0 0.0
      %2193 = vmatpush1.msra.mxu0 0.0
      %2194 = vmatprep.subr.mxu0 0.0
      %2195 = vmatpush1.msra.mxu0 0.0
      %2196 = vmatprep.subr.mxu0 0.0
      %2197 = vmatpush1.msra.mxu0 0.0
      %2198 = vmatprep.subr.mxu0 0.0
      %2199 = vmatpush1.msra.mxu0 0.0
      %2200 = vmatprep.subr.mxu0 0.0
      %2201 = vmatpush1.msra.mxu0 0.0
      %2202 = vmatprep.subr.mxu0 0.0
      %2203 = vmatpush1.msra.mxu0 0.0
      %2204 = vmatprep.subr.mxu0 0.0
      %2205 = vmatpush1.msra.mxu0 0.0
      %2206 = vmatprep.subr.mxu0 0.0
      %2207 = vmatpush1.msra.mxu0 0.0
      %2208 = vmatprep.subr.mxu0 0.0
      %2209 = vmatpush1.msra.mxu0 0.0
      %2210 = vmatprep.subr.mxu0 0.0
      %2211 = vmatpush1.msra.mxu0 0.0
      %2212 = vmatprep.subr.mxu0 0.0
      %2213 = vmatpush1.msra.mxu0 0.0
      %2214 = vmatprep.subr.mxu0 0.0
      %2215 = vmatpush1.msra.mxu0 0.0
      %2216 = vmatprep.subr.mxu0 0.0
      %2217 = vmatpush1.msra.mxu0 0.0
      %2218 = vmatprep.subr.mxu0 0.0
      %2219 = vmatpush1.msra.mxu0 0.0
      %2220 = vmatprep.subr.mxu0 0.0
      %2221 = vmatpush1.msra.mxu0 0.0
      %2222 = vmatprep.subr.mxu0 0.0
      %2223 = vmatpush1.msra.mxu0 0.0
      %2224 = vmatprep.subr.mxu0 0.0
      %2225 = vmatpush1.msra.mxu0 0.0
      %2226 = vmatprep.subr.mxu0 0.0
      %2227 = vmatpush1.msra.mxu0 0.0
      %2228 = vmatprep.mubr.f32.mxu0 0.0
      %2229 = vmatmul.mubr.f32.gmra.mrb[0].mxu0 %v2159
      %v2230 = vpop.f32.mrb[0].mxu0
      %v2231 = vadd.f32 0.0, %v2230
      %v2232 = vpop.f32.mrb[0].mxu0
      %2233 = vmatprep.mubr.f32.mxu0 0.0
      %2234 = vmatmul.mubr.f32.gmra.mrb[0].mxu0 %v2162
      %v2235 = vpop.f32.mrb[0].mxu0
      %v2236 = vadd.f32 0.0, %v2235
      %v2237 = vpop.f32.mrb[0].mxu0
      %2238 = vdwg.mxu0
      %2239 = vmatprep.subr.mxu0 0.0
      %2240 = vmatpush1.msra.mxu0 %v278
      %2241 = vmatprep.subr.mxu0 0.0
      %2242 = vmatpush1.msra.mxu0 %v279
      %2243 = vmatprep.subr.mxu0 0.0
      %2244 = vmatpush1.msra.mxu0 %v280
      %2245 = vmatprep.subr.mxu0 0.0
      %2246 = vmatpush1.msra.mxu0 %v281
      %2247 = vmatprep.subr.mxu0 0.0
      %2248 = vmatpush1.msra.mxu0 %v282
      %2249 = vmatprep.subr.mxu0 0.0
      %2250 = vmatpush1.msra.mxu0 %v283
      %2251 = vmatprep.subr.mxu0 0.0
      %2252 = vmatpush1.msra.mxu0 0.0
      %2253 = vmatprep.subr.mxu0 0.0
      %2254 = vmatpush1.msra.mxu0 0.0
      %2255 = vmatprep.subr.mxu0 0.0
      %2256 = vmatpush1.msra.mxu0 0.0
      %2257 = vmatprep.subr.mxu0 0.0
      %2258 = vmatpush1.msra.mxu0 0.0
      %2259 = vmatprep.subr.mxu0 0.0
      %2260 = vmatpush1.msra.mxu0 0.0
      %2261 = vmatprep.subr.mxu0 0.0
      %2262 = vmatpush1.msra.mxu0 0.0
      %2263 = vmatprep.subr.mxu0 0.0
      %2264 = vmatpush1.msra.mxu0 0.0
      %2265 = vmatprep.subr.mxu0 0.0
      %2266 = vmatpush1.msra.mxu0 0.0
      %2267 = vmatprep.subr.mxu0 0.0
      %2268 = vmatpush1.msra.mxu0 0.0
      %2269 = vmatprep.subr.mxu0 0.0
      %2270 = vmatpush1.msra.mxu0 0.0
      %2271 = vmatprep.subr.mxu0 0.0
      %2272 = vmatpush1.msra.mxu0 0.0
      %2273 = vmatprep.subr.mxu0 0.0
      %2274 = vmatpush1.msra.mxu0 0.0
      %2275 = vmatprep.subr.mxu0 0.0
      %2276 = vmatpush1.msra.mxu0 0.0
      %2277 = vmatprep.subr.mxu0 0.0
      %2278 = vmatpush1.msra.mxu0 0.0
      %2279 = vmatprep.subr.mxu0 0.0
      %2280 = vmatpush1.msra.mxu0 0.0
      %2281 = vmatprep.subr.mxu0 0.0
      %2282 = vmatpush1.msra.mxu0 0.0
      %2283 = vmatprep.subr.mxu0 0.0
      %2284 = vmatpush1.msra.mxu0 0.0
      %2285 = vmatprep.subr.mxu0 0.0
      %2286 = vmatpush1.msra.mxu0 0.0
      %2287 = vmatprep.subr.mxu0 0.0
      %2288 = vmatpush1.msra.mxu0 0.0
      %2289 = vmatprep.subr.mxu0 0.0
      %2290 = vmatpush1.msra.mxu0 0.0
      %2291 = vmatprep.subr.mxu0 0.0
      %2292 = vmatpush1.msra.mxu0 0.0
      %2293 = vmatprep.subr.mxu0 0.0
      %2294 = vmatpush1.msra.mxu0 0.0
      %2295 = vmatprep.subr.mxu0 0.0
      %2296 = vmatpush1.msra.mxu0 0.0
      %2297 = vmatprep.subr.mxu0 0.0
      %2298 = vmatpush1.msra.mxu0 0.0
      %2299 = vmatprep.subr.mxu0 0.0
      %2300 = vmatpush1.msra.mxu0 0.0
      %2301 = vmatprep.subr.mxu0 0.0
      %2302 = vmatpush1.msra.mxu0 0.0
      %2303 = vmatprep.mubr.f32.mxu0 0.0
      %2304 = vmatmul.mubr.f32.gmra.mrb[0].mxu0 %v2159
      %v2305 = vpop.f32.mrb[0].mxu0
      %v2306 = vadd.f32 0.0, %v2305
      %v2307 = vpop.f32.mrb[0].mxu0
      %2308 = vmatprep.mubr.f32.mxu0 0.0
      %2309 = vmatmul.mubr.f32.gmra.mrb[0].mxu0 %v2162
      %v2310 = vpop.f32.mrb[0].mxu0
      %v2311 = vadd.f32 0.0, %v2310
      %v2312 = vpop.f32.mrb[0].mxu0
      %2313 = vdwg.mxu0
      %2314 = vmatprep.subr.mxu0 0.0
      %2315 = vmatpush1.msra.mxu0 %v284
      %2316 = vmatprep.subr.mxu0 0.0
      %2317 = vmatpush1.msra.mxu0 %v285
      %2318 = vmatprep.subr.mxu0 0.0
      %2319 = vmatpush1.msra.mxu0 %v286
      %2320 = vmatprep.subr.mxu0 0.0
      %2321 = vmatpush1.msra.mxu0 %v287
      %2322 = vmatprep.subr.mxu0 0.0
      %2323 = vmatpush1.msra.mxu0 %v288
      %2324 = vmatprep.subr.mxu0 0.0
      %2325 = vmatpush1.msra.mxu0 %v289
      %2326 = vmatprep.subr.mxu0 0.0
      %2327 = vmatpush1.msra.mxu0 0.0
      %2328 = vmatprep.subr.mxu0 0.0
      %2329 = vmatpush1.msra.mxu0 0.0
      %2330 = vmatprep.subr.mxu0 0.0
      %2331 = vmatpush1.msra.mxu0 0.0
      %2332 = vmatprep.subr.mxu0 0.0
      %2333 = vmatpush1.msra.mxu0 0.0
      %2334 = vmatprep.subr.mxu0 0.0
      %2335 = vmatpush1.msra.mxu0 0.0
      %2336 = vmatprep.subr.mxu0 0.0
      %2337 = vmatpush1.msra.mxu0 0.0
      %2338 = vmatprep.subr.mxu0 0.0
      %2339 = vmatpush1.msra.mxu0 0.0
      %2340 = vmatprep.subr.mxu0 0.0
      %2341 = vmatpush1.msra.mxu0 0.0
      %2342 = vmatprep.subr.mxu0 0.0
      %2343 = vmatpush1.msra.mxu0 0.0
      %2344 = vmatprep.subr.mxu0 0.0
      %2345 = vmatpush1.msra.mxu0 0.0
      %2346 = vmatprep.subr.mxu0 0.0
      %2347 = vmatpush1.msra.mxu0 0.0
      %2348 = vmatprep.subr.mxu0 0.0
      %2349 = vmatpush1.msra.mxu0 0.0
      %2350 = vmatprep.subr.mxu0 0.0
      %2351 = vmatpush1.msra.mxu0 0.0
      %2352 = vmatprep.subr.mxu0 0.0
      %2353 = vmatpush1.msra.mxu0 0.0
      %2354 = vmatprep.subr.mxu0 0.0
      %2355 = vmatpush1.msra.mxu0 0.0
      %2356 = vmatprep.subr.mxu0 0.0
      %2357 = vmatpush1.msra.mxu0 0.0
      %2358 = vmatprep.subr.mxu0 0.0
      %2359 = vmatpush1.msra.mxu0 0.0
      %2360 = vmatprep.subr.mxu0 0.0
      %2361 = vmatpush1.msra.mxu0 0.0
      %2362 = vmatprep.subr.mxu0 0.0
      %2363 = vmatpush1.msra.mxu0 0.0
      %2364 = vmatprep.subr.mxu0 0.0
      %2365 = vmatpush1.msra.mxu0 0.0
      %2366 = vmatprep.subr.mxu0 0.0
      %2367 = vmatpush1.msra.mxu0 0.0
      %2368 = vmatprep.subr.mxu0 0.0
      %2369 = vmatpush1.msra.mxu0 0.0
      %2370 = vmatprep.subr.mxu0 0.0
      %2371 = vmatpush1.msra.mxu0 0.0
      %2372 = vmatprep.subr.mxu0 0.0
      %2373 = vmatpush1.msra.mxu0 0.0
      %2374 = vmatprep.subr.mxu0 0.0
      %2375 = vmatpush1.msra.mxu0 0.0
      %2376 = vmatprep.subr.mxu0 0.0
      %2377 = vmatpush1.msra.mxu0 0.0
      %2378 = vmatprep.mubr.f32.mxu0 0.0
      %2379 = vmatmul.mubr.f32.gmra.mrb[0].mxu0 %v2159
      %v2380 = vpop.f32.mrb[0].mxu0
      %v2381 = vadd.f32 0.0, %v2380
      %v2382 = vpop.f32.mrb[0].mxu0
      %2383 = vmatprep.mubr.f32.mxu0 0.0
      %2384 = vmatmul.mubr.f32.gmra.mrb[0].mxu0 %v2162
      %v2385 = vpop.f32.mrb[0].mxu0
      %v2386 = vadd.f32 0.0, %v2385
      %v2387 = vpop.f32.mrb[0].mxu0
      %2388 = vdwg.mxu0
      %2389 = vmatprep.subr.mxu0 0.0
      %2390 = vmatpush1.msra.mxu0 %v290
      %2391 = vmatprep.subr.mxu0 0.0
      %2392 = vmatpush1.msra.mxu0 %v291
      %2393 = vmatprep.subr.mxu0 0.0
      %2394 = vmatpush1.msra.mxu0 %v292
      %2395 = vmatprep.subr.mxu0 0.0
      %2396 = vmatpush1.msra.mxu0 %v293
      %2397 = vmatprep.subr.mxu0 0.0
      %2398 = vmatpush1.msra.mxu0 %v294
      %2399 = vmatprep.subr.mxu0 0.0
      %2400 = vmatpush1.msra.mxu0 %v295
      %2401 = vmatprep.subr.mxu0 0.0
      %2402 = vmatpush1.msra.mxu0 0.0
      %2403 = vmatprep.subr.mxu0 0.0
      %2404 = vmatpush1.msra.mxu0 0.0
      %2405 = vmatprep.subr.mxu0 0.0
      %2406 = vmatpush1.msra.mxu0 0.0
      %2407 = vmatprep.subr.mxu0 0.0
      %2408 = vmatpush1.msra.mxu0 0.0
      %2409 = vmatprep.subr.mxu0 0.0
      %2410 = vmatpush1.msra.mxu0 0.0
      %2411 = vmatprep.subr.mxu0 0.0
      %2412 = vmatpush1.msra.mxu0 0.0
      %2413 = vmatprep.subr.mxu0 0.0
      %2414 = vmatpush1.msra.mxu0 0.0
      %2415 = vmatprep.subr.mxu0 0.0
      %2416 = vmatpush1.msra.mxu0 0.0
      %2417 = vmatprep.subr.mxu0 0.0
      %2418 = vmatpush1.msra.mxu0 0.0
      %2419 = vmatprep.subr.mxu0 0.0
      %2420 = vmatpush1.msra.mxu0 0.0
      %2421 = vmatprep.subr.mxu0 0.0
      %2422 = vmatpush1.msra.mxu0 0.0
      %2423 = vmatprep.subr.mxu0 0.0
      %2424 = vmatpush1.msra.mxu0 0.0
      %2425 = vmatprep.subr.mxu0 0.0
      %2426 = vmatpush1.msra.mxu0 0.0
      %2427 = vmatprep.subr.mxu0 0.0
      %2428 = vmatpush1.msra.mxu0 0.0
      %2429 = vmatprep.subr.mxu0 0.0
      %2430 = vmatpush1.msra.mxu0 0.0
      %2431 = vmatprep.subr.mxu0 0.0
      %2432 = vmatpush1.msra.mxu0 0.0
      %2433 = vmatprep.subr.mxu0 0.0
      %2434 = vmatpush1.msra.mxu0 0.0
      %2435 = vmatprep.subr.mxu0 0.0
      %2436 = vmatpush1.msra.mxu0 0.0
      %2437 = vmatprep.subr.mxu0 0.0
      %2438 = vmatpush1.msra.mxu0 0.0
      %2439 = vmatprep.subr.mxu0 0.0
      %2440 = vmatpush1.msra.mxu0 0.0
      %2441 = vmatprep.subr.mxu0 0.0
      %2442 = vmatpush1.msra.mxu0 0.0
      %2443 = vmatprep.subr.mxu0 0.0
      %2444 = vmatpush1.msra.mxu0 0.0
      %2445 = vmatprep.subr.mxu0 0.0
      %2446 = vmatpush1.msra.mxu0 0.0
      %2447 = vmatprep.subr.mxu0 0.0
      %2448 = vmatpush1.msra.mxu0 0.0
      %2449 = vmatprep.subr.mxu0 0.0
      %2450 = vmatpush1.msra.mxu0 0.0
      %2451 = vmatprep.subr.mxu0 0.0
      %2452 = vmatpush1.msra.mxu0 0.0
      %2453 = vmatprep.mubr.f32.mxu0 0.0
      %2454 = vmatmul.mubr.f32.gmra.mrb[0].mxu0 %v2159
      %v2455 = vpop.f32.mrb[0].mxu0
      %v2456 = vadd.f32 0.0, %v2455
      %v2457 = vpop.f32.mrb[0].mxu0
      %2458 = vmatprep.mubr.f32.mxu0 0.0
      %2459 = vmatmul.mubr.f32.gmra.mrb[0].mxu0 %v2162
      %v2460 = vpop.f32.mrb[0].mxu0
      %v2461 = vadd.f32 0.0, %v2460
      %v2462 = vpop.f32.mrb[0].mxu0
      %2463 = vdwg.mxu0
      %2464 = vmatprep.subr.mxu0 0.0
      %2465 = vmatpush1.msra.mxu0 %v296
      %2466 = vmatprep.subr.mxu0 0.0
      %2467 = vmatpush1.msra.mxu0 %v297
      %2468 = vmatprep.subr.mxu0 0.0
      %2469 = vmatpush1.msra.mxu0 %v298
      %2470 = vmatprep.subr.mxu0 0.0
      %2471 = vmatpush1.msra.mxu0 %v299
      %2472 = vmatprep.subr.mxu0 0.0
      %2473 = vmatpush1.msra.mxu0 %v300
      %2474 = vmatprep.subr.mxu0 0.0
      %2475 = vmatpush1.msra.mxu0 %v301
      %2476 = vmatprep.subr.mxu0 0.0
      %2477 = vmatpush1.msra.mxu0 0.0
      %2478 = vmatprep.subr.mxu0 0.0
      %2479 = vmatpush1.msra.mxu0 0.0
      %2480 = vmatprep.subr.mxu0 0.0
      %2481 = vmatpush1.msra.mxu0 0.0
      %2482 = vmatprep.subr.mxu0 0.0
      %2483 = vmatpush1.msra.mxu0 0.0
      %2484 = vmatprep.subr.mxu0 0.0
      %2485 = vmatpush1.msra.mxu0 0.0
      %2486 = vmatprep.subr.mxu0 0.0
      %2487 = vmatpush1.msra.mxu0 0.0
      %2488 = vmatprep.subr.mxu0 0.0
      %2489 = vmatpush1.msra.mxu0 0.0
      %2490 = vmatprep.subr.mxu0 0.0
      %2491 = vmatpush1.msra.mxu0 0.0
      %2492 = vmatprep.subr.mxu0 0.0
      %2493 = vmatpush1.msra.mxu0 0.0
      %2494 = vmatprep.subr.mxu0 0.0
      %2495 = vmatpush1.msra.mxu0 0.0
      %2496 = vmatprep.subr.mxu0 0.0
      %2497 = vmatpush1.msra.mxu0 0.0
      %2498 = vmatprep.subr.mxu0 0.0
      %2499 = vmatpush1.msra.mxu0 0.0
      %2500 = vmatprep.subr.mxu0 0.0
      %2501 = vmatpush1.msra.mxu0 0.0
      %2502 = vmatprep.subr.mxu0 0.0
      %2503 = vmatpush1.msra.mxu0 0.0
      %2504 = vmatprep.subr.mxu0 0.0
      %2505 = vmatpush1.msra.mxu0 0.0
      %2506 = vmatprep.subr.mxu0 0.0
      %2507 = vmatpush1.msra.mxu0 0.0
      %2508 = vmatprep.subr.mxu0 0.0
      %2509 = vmatpush1.msra.mxu0 0.0
      %2510 = vmatprep.subr.mxu0 0.0
      %2511 = vmatpush1.msra.mxu0 0.0
      %2512 = vmatprep.subr.mxu0 0.0
      %2513 = vmatpush1.msra.mxu0 0.0
      %2514 = vmatprep.subr.mxu0 0.0
      %2515 = vmatpush1.msra.mxu0 0.0
      %2516 = vmatprep.subr.mxu0 0.0
      %2517 = vmatpush1.msra.mxu0 0.0
      %2518 = vmatprep.subr.mxu0 0.0
      %2519 = vmatpush1.msra.mxu0 0.0
      %2520 = vmatprep.subr.mxu0 0.0
      %2521 = vmatpush1.msra.mxu0 0.0
      %2522 = vmatprep.subr.mxu0 0.0
      %2523 = vmatpush1.msra.mxu0 0.0
      %2524 = vmatprep.subr.mxu0 0.0
      %2525 = vmatpush1.msra.mxu0 0.0
      %2526 = vmatprep.subr.mxu0 0.0
      %2527 = vmatpush1.msra.mxu0 0.0
      %2528 = vmatprep.mubr.f32.mxu0 0.0
      %2529 = vmatmul.mubr.f32.gmra.mrb[0].mxu0 %v2159
      %v2530 = vpop.f32.mrb[0].mxu0
      %v2531 = vadd.f32 0.0, %v2530
      %v2532 = vpop.f32.mrb[0].mxu0
      %2533 = vmatprep.mubr.f32.mxu0 0.0
      %2534 = vmatmul.mubr.f32.gmra.mrb[0].mxu0 %v2162
      %v2535 = vpop.f32.mrb[0].mxu0
      %v2536 = vadd.f32 0.0, %v2535
      %v2537 = vpop.f32.mrb[0].mxu0
      %2538 = vdwg.mxu0
      %2539 = vmatprep.subr.mxu0 0.0
      %2540 = vmatpush1.msra.mxu0 %v302
      %2541 = vmatprep.subr.mxu0 0.0
      %2542 = vmatpush1.msra.mxu0 %v303
      %2543 = vmatprep.subr.mxu0 0.0
      %2544 = vmatpush1.msra.mxu0 %v304
      %2545 = vmatprep.subr.mxu0 0.0
      %2546 = vmatpush1.msra.mxu0 %v305
      %2547 = vmatprep.subr.mxu0 0.0
      %2548 = vmatpush1.msra.mxu0 %v306
      %2549 = vmatprep.subr.mxu0 0.0
      %2550 = vmatpush1.msra.mxu0 %v307
      %2551 = vmatprep.subr.mxu0 0.0
      %2552 = vmatpush1.msra.mxu0 0.0
      %2553 = vmatprep.subr.mxu0 0.0
      %2554 = vmatpush1.msra.mxu0 0.0
      %2555 = vmatprep.subr.mxu0 0.0
      %2556 = vmatpush1.msra.mxu0 0.0
      %2557 = vmatprep.subr.mxu0 0.0
      %2558 = vmatpush1.msra.mxu0 0.0
      %2559 = vmatprep.subr.mxu0 0.0
      %2560 = vmatpush1.msra.mxu0 0.0
      %2561 = vmatprep.subr.mxu0 0.0
      %2562 = vmatpush1.msra.mxu0 0.0
      %2563 = vmatprep.subr.mxu0 0.0
      %2564 = vmatpush1.msra.mxu0 0.0
      %2565 = vmatprep.subr.mxu0 0.0
      %2566 = vmatpush1.msra.mxu0 0.0
      %2567 = vmatprep.subr.mxu0 0.0
      %2568 = vmatpush1.msra.mxu0 0.0
      %2569 = vmatprep.subr.mxu0 0.0
      %2570 = vmatpush1.msra.mxu0 0.0
      %2571 = vmatprep.subr.mxu0 0.0
      %2572 = vmatpush1.msra.mxu0 0.0
      %2573 = vmatprep.subr.mxu0 0.0
      %2574 = vmatpush1.msra.mxu0 0.0
      %2575 = vmatprep.subr.mxu0 0.0
      %2576 = vmatpush1.msra.mxu0 0.0
      %2577 = vmatprep.subr.mxu0 0.0
      %2578 = vmatpush1.msra.mxu0 0.0
      %2579 = vmatprep.subr.mxu0 0.0
      %2580 = vmatpush1.msra.mxu0 0.0
      %2581 = vmatprep.subr.mxu0 0.0
      %2582 = vmatpush1.msra.mxu0 0.0
      %2583 = vmatprep.subr.mxu0 0.0
      %2584 = vmatpush1.msra.mxu0 0.0
      %2585 = vmatprep.subr.mxu0 0.0
      %2586 = vmatpush1.msra.mxu0 0.0
      %2587 = vmatprep.subr.mxu0 0.0
      %2588 = vmatpush1.msra.mxu0 0.0
      %2589 = vmatprep.subr.mxu0 0.0
      %2590 = vmatpush1.msra.mxu0 0.0
      %2591 = vmatprep.subr.mxu0 0.0
      %2592 = vmatpush1.msra.mxu0 0.0
      %2593 = vmatprep.subr.mxu0 0.0
      %2594 = vmatpush1.msra.mxu0 0.0
      %2595 = vmatprep.subr.mxu0 0.0
      %2596 = vmatpush1.msra.mxu0 0.0
      %2597 = vmatprep.subr.mxu0 0.0
      %2598 = vmatpush1.msra.mxu0 0.0
      %2599 = vmatprep.subr.mxu0 0.0
      %2600 = vmatpush1.msra.mxu0 0.0
      %2601 = vmatprep.subr.mxu0 0.0
      %2602 = vmatpush1.msra.mxu0 0.0
      %2603 = vmatprep.mubr.f32.mxu0 0.0
      %2604 = vmatmul.mubr.f32.gmra.mrb[0].mxu0 %v2159
      %v2605 = vpop.f32.mrb[0].mxu0
      %v2606 = vadd.f32 0.0, %v2605
      %v2607 = vpop.f32.mrb[0].mxu0
      %2608 = vmatprep.mubr.f32.mxu0 0.0
      %2609 = vmatmul.mubr.f32.gmra.mrb[0].mxu0 %v2162
      %v2610 = vpop.f32.mrb[0].mxu0
      %v2611 = vadd.f32 0.0, %v2610
      %v2612 = vpop.f32.mrb[0].mxu0
      %2613 = vdwg.mxu0
      %2614 = vmatprep.subr.mxu0 0.0
      %2615 = vmatpush1.msra.mxu0 %v308
      %2616 = vmatprep.subr.mxu0 0.0
      %2617 = vmatpush1.msra.mxu0 %v309
      %2618 = vmatprep.subr.mxu0 0.0
      %2619 = vmatpush1.msra.mxu0 %v310
      %2620 = vmatprep.subr.mxu0 0.0
      %2621 = vmatpush1.msra.mxu0 %v311
      %2622 = vmatprep.subr.mxu0 0.0
      %2623 = vmatpush1.msra.mxu0 %v312
      %2624 = vmatprep.subr.mxu0 0.0
      %2625 = vmatpush1.msra.mxu0 %v313
      %2626 = vmatprep.subr.mxu0 0.0
      %2627 = vmatpush1.msra.mxu0 0.0
      %2628 = vmatprep.subr.mxu0 0.0
      %2629 = vmatpush1.msra.mxu0 0.0
      %2630 = vmatprep.subr.mxu0 0.0
      %2631 = vmatpush1.msra.mxu0 0.0
      %2632 = vmatprep.subr.mxu0 0.0
      %2633 = vmatpush1.msra.mxu0 0.0
      %2634 = vmatprep.subr.mxu0 0.0
      %2635 = vmatpush1.msra.mxu0 0.0
      %2636 = vmatprep.subr.mxu0 0.0
      %2637 = vmatpush1.msra.mxu0 0.0
      %2638 = vmatprep.subr.mxu0 0.0
      %2639 = vmatpush1.msra.mxu0 0.0
      %2640 = vmatprep.subr.mxu0 0.0
      %2641 = vmatpush1.msra.mxu0 0.0
      %2642 = vmatprep.subr.mxu0 0.0
      %2643 = vmatpush1.msra.mxu0 0.0
      %2644 = vmatprep.subr.mxu0 0.0
      %2645 = vmatpush1.msra.mxu0 0.0
      %2646 = vmatprep.subr.mxu0 0.0
      %2647 = vmatpush1.msra.mxu0 0.0
      %2648 = vmatprep.subr.mxu0 0.0
      %2649 = vmatpush1.msra.mxu0 0.0
      %2650 = vmatprep.subr.mxu0 0.0
      %2651 = vmatpush1.msra.mxu0 0.0
      %2652 = vmatprep.subr.mxu0 0.0
      %2653 = vmatpush1.msra.mxu0 0.0
      %2654 = vmatprep.subr.mxu0 0.0
      %2655 = vmatpush1.msra.mxu0 0.0
      %2656 = vmatprep.subr.mxu0 0.0
      %2657 = vmatpush1.msra.mxu0 0.0
      %2658 = vmatprep.subr.mxu0 0.0
      %2659 = vmatpush1.msra.mxu0 0.0
      %2660 = vmatprep.subr.mxu0 0.0
      %2661 = vmatpush1.msra.mxu0 0.0
      %2662 = vmatprep.subr.mxu0 0.0
      %2663 = vmatpush1.msra.mxu0 0.0
      %2664 = vmatprep.subr.mxu0 0.0
      %2665 = vmatpush1.msra.mxu0 0.0
      %2666 = vmatprep.subr.mxu0 0.0
      %2667 = vmatpush1.msra.mxu0 0.0
      %2668 = vmatprep.subr.mxu0 0.0
      %2669 = vmatpush1.msra.mxu0 0.0
      %2670 = vmatprep.subr.mxu0 0.0
      %2671 = vmatpush1.msra.mxu0 0.0
      %2672 = vmatprep.subr.mxu0 0.0
      %2673 = vmatpush1.msra.mxu0 0.0
      %2674 = vmatprep.subr.mxu0 0.0
      %2675 = vmatpush1.msra.mxu0 0.0
      %2676 = vmatprep.subr.mxu0 0.0
      %2677 = vmatpush1.msra.mxu0 0.0
      %2678 = vmatprep.mubr.f32.mxu0 0.0
      %2679 = vmatmul.mubr.f32.gmra.mrb[0].mxu0 %v2159
      %v2680 = vpop.f32.mrb[0].mxu0
      %v2681 = vadd.f32 0.0, %v2680
      %v2682 = vpop.f32.mrb[0].mxu0
      %2683 = vmatprep.mubr.f32.mxu0 0.0
      %2684 = vmatmul.mubr.f32.gmra.mrb[0].mxu0 %v2162
      %v2685 = vpop.f32.mrb[0].mxu0
      %v2686 = vadd.f32 0.0, %v2685
      %v2687 = vpop.f32.mrb[0].mxu0
      %2688 = vdwg.mxu0
      %2689 = vmatprep.subr.mxu0 0.0
      %2690 = vmatpush1.msra.mxu0 %v314
      %2691 = vmatprep.subr.mxu0 0.0
      %2692 = vmatpush1.msra.mxu0 %v315
      %2693 = vmatprep.subr.mxu0 0.0
      %2694 = vmatpush1.msra.mxu0 %v316
      %2695 = vmatprep.subr.mxu0 0.0
      %2696 = vmatpush1.msra.mxu0 %v317
      %2697 = vmatprep.subr.mxu0 0.0
      %2698 = vmatpush1.msra.mxu0 %v318
      %2699 = vmatprep.subr.mxu0 0.0
      %2700 = vmatpush1.msra.mxu0 %v319
      %2701 = vmatprep.subr.mxu0 0.0
      %2702 = vmatpush1.msra.mxu0 0.0
      %2703 = vmatprep.subr.mxu0 0.0
      %2704 = vmatpush1.msra.mxu0 0.0
      %2705 = vmatprep.subr.mxu0 0.0
      %2706 = vmatpush1.msra.mxu0 0.0
      %2707 = vmatprep.subr.mxu0 0.0
      %2708 = vmatpush1.msra.mxu0 0.0
      %2709 = vmatprep.subr.mxu0 0.0
      %2710 = vmatpush1.msra.mxu0 0.0
      %2711 = vmatprep.subr.mxu0 0.0
      %2712 = vmatpush1.msra.mxu0 0.0
      %2713 = vmatprep.subr.mxu0 0.0
      %2714 = vmatpush1.msra.mxu0 0.0
      %2715 = vmatprep.subr.mxu0 0.0
      %2716 = vmatpush1.msra.mxu0 0.0
      %2717 = vmatprep.subr.mxu0 0.0
      %2718 = vmatpush1.msra.mxu0 0.0
      %2719 = vmatprep.subr.mxu0 0.0
      %2720 = vmatpush1.msra.mxu0 0.0
      %2721 = vmatprep.subr.mxu0 0.0
      %2722 = vmatpush1.msra.mxu0 0.0
      %2723 = vmatprep.subr.mxu0 0.0
      %2724 = vmatpush1.msra.mxu0 0.0
      %2725 = vmatprep.subr.mxu0 0.0
      %2726 = vmatpush1.msra.mxu0 0.0
      %2727 = vmatprep.subr.mxu0 0.0
      %2728 = vmatpush1.msra.mxu0 0.0
      %2729 = vmatprep.subr.mxu0 0.0
      %2730 = vmatpush1.msra.mxu0 0.0
      %2731 = vmatprep.subr.mxu0 0.0
      %2732 = vmatpush1.msra.mxu0 0.0
      %2733 = vmatprep.subr.mxu0 0.0
      %2734 = vmatpush1.msra.mxu0 0.0
      %2735 = vmatprep.subr.mxu0 0.0
      %2736 = vmatpush1.msra.mxu0 0.0
      %2737 = vmatprep.subr.mxu0 0.0
      %2738 = vmatpush1.msra.mxu0 0.0
      %2739 = vmatprep.subr.mxu0 0.0
      %2740 = vmatpush1.msra.mxu0 0.0
      %2741 = vmatprep.subr.mxu0 0.0
      %2742 = vmatpush1.msra.mxu0 0.0
      %2743 = vmatprep.subr.mxu0 0.0
      %2744 = vmatpush1.msra.mxu0 0.0
      %2745 = vmatprep.subr.mxu0 0.0
      %2746 = vmatpush1.msra.mxu0 0.0
      %2747 = vmatprep.subr.mxu0 0.0
      %2748 = vmatpush1.msra.mxu0 0.0
      %2749 = vmatprep.subr.mxu0 0.0
      %2750 = vmatpush1.msra.mxu0 0.0
      %2751 = vmatprep.subr.mxu0 0.0
      %2752 = vmatpush1.msra.mxu0 0.0
      %2753 = vmatprep.mubr.f32.mxu0 0.0
      %2754 = vmatmul.mubr.f32.gmra.mrb[0].mxu0 %v2159
      %v2755 = vpop.f32.mrb[0].mxu0
      %v2756 = vadd.f32 0.0, %v2755
      %v2757 = vpop.f32.mrb[0].mxu0
      %2758 = vmatprep.mubr.f32.mxu0 0.0
      %2759 = vmatmul.mubr.f32.gmra.mrb[0].mxu0 %v2162
      %v2760 = vpop.f32.mrb[0].mxu0
      %v2761 = vadd.f32 0.0, %v2760
      %v2762 = vpop.f32.mrb[0].mxu0
      %2763 = vdwg.mxu0
      %v2764 = vld [vmem:[%s4] sm:$0x1]
      %v2765 = vld [vmem:[%s5] sm:$0x1]
      %2768 = vrot.lane.b32.xlu0 %v1009, 4
      %v2769 = vpop.permute.xlu0 %2768
      %2770 = vrot.lane.b32.xlu0 %v1014, 4
      %v2771 = vpop.permute.xlu0 %2770
      %2776 = vrot.lane.b32.xlu0 %v1620, 8
      %v2777 = vpop.permute.xlu0 %2776
      %2778 = vrot.lane.b32.xlu0 %v1625, 8
      %v2779 = vpop.permute.xlu0 %2778
      %2784 = vrot.lane.b32.xlu0 %v2231, 12
      %v2785 = vpop.permute.xlu0 %2784
      %2786 = vrot.lane.b32.xlu0 %v2236, 12
      %v2787 = vpop.permute.xlu0 %2786
      %vm2790 = vcmask 31744
      %v2791 = vsel %vm2790, %v398, %v2769
      %v2792 = vsel %vm2790, %v403, %v2771
      %vm2793 = vcmask 64512
      %v2794 = vsel %vm2793, %v2791, %v2777
      %v2795 = vsel %vm2793, %v2792, %v2779
      %vm2796 = vcmask 97280
      %v2797 = vsel %vm2796, %v2794, %v2785
      %v2798 = vsel %vm2796, %v2795, %v2787
      %vm2799 = vcmask 130048
      %v2800 = vsel %vm2799, %v2797, 0.0
      %2801 = vadd.xlane.f32.xlu0 %v2800
      %v2802 = vpop.xlane.xlu0 %2801
      %vm2803 = vcmask 128000
      %v2804 = vsel %vm2803, %v2798, 0.0
      %2805 = vadd.xlane.f32.xlu0 %v2804
      %v2806 = vpop.xlane.xlu0 %2805
      %v2807 = vrcp.pop 16.0
      %v2808 = vmul.f32 %v2802, %v2807
      %v2809 = vmul.f32 %v2806, %v2807
      %v2810 = vsub.f32 %v2797, %v2808
      %v2811 = vsub.f32 %v2798, %v2809
      %v2812 = vmul.f32 %v2810, %v2810
      %v2813 = vmul.f32 %v2811, %v2811
      %v2814 = vsel %vm2799, %v2812, 0.0
      %2815 = vadd.xlane.f32.xlu0 %v2814
      %v2816 = vpop.xlane.xlu0 %2815
      %v2817 = vsel %vm2803, %v2813, 0.0
      %2818 = vadd.xlane.f32.xlu0 %v2817
      %v2819 = vpop.xlane.xlu0 %2818
      %v2820 = vmul.f32 %v2816, %v2807
      %v2821 = vmul.f32 %v2819, %v2807
      %v2822 = vadd.f32 %v2820, 1e-05
      %v2823 = vadd.f32 %v2821, 1e-05
      %v2824 = vrsqrt.pop %v2822
      %v2825 = vrsqrt.pop %v2823
      %v2826 = vmul.f32 %v2810, %v2824
      %v2827 = vmul.f32 %v2811, %v2825
      %v2829 = vlaneseq
      %v2830 = vshrl.u32 %v2829, 7
      %v2831 = vsub.s32 0, %v2830
      %v2832 = vrot.slane %v2764, %v2831
      %v2834 = vmul.f32 %v2826, %v2832
      %v2835 = vmul.f32 %v2827, %v2832
      %v2837 = vlaneseq
      %v2838 = vshrl.u32 %v2837, 7
      %v2839 = vsub.s32 0, %v2838
      %v2840 = vrot.slane %v2765, %v2839
      %v2842 = vadd.f32 %v2834, %v2840
      %v2843 = vadd.f32 %v2835, %v2840
      %2846 = vrot.lane.b32.xlu0 %v1084, 4
      %v2847 = vpop.permute.xlu0 %2846
      %2848 = vrot.lane.b32.xlu0 %v1089, 4
      %v2849 = vpop.permute.xlu0 %2848
      %2854 = vrot.lane.b32.xlu0 %v1695, 8
      %v2855 = vpop.permute.xlu0 %2854
      %2856 = vrot.lane.b32.xlu0 %v1700, 8
      %v2857 = vpop.permute.xlu0 %2856
      %2862 = vrot.lane.b32.xlu0 %v2306, 12
      %v2863 = vpop.permute.xlu0 %2862
      %2864 = vrot.lane.b32.xlu0 %v2311, 12
      %v2865 = vpop.permute.xlu0 %2864
      %v2868 = vsel %vm2790, %v473, %v2847
      %v2869 = vsel %vm2790, %v478, %v2849
      %v2870 = vsel %vm2793, %v2868, %v2855
      %v2871 = vsel %vm2793, %v2869, %v2857
      %v2872 = vsel %vm2796, %v2870, %v2863
      %v2873 = vsel %vm2796, %v2871, %v2865
      %v2874 = vsel %vm2799, %v2872, 0.0
      %2875 = vadd.xlane.f32.xlu0 %v2874
      %v2876 = vpop.xlane.xlu0 %2875
      %v2877 = vsel %vm2803, %v2873, 0.0
      %2878 = vadd.xlane.f32.xlu0 %v2877
      %v2879 = vpop.xlane.xlu0 %2878
      %v2880 = vmul.f32 %v2876, %v2807
      %v2881 = vmul.f32 %v2879, %v2807
      %v2882 = vsub.f32 %v2872, %v2880
      %v2883 = vsub.f32 %v2873, %v2881
      %v2884 = vmul.f32 %v2882, %v2882
      %v2885 = vmul.f32 %v2883, %v2883
      %v2886 = vsel %vm2799, %v2884, 0.0
      %2887 = vadd.xlane.f32.xlu0 %v2886
      %v2888 = vpop.xlane.xlu0 %2887
      %v2889 = vsel %vm2803, %v2885, 0.0
      %2890 = vadd.xlane.f32.xlu0 %v2889
      %v2891 = vpop.xlane.xlu0 %2890
      %v2892 = vmul.f32 %v2888, %v2807
      %v2893 = vmul.f32 %v2891, %v2807
      %v2894 = vadd.f32 %v2892, 1e-05
      %v2895 = vadd.f32 %v2893, 1e-05
      %v2896 = vrsqrt.pop %v2894
      %v2897 = vrsqrt.pop %v2895
      %v2898 = vmul.f32 %v2882, %v2896
      %v2899 = vmul.f32 %v2883, %v2897
      %v2900 = vmul.f32 %v2898, %v2832
      %v2901 = vmul.f32 %v2899, %v2832
      %v2902 = vadd.f32 %v2900, %v2840
      %v2903 = vadd.f32 %v2901, %v2840
      %2906 = vrot.lane.b32.xlu0 %v1159, 4
      %v2907 = vpop.permute.xlu0 %2906
      %2908 = vrot.lane.b32.xlu0 %v1164, 4
      %v2909 = vpop.permute.xlu0 %2908
      %2914 = vrot.lane.b32.xlu0 %v1770, 8
      %v2915 = vpop.permute.xlu0 %2914
      %2916 = vrot.lane.b32.xlu0 %v1775, 8
      %v2917 = vpop.permute.xlu0 %2916
      %2922 = vrot.lane.b32.xlu0 %v2381, 12
      %v2923 = vpop.permute.xlu0 %2922
      %2924 = vrot.lane.b32.xlu0 %v2386, 12
      %v2925 = vpop.permute.xlu0 %2924
      %v2928 = vsel %vm2790, %v548, %v2907
      %v2929 = vsel %vm2790, %v553, %v2909
      %v2930 = vsel %vm2793, %v2928, %v2915
      %v2931 = vsel %vm2793, %v2929, %v2917
      %v2932 = vsel %vm2796, %v2930, %v2923
      %v2933 = vsel %vm2796, %v2931, %v2925
      %v2934 = vsel %vm2799, %v2932, 0.0
      %2935 = vadd.xlane.f32.xlu0 %v2934
      %v2936 = vpop.xlane.xlu0 %2935
      %v2937 = vsel %vm2803, %v2933, 0.0
      %2938 = vadd.xlane.f32.xlu0 %v2937
      %v2939 = vpop.xlane.xlu0 %2938
      %v2940 = vmul.f32 %v2936, %v2807
      %v2941 = vmul.f32 %v2939, %v2807
      %v2942 = vsub.f32 %v2932, %v2940
      %v2943 = vsub.f32 %v2933, %v2941
      %v2944 = vmul.f32 %v2942, %v2942
      %v2945 = vmul.f32 %v2943, %v2943
      %v2946 = vsel %vm2799, %v2944, 0.0
      %2947 = vadd.xlane.f32.xlu0 %v2946
      %v2948 = vpop.xlane.xlu0 %2947
      %v2949 = vsel %vm2803, %v2945, 0.0
      %2950 = vadd.xlane.f32.xlu0 %v2949
      %v2951 = vpop.xlane.xlu0 %2950
      %v2952 = vmul.f32 %v2948, %v2807
      %v2953 = vmul.f32 %v2951, %v2807
      %v2954 = vadd.f32 %v2952, 1e-05
      %v2955 = vadd.f32 %v2953, 1e-05
      %v2956 = vrsqrt.pop %v2954
      %v2957 = vrsqrt.pop %v2955
      %v2958 = vmul.f32 %v2942, %v2956
      %v2959 = vmul.f32 %v2943, %v2957
      %v2960 = vmul.f32 %v2958, %v2832
      %v2961 = vmul.f32 %v2959, %v2832
      %v2962 = vadd.f32 %v2960, %v2840
      %v2963 = vadd.f32 %v2961, %v2840
      %2966 = vrot.lane.b32.xlu0 %v1234, 4
      %v2967 = vpop.permute.xlu0 %2966
      %2968 = vrot.lane.b32.xlu0 %v1239, 4
      %v2969 = vpop.permute.xlu0 %2968
      %2974 = vrot.lane.b32.xlu0 %v1845, 8
      %v2975 = vpop.permute.xlu0 %2974
      %2976 = vrot.lane.b32.xlu0 %v1850, 8
      %v2977 = vpop.permute.xlu0 %2976
      %2982 = vrot.lane.b32.xlu0 %v2456, 12
      %v2983 = vpop.permute.xlu0 %2982
      %2984 = vrot.lane.b32.xlu0 %v2461, 12
      %v2985 = vpop.permute.xlu0 %2984
      %v2988 = vsel %vm2790, %v623, %v2967
      %v2989 = vsel %vm2790, %v628, %v2969
      %v2990 = vsel %vm2793, %v2988, %v2975
      %v2991 = vsel %vm2793, %v2989, %v2977
      %v2992 = vsel %vm2796, %v2990, %v2983
      %v2993 = vsel %vm2796, %v2991, %v2985
      %v2994 = vsel %vm2799, %v2992, 0.0
      %2995 = vadd.xlane.f32.xlu0 %v2994
      %v2996 = vpop.xlane.xlu0 %2995
      %v2997 = vsel %vm2803, %v2993, 0.0
      %2998 = vadd.xlane.f32.xlu0 %v2997
      %v2999 = vpop.xlane.xlu0 %2998
      %v3000 = vmul.f32 %v2996, %v2807
      %v3001 = vmul.f32 %v2999, %v2807
      %v3002 = vsub.f32 %v2992, %v3000
      %v3003 = vsub.f32 %v2993, %v3001
      %v3004 = vmul.f32 %v3002, %v3002
      %v3005 = vmul.f32 %v3003, %v3003
      %v3006 = vsel %vm2799, %v3004, 0.0
      %3007 = vadd.xlane.f32.xlu0 %v3006
      %v3008 = vpop.xlane.xlu0 %3007
      %v3009 = vsel %vm2803, %v3005, 0.0
      %3010 = vadd.xlane.f32.xlu0 %v3009
      %v3011 = vpop.xlane.xlu0 %3010
      %v3012 = vmul.f32 %v3008, %v2807
      %v3013 = vmul.f32 %v3011, %v2807
      %v3014 = vadd.f32 %v3012, 1e-05
      %v3015 = vadd.f32 %v3013, 1e-05
      %v3016 = vrsqrt.pop %v3014
      %v3017 = vrsqrt.pop %v3015
      %v3018 = vmul.f32 %v3002, %v3016
      %v3019 = vmul.f32 %v3003, %v3017
      %v3020 = vmul.f32 %v3018, %v2832
      %v3021 = vmul.f32 %v3019, %v2832
      %v3022 = vadd.f32 %v3020, %v2840
      %v3023 = vadd.f32 %v3021, %v2840
      %3026 = vrot.lane.b32.xlu0 %v1309, 4
      %v3027 = vpop.permute.xlu0 %3026
      %3028 = vrot.lane.b32.xlu0 %v1314, 4
      %v3029 = vpop.permute.xlu0 %3028
      %3034 = vrot.lane.b32.xlu0 %v1920, 8
      %v3035 = vpop.permute.xlu0 %3034
      %3036 = vrot.lane.b32.xlu0 %v1925, 8
      %v3037 = vpop.permute.xlu0 %3036
      %3042 = vrot.lane.b32.xlu0 %v2531, 12
      %v3043 = vpop.permute.xlu0 %3042
      %3044 = vrot.lane.b32.xlu0 %v2536, 12
      %v3045 = vpop.permute.xlu0 %3044
      %v3048 = vsel %vm2790, %v698, %v3027
      %v3049 = vsel %vm2790, %v703, %v3029
      %v3050 = vsel %vm2793, %v3048, %v3035
      %v3051 = vsel %vm2793, %v3049, %v3037
      %v3052 = vsel %vm2796, %v3050, %v3043
      %v3053 = vsel %vm2796, %v3051, %v3045
      %v3054 = vsel %vm2799, %v3052, 0.0
      %3055 = vadd.xlane.f32.xlu0 %v3054
      %v3056 = vpop.xlane.xlu0 %3055
      %v3057 = vsel %vm2803, %v3053, 0.0
      %3058 = vadd.xlane.f32.xlu0 %v3057
      %v3059 = vpop.xlane.xlu0 %3058
      %v3060 = vmul.f32 %v3056, %v2807
      %v3061 = vmul.f32 %v3059, %v2807
      %v3062 = vsub.f32 %v3052, %v3060
      %v3063 = vsub.f32 %v3053, %v3061
      %v3064 = vmul.f32 %v3062, %v3062
      %v3065 = vmul.f32 %v3063, %v3063
      %v3066 = vsel %vm2799, %v3064, 0.0
      %3067 = vadd.xlane.f32.xlu0 %v3066
      %v3068 = vpop.xlane.xlu0 %3067
      %v3069 = vsel %vm2803, %v3065, 0.0
      %3070 = vadd.xlane.f32.xlu0 %v3069
      %v3071 = vpop.xlane.xlu0 %3070
      %v3072 = vmul.f32 %v3068, %v2807
      %v3073 = vmul.f32 %v3071, %v2807
      %v3074 = vadd.f32 %v3072, 1e-05
      %v3075 = vadd.f32 %v3073, 1e-05
      %v3076 = vrsqrt.pop %v3074
      %v3077 = vrsqrt.pop %v3075
      %v3078 = vmul.f32 %v3062, %v3076
      %v3079 = vmul.f32 %v3063, %v3077
      %v3080 = vmul.f32 %v3078, %v2832
      %v3081 = vmul.f32 %v3079, %v2832
      %v3082 = vadd.f32 %v3080, %v2840
      %v3083 = vadd.f32 %v3081, %v2840
      %3086 = vrot.lane.b32.xlu0 %v1384, 4
      %v3087 = vpop.permute.xlu0 %3086
      %3088 = vrot.lane.b32.xlu0 %v1389, 4
      %v3089 = vpop.permute.xlu0 %3088
      %3094 = vrot.lane.b32.xlu0 %v1995, 8
      %v3095 = vpop.permute.xlu0 %3094
      %3096 = vrot.lane.b32.xlu0 %v2000, 8
      %v3097 = vpop.permute.xlu0 %3096
      %3102 = vrot.lane.b32.xlu0 %v2606, 12
      %v3103 = vpop.permute.xlu0 %3102
      %3104 = vrot.lane.b32.xlu0 %v2611, 12
      %v3105 = vpop.permute.xlu0 %3104
      %v3108 = vsel %vm2790, %v773, %v3087
      %v3109 = vsel %vm2790, %v778, %v3089
      %v3110 = vsel %vm2793, %v3108, %v3095
      %v3111 = vsel %vm2793, %v3109, %v3097
      %v3112 = vsel %vm2796, %v3110, %v3103
      %v3113 = vsel %vm2796, %v3111, %v3105
      %v3114 = vsel %vm2799, %v3112, 0.0
      %3115 = vadd.xlane.f32.xlu0 %v3114
      %v3116 = vpop.xlane.xlu0 %3115
      %v3117 = vsel %vm2803, %v3113, 0.0
      %3118 = vadd.xlane.f32.xlu0 %v3117
      %v3119 = vpop.xlane.xlu0 %3118
      %v3120 = vmul.f32 %v3116, %v2807
      %v3121 = vmul.f32 %v3119, %v2807
      %v3122 = vsub.f32 %v3112, %v3120
      %v3123 = vsub.f32 %v3113, %v3121
      %v3124 = vmul.f32 %v3122, %v3122
      %v3125 = vmul.f32 %v3123, %v3123
      %v3126 = vsel %vm2799, %v3124, 0.0
      %3127 = vadd.xlane.f32.xlu0 %v3126
      %v3128 = vpop.xlane.xlu0 %3127
      %v3129 = vsel %vm2803, %v3125, 0.0
      %3130 = vadd.xlane.f32.xlu0 %v3129
      %v3131 = vpop.xlane.xlu0 %3130
      %v3132 = vmul.f32 %v3128, %v2807
      %v3133 = vmul.f32 %v3131, %v2807
      %v3134 = vadd.f32 %v3132, 1e-05
      %v3135 = vadd.f32 %v3133, 1e-05
      %v3136 = vrsqrt.pop %v3134
      %v3137 = vrsqrt.pop %v3135
      %v3138 = vmul.f32 %v3122, %v3136
      %v3139 = vmul.f32 %v3123, %v3137
      %v3140 = vmul.f32 %v3138, %v2832
      %v3141 = vmul.f32 %v3139, %v2832
      %v3142 = vadd.f32 %v3140, %v2840
      %v3143 = vadd.f32 %v3141, %v2840
      %3146 = vrot.lane.b32.xlu0 %v1459, 4
      %v3147 = vpop.permute.xlu0 %3146
      %3148 = vrot.lane.b32.xlu0 %v1464, 4
      %v3149 = vpop.permute.xlu0 %3148
      %3154 = vrot.lane.b32.xlu0 %v2070, 8
      %v3155 = vpop.permute.xlu0 %3154
      %3156 = vrot.lane.b32.xlu0 %v2075, 8
      %v3157 = vpop.permute.xlu0 %3156
      %3162 = vrot.lane.b32.xlu0 %v2681, 12
      %v3163 = vpop.permute.xlu0 %3162
      %3164 = vrot.lane.b32.xlu0 %v2686, 12
      %v3165 = vpop.permute.xlu0 %3164
      %v3168 = vsel %vm2790, %v848, %v3147
      %v3169 = vsel %vm2790, %v853, %v3149
      %v3170 = vsel %vm2793, %v3168, %v3155
      %v3171 = vsel %vm2793, %v3169, %v3157
      %v3172 = vsel %vm2796, %v3170, %v3163
      %v3173 = vsel %vm2796, %v3171, %v3165
      %v3174 = vsel %vm2799, %v3172, 0.0
      %3175 = vadd.xlane.f32.xlu0 %v3174
      %v3176 = vpop.xlane.xlu0 %3175
      %v3177 = vsel %vm2803, %v3173, 0.0
      %3178 = vadd.xlane.f32.xlu0 %v3177
      %v3179 = vpop.xlane.xlu0 %3178
      %v3180 = vmul.f32 %v3176, %v2807
      %v3181 = vmul.f32 %v3179, %v2807
      %v3182 = vsub.f32 %v3172, %v3180
      %v3183 = vsub.f32 %v3173, %v3181
      %v3184 = vmul.f32 %v3182, %v3182
      %v3185 = vmul.f32 %v3183, %v3183
      %v3186 = vsel %vm2799, %v3184, 0.0
      %3187 = vadd.xlane.f32.xlu0 %v3186
      %v3188 = vpop.xlane.xlu0 %3187
      %v3189 = vsel %vm2803, %v3185, 0.0
      %3190 = vadd.xlane.f32.xlu0 %v3189
      %v3191 = vpop.xlane.xlu0 %3190
      %v3192 = vmul.f32 %v3188, %v2807
      %v3193 = vmul.f32 %v3191, %v2807
      %v3194 = vadd.f32 %v3192, 1e-05
      %v3195 = vadd.f32 %v3193, 1e-05
      %v3196 = vrsqrt.pop %v3194
      %v3197 = vrsqrt.pop %v3195
      %v3198 = vmul.f32 %v3182, %v3196
      %v3199 = vmul.f32 %v3183, %v3197
      %v3200 = vmul.f32 %v3198, %v2832
      %v3201 = vmul.f32 %v3199, %v2832
      %v3202 = vadd.f32 %v3200, %v2840
      %v3203 = vadd.f32 %v3201, %v2840
      %3206 = vrot.lane.b32.xlu0 %v1534, 4
      %v3207 = vpop.permute.xlu0 %3206
      %3208 = vrot.lane.b32.xlu0 %v1539, 4
      %v3209 = vpop.permute.xlu0 %3208
      %3214 = vrot.lane.b32.xlu0 %v2145, 8
      %v3215 = vpop.permute.xlu0 %3214
      %3216 = vrot.lane.b32.xlu0 %v2150, 8
      %v3217 = vpop.permute.xlu0 %3216
      %3222 = vrot.lane.b32.xlu0 %v2756, 12
      %v3223 = vpop.permute.xlu0 %3222
      %3224 = vrot.lane.b32.xlu0 %v2761, 12
      %v3225 = vpop.permute.xlu0 %3224
      %v3228 = vsel %vm2790, %v923, %v3207
      %v3229 = vsel %vm2790, %v928, %v3209
      %v3230 = vsel %vm2793, %v3228, %v3215
      %v3231 = vsel %vm2793, %v3229, %v3217
      %v3232 = vsel %vm2796, %v3230, %v3223
      %v3233 = vsel %vm2796, %v3231, %v3225
      %v3234 = vsel %vm2799, %v3232, 0.0
      %3235 = vadd.xlane.f32.xlu0 %v3234
      %v3236 = vpop.xlane.xlu0 %3235
      %v3237 = vsel %vm2803, %v3233, 0.0
      %3238 = vadd.xlane.f32.xlu0 %v3237
      %v3239 = vpop.xlane.xlu0 %3238
      %v3240 = vmul.f32 %v3236, %v2807
      %v3241 = vmul.f32 %v3239, %v2807
      %v3242 = vsub.f32 %v3232, %v3240
      %v3243 = vsub.f32 %v3233, %v3241
      %v3244 = vmul.f32 %v3242, %v3242
      %v3245 = vmul.f32 %v3243, %v3243
      %v3246 = vsel %vm2799, %v3244, 0.0
      %3247 = vadd.xlane.f32.xlu0 %v3246
      %v3248 = vpop.xlane.xlu0 %3247
      %v3249 = vsel %vm2803, %v3245, 0.0
      %3250 = vadd.xlane.f32.xlu0 %v3249
      %v3251 = vpop.xlane.xlu0 %3250
      %v3252 = vmul.f32 %v3248, %v2807
      %v3253 = vmul.f32 %v3251, %v2807
      %v3254 = vadd.f32 %v3252, 1e-05
      %v3255 = vadd.f32 %v3253, 1e-05
      %v3256 = vrsqrt.pop %v3254
      %v3257 = vrsqrt.pop %v3255
      %v3258 = vmul.f32 %v3242, %v3256
      %v3259 = vmul.f32 %v3243, %v3257
      %v3260 = vmul.f32 %v3258, %v2832
      %v3261 = vmul.f32 %v3259, %v2832
      %v3262 = vadd.f32 %v3260, %v2840
      %v3263 = vadd.f32 %v3261, %v2840
      %3266 = vrot.lane.b32.xlu0 %v2902, 16
      %v3267 = vpop.permute.xlu0 %3266
      %3268 = vrot.lane.b32.xlu0 %v2903, 16
      %v3269 = vpop.permute.xlu0 %3268
      %3274 = vrot.lane.b32.xlu0 %v2962, 32
      %v3275 = vpop.permute.xlu0 %3274
      %3276 = vrot.lane.b32.xlu0 %v2963, 32
      %v3277 = vpop.permute.xlu0 %3276
      %3282 = vrot.lane.b32.xlu0 %v3022, 48
      %v3283 = vpop.permute.xlu0 %3282
      %3284 = vrot.lane.b32.xlu0 %v3023, 48
      %v3285 = vpop.permute.xlu0 %3284
      %3290 = vrot.lane.b32.xlu0 %v3082, 64
      %v3291 = vpop.permute.xlu0 %3290
      %3292 = vrot.lane.b32.xlu0 %v3083, 64
      %v3293 = vpop.permute.xlu0 %3292
      %3298 = vrot.lane.b32.xlu0 %v3142, 80
      %v3299 = vpop.permute.xlu0 %3298
      %3300 = vrot.lane.b32.xlu0 %v3143, 80
      %v3301 = vpop.permute.xlu0 %3300
      %3306 = vrot.lane.b32.xlu0 %v3202, 96
      %v3307 = vpop.permute.xlu0 %3306
      %3308 = vrot.lane.b32.xlu0 %v3203, 96
      %v3309 = vpop.permute.xlu0 %3308
      %3314 = vrot.lane.b32.xlu0 %v3262, 112
      %v3315 = vpop.permute.xlu0 %3314
      %3316 = vrot.lane.b32.xlu0 %v3263, 112
      %v3317 = vpop.permute.xlu0 %3316
      %v3320 = vsel %vm2799, %v2842, %v3267
      %v3321 = vsel %vm2799, %v2843, %v3269
      %vm3322 = vcmask 261120
      %v3323 = vsel %vm3322, %v3320, %v3275
      %v3324 = vsel %vm3322, %v3321, %v3277
      %v3325 = vsel %vm324, %v3323, %v3283
      %v3326 = vsel %vm324, %v3324, %v3285
      %vm3327 = vcmask 523264
      %v3328 = vsel %vm3327, %v3325, %v3291
      %v3329 = vsel %vm3327, %v3326, %v3293
      %vm3330 = vcmask 654336
      %v3331 = vsel %vm3330, %v3328, %v3299
      %v3332 = vsel %vm3330, %v3329, %v3301
      %vm3333 = vcmask 785408
      %v3334 = vsel %vm3333, %v3331, %v3307
      %v3335 = vsel %vm3333, %v3332, %v3309
      %vm3336 = vcmask 916480
      %v3337 = vsel %vm3336, %v3334, %v3315
      %v3338 = vsel %vm3336, %v3335, %v3317
      %3339 = vst [vmem:[%s271] sm:$0xff] %v3337
      %3340 = vst [vmem:[%s271 + $0x8] sm:$0x3f] %v3338
      %p3341 = scmp.lt.s32.totalorder %s17, 1
      %s3342 = scalar_select %p3341, %s17, 1
      %s3343 = smul.addr %s3342, 2
      %s3344 = smul.addr %s3343, 8
      %s3345 = scalar_lea.vmem %s6, %s3344
      // Predicated region
      $region45: #{tpu_custom_call.1} parent=43 // pred_check
        %p3346 = pneg %p171
      $region46: #{tpu_custom_call.1} parent=43 // pred_check_branch
        %3348 = sbr.rel (%p3346) target = $region48
      $region47: #{tpu_custom_call.1} parent=43 // pred_region
        _
      $region48: #{tpu_custom_call.1} parent=43 // pred_fallthru
        _
    $region44: #{tpu_custom_call.1} parent=5 // pred_fallthru
      _
    %p3349 = scmp.le.s32.totalorder 2, %s12
    // Predicated region
    $region49: #{tpu_custom_call.1} parent=5 // pred_check
      %p3350 = pneg %p3349
    $region50: #{tpu_custom_call.1} parent=5 // pred_check_branch
      %3352 = sbr.rel (%p3350) target = $region52
    $region51: #{tpu_custom_call.1} parent=5 // pred_region
      %s3353 = ssub.s32 %s12, 2
      // Predicated region
      $region53: #{tpu_custom_call.1} parent=51 // pred_check
        %p3354 = pneg %p177
      $region54: #{tpu_custom_call.1} parent=51 // pred_check_branch
        %3356 = sbr.rel (%p3354) target = $region56
      $region55: #{tpu_custom_call.1} parent=51 // pred_region
        %p3357 = scmp.lt.s32.totalorder %s18, 1
        %s3358 = scalar_select %p3357, %s18, 1
        %s3359 = smul.addr %s3358, 2
        %s3360 = smul.addr %s3359, 8
        %s3361 = scalar_lea.vmem %s6, %s3360
      $region56: #{tpu_custom_call.1} parent=51 // pred_fallthru
        _
    $region52: #{tpu_custom_call.1} parent=5 // pred_fallthru
      _
  $region6: #{tpu_custom_call.1} parent=0 // loop_footer
    %s16 = sadd.s32 1, %s12
  $region7: #{tpu_custom_call.1} parent=0 // loop_footer_branch
    %11 = sbr.rel target = $region3
  $region8: #{tpu_custom_call.1} parent=0 // loop_exit
    _

</llo_original>
